<compile_context>
chip_gen: v6e
topology: v6e:2x2x1
jax: 0.10.0
libtpu: 0.0.40
codegen_flags: <defaults>
</compile_context>

<pallas_src>
import functools

import jax
import jax.numpy as jnp
import numpy as np
from jax import lax
from jax.experimental import pallas as pl
from jax.experimental.pallas import tpu as pltpu

_BN_EPS = 1e-5


def _fold_bn(gamma, beta, mean, var, eps=_BN_EPS):
    scale = (gamma / jnp.sqrt(var + eps)).astype(jnp.float32)
    bias = (beta - mean * scale).astype(jnp.float32)
    return scale, bias


def _make_kernel(*, Hs, Ws, Cs, Cin, Hout, Wout, planes, taps1, fuse_sc,
                 pad_bottom, pad_right, batch_tile, compute_dtype):
    """Fused conv3x3+BN+ReLU -> conv3x3+BN (+fused shortcut) -> ReLU.

    taps1: 9 static (row0, col0, ch0) window descriptors for conv1's im2col
    into the zero-haloed staged input.  stride=1 uses the plain 3x3 windows;
    stride=2 uses space-to-depth phase planes, so all slices are contiguous.
    """
    M = Hout * Wout
    K2 = 9 * planes + (Cin if fuse_sc else 0)
    cdt = compute_dtype
    f32 = jnp.float32
    HP = Hs + 1 + pad_bottom
    WP = Ws + 1 + pad_right

    def kernel(x_ref, w1_ref, b1_ref, w2_ref, b2_ref, o_ref,
               xpad_ref, im1_ref, pad2_ref, im2_ref):
        # ---- zero only the halo of the staging buffers (once per step) ----
        xpad_ref[0:1, :, :] = jnp.zeros((1, WP, Cs), f32)
        xpad_ref[:, 0:1, :] = jnp.zeros((HP, 1, Cs), f32)
        if pad_bottom:
            xpad_ref[HP - 1:HP, :, :] = jnp.zeros((1, WP, Cs), f32)
        if pad_right:
            xpad_ref[:, WP - 1:WP, :] = jnp.zeros((HP, 1, Cs), f32)
        pad2_ref[0:1, :, :] = jnp.zeros((1, Wout + 2, planes), f32)
        pad2_ref[Hout + 1:Hout + 2, :, :] = jnp.zeros((1, Wout + 2, planes), f32)
        pad2_ref[:, 0:1, :] = jnp.zeros((Hout + 2, 1, planes), f32)
        pad2_ref[:, Wout + 1:Wout + 2, :] = jnp.zeros((Hout + 2, 1, planes), f32)

        # ---- conv1 im2col: tap windows written straight into VMEM scratch ----
        for b in range(batch_tile):
            xpad_ref[1:1 + Hs, 1:1 + Ws, :] = x_ref[b].astype(f32)
            for t, (r0, c0, c_lo) in enumerate(taps1):
                tap = xpad_ref[r0:r0 + Hout, c0:c0 + Wout, c_lo:c_lo + Cin]
                im1_ref[b * M:(b + 1) * M, t * Cin:(t + 1) * Cin] = (
                    tap.reshape(M, Cin).astype(cdt))

        # conv1 (BN1 scale pre-folded into w1) + bias + ReLU; K = 9*Cin.
        acc1 = jnp.dot(im1_ref[...], w1_ref[...], preferred_element_type=f32)
        out1 = jnp.maximum(acc1 + b1_ref[...], 0.0)            # (bt*M, planes)

        # ---- conv2 im2col (+ fused 1x1-shortcut columns) ----
        for b in range(batch_tile):
            pad2_ref[1:1 + Hout, 1:1 + Wout, :] = (
                out1[b * M:(b + 1) * M].reshape(Hout, Wout, planes))
            for t in range(9):
                kh, kw = divmod(t, 3)
                tap = pad2_ref[kh:kh + Hout, kw:kw + Wout, :]
                im2_ref[b * M:(b + 1) * M, t * planes:(t + 1) * planes] = (
                    tap.reshape(M, planes).astype(cdt))
            if fuse_sc:
                # phase (0,0) of the space-to-depth input == x[:, ::s, ::s],
                # i.e. exactly what the 1x1 stride-s shortcut conv samples.
                xs = x_ref[b][:, :, 0:Cin]
                im2_ref[b * M:(b + 1) * M, 9 * planes:K2] = (
                    xs.reshape(M, Cin).astype(cdt))

        # conv2 (+ fused shortcut) in transposed orientation:
        # out2^T = W2sc @ im2col2^T -> (planes, bt*M), lane-dense store.
        out2t = lax.dot_general(
            w2_ref[...], im2_ref[...], (((1,), (1,)), ((), ())),
            preferred_element_type=f32)
        out2t = out2t + b2_ref[...]                             # BN2 (+BNsc) bias

        for b in range(batch_tile):
            res = out2t[:, b * M:(b + 1) * M]
            if not fuse_sc:
                # Identity shortcut: add raw f32 x (exact even with bf16 MXU
                # operands); pure transpose runs on the XLU, MXU stays free.
                res = res + x_ref[b].astype(f32).reshape(M, Cin).T
            o_ref[b] = jnp.maximum(res, 0.0).astype(o_ref.dtype)

    return kernel


@functools.partial(jax.jit,
                   static_argnames=("stride", "compute_dtype", "batch_tile"))
def basic_block_forward(x_nchw, params, stride=1, compute_dtype=jnp.bfloat16,
                        batch_tile=None):
    """Pallas implementation of BasicBlock.forward.  x is NCHW (like PyTorch)."""
    N, Cin, H, W = x_nchw.shape
    planes = params["w1"].shape[0]
    if stride not in (1, 2):
        raise NotImplementedError("stride must be 1 or 2")  # TODO(synk): general stride
    Hout = (H + 2 - 3) // stride + 1
    Wout = (W + 2 - 3) // stride + 1
    M = Hout * Wout
    cdt = compute_dtype

    # Fold batch images so the matmul / store lane dim (bt*M) is >= 128.
    if batch_tile is None:
        batch_tile = 1
        while batch_tile < N and batch_tile * M < 128 and N % (2 * batch_tile) == 0:
            batch_tile *= 2
    bt = batch_tile
    assert N % bt == 0

    # ---- input restaging (plain XLA, a single pass) ----
    if stride == 1:
        assert Cin == planes, "identity shortcut requires in_planes == planes"
        x_staged = jnp.transpose(x_nchw, (0, 2, 3, 1))          # NHWC
        Hs, Ws, Cs = H, W, Cin
        pad_bottom = pad_right = 1
        taps1 = tuple((kh, kw, 0) for kh in range(3) for kw in range(3))
        fuse_sc = False
    else:
        assert H % 2 == 0 and W % 2 == 0, "stride-2 path assumes even H, W"
        # Space-to-depth: a stride-2 3x3 conv == stride-1 conv over 4 phase
        # planes stacked on channels -> only contiguous slices in-kernel.
        x_staged = x_nchw.reshape(N, Cin, Hout, 2, Wout, 2)
        x_staged = jnp.transpose(x_staged, (0, 2, 4, 3, 5, 1))
        x_staged = x_staged.reshape(N, Hout, Wout, 4 * Cin)
        Hs, Ws, Cs = Hout, Wout, 4 * Cin
        pad_bottom = pad_right = 0
        pdh = {0: (1, -1), 1: (0, 0), 2: (1, 0)}   # tap -> (phase, offset)
        taps = []
        for kh in range(3):
            for kw in range(3):
                p, dh = pdh[kh]
                q, dw = pdh[kw]
                taps.append((1 + dh, 1 + dw, (2 * p + q) * Cin))
        taps1 = tuple(taps)
        fuse_sc = True

    # ---- fold BN into weights / biases on the host ----
    s1, b1 = _fold_bn(params["bn1_gamma"], params["bn1_beta"],
                      params["bn1_mean"], params["bn1_var"])
    s2, b2 = _fold_bn(params["bn2_gamma"], params["bn2_beta"],
                      params["bn2_mean"], params["bn2_var"])

    # conv1: OIHW -> HWIO, BN1 scale folded into output columns.
    w1 = jnp.transpose(params["w1"], (2, 3, 1, 0)) * s1         # (3,3,Cin,planes)
    w1 = w1.reshape(9 * Cin, planes).astype(cdt)
    b1 = b1.reshape(1, planes)

    # conv2 (transposed orientation): OIHW -> OHWI -> (planes, 9*planes) with
    # BN2 scale folded into rows; fuse the scaled 1x1 shortcut along K.
    w2 = jnp.transpose(params["w2"], (0, 2, 3, 1)).reshape(planes, 9 * planes)
    w2 = w2 * s2[:, None]
    if fuse_sc:
        ssc, bsc = _fold_bn(params["bnsc_gamma"], params["bnsc_beta"],
                            params["bnsc_mean"], params["bnsc_var"])
        wsc = params["wsc"][:, :, 0, 0] * ssc[:, None]          # (planes, Cin)
        w2 = jnp.concatenate([w2, wsc], axis=1)
        b2 = b2 + bsc
    w2 = w2.astype(cdt)
    b2 = b2.reshape(planes, 1)
    K2 = w2.shape[1]

    kernel = _make_kernel(Hs=Hs, Ws=Ws, Cs=Cs, Cin=Cin, Hout=Hout, Wout=Wout,
                          planes=planes, taps1=taps1, fuse_sc=fuse_sc,
                          pad_bottom=pad_bottom, pad_right=pad_right,
                          batch_tile=bt, compute_dtype=cdt)

    full2 = lambda n: (0, 0)
    in_specs = [
        pl.BlockSpec((bt, Hs, Ws, Cs), lambda n: (n, 0, 0, 0)),
        pl.BlockSpec((9 * Cin, planes), full2),
        pl.BlockSpec((1, planes), full2),
        pl.BlockSpec((planes, K2), full2),
        pl.BlockSpec((planes, 1), full2),
    ]

    flops = 2 * N * M * planes * (9 * Cin + K2)
    bytes_accessed = (4 * x_staged.size + 4 * N * planes * M
                      + w1.dtype.itemsize * (w1.size + w2.size)
                      + 4 * (b1.size + b2.size))
    cost = pl.CostEstimate(flops=int(flops), transcendentals=0,
                           bytes_accessed=int(bytes_accessed))

    out = pl.pallas_call(
        kernel,
        out_shape=jax.ShapeDtypeStruct((N, planes, M), x_nchw.dtype),
        grid=(N // bt,),
        in_specs=in_specs,
        out_specs=pl.BlockSpec((bt, planes, M), lambda n: (n, 0, 0)),
        scratch_shapes=[
            pltpu.VMEM((Hs + 1 + pad_bottom, Ws + 1 + pad_right, Cs), jnp.float32),
            pltpu.VMEM((bt * M, 9 * Cin), cdt),
            pltpu.VMEM((Hout + 2, Wout + 2, planes), jnp.float32),
            pltpu.VMEM((bt * M, K2), cdt),
        ],
        compiler_params=pltpu.CompilerParams(
            dimension_semantics=("parallel",),
            vmem_limit_bytes=64 * 1024 * 1024),
        cost_estimate=cost,
    )(x_staged, w1, b1, w2, b2)

    # (N, planes, Hout*Wout) is already channel-major; reshape to NCHW is free.
    return out.reshape(N, planes, Hout, Wout)


# ----------------------------- pure-JAX reference -----------------------------
def _ref_forward(x, params, stride=1):
    dn = ("NCHW", "OIHW", "NCHW")

    def conv(x, w, s, pad):
        return lax.conv_general_dilated(
            x, w, (s, s), ((pad, pad), (pad, pad)), dimension_numbers=dn)

    def bn(x, g, b, m, v, eps=_BN_EPS):
        shp = (1, -1, 1, 1)
        return ((x - m.reshape(shp)) / jnp.sqrt(v.reshape(shp) + eps)
                * g.reshape(shp) + b.reshape(shp))

    out = jax.nn.relu(bn(conv(x, params["w1"], stride, 1),
                         params["bn1_gamma"], params["bn1_beta"],
                         params["bn1_mean"], params["bn1_var"]))
    out = bn(conv(out, params["w2"], 1, 1),
             params["bn2_gamma"], params["bn2_beta"],
             params["bn2_mean"], params["bn2_var"])
    if stride != 1:
        sc = bn(conv(x, params["wsc"], stride, 0),
                params["bnsc_gamma"], params["bnsc_beta"],
                params["bnsc_mean"], params["bnsc_var"])
    else:
        sc = x
    return jax.nn.relu(out + sc)


if __name__ == "__main__":
    key = jax.random.PRNGKey(0)

    def make_params(k, in_planes, planes):
        ks = jax.random.split(k, 15)
        nrm = lambda kk, shp: 0.1 * jax.random.normal(kk, shp, jnp.float32)
        return {
            "w1": nrm(ks[0], (planes, in_planes, 3, 3)),
            "bn1_gamma": 1.0 + nrm(ks[1], (planes,)),
            "bn1_beta": nrm(ks[2], (planes,)),
            "bn1_mean": nrm(ks[3], (planes,)),
            "bn1_var": 0.5 + jax.random.uniform(ks[4], (planes,), jnp.float32),
            "w2": nrm(ks[5], (planes, planes, 3, 3)),
            "bn2_gamma": 1.0 + nrm(ks[6], (planes,)),
            "bn2_beta": nrm(ks[7], (planes,)),
            "bn2_mean": nrm(ks[8], (planes,)),
            "bn2_var": 0.5 + jax.random.uniform(ks[9], (planes,), jnp.float32),
            "wsc": nrm(ks[10], (planes, in_planes, 1, 1)),
            "bnsc_gamma": 1.0 + nrm(ks[11], (planes,)),
            "bnsc_beta": nrm(ks[12], (planes,)),
            "bnsc_mean": nrm(ks[13], (planes,)),
            "bnsc_var": 0.5 + jax.random.uniform(ks[14], (planes,), jnp.float32),
        }

    k1, k2, kx1, kx2 = jax.random.split(key, 4)

    # Config A: stride=1 (identity shortcut).   Config B: stride=2 (1x1+BN shortcut).
    N, H, W = 2, 16, 16
    pA = make_params(k1, 8, 8)
    xA = jax.random.normal(kx1, (N, 8, H, W), jnp.float32)
    pB = make_params(k2, 8, 16)
    xB = jax.random.normal(kx2, (N, 8, H, W), jnp.float32)

    for name, x, p, s in (("stride1", xA, pA, 1), ("stride2", xB, pB, 2)):
        ref = _ref_forward(x, p, stride=s)
        # exact-math check (f32 MXU operands)
        out_f32 = jax.block_until_ready(
            basic_block_forward(x, p, stride=s, compute_dtype=jnp.float32))
        np.testing.assert_allclose(np.asarray(out_f32), np.asarray(ref),
                                   rtol=1e-4, atol=1e-4, err_msg=f"{name} f32")
        # default fast path (bf16 MXU operands, f32 accumulation)
        out_bf16 = jax.block_until_ready(basic_block_forward(x, p, stride=s))
        np.testing.assert_allclose(np.asarray(out_bf16), np.asarray(ref),
                                   rtol=5e-2, atol=1e-1, err_msg=f"{name} bf16")

    print("KERNEL_OK")
</pallas_src>

<mosaic_0001>
module attributes {stable_mosaic.version = 11 : i64} {
  func.func @kernel(%arg0: i32, %arg1: memref<1x16x16x8xf32, #tpu.memory_space<vmem>>, %arg2: memref<72x8xf32, #tpu.memory_space<vmem>>, %arg3: memref<1x8xf32, #tpu.memory_space<vmem>>, %arg4: memref<8x72xf32, #tpu.memory_space<vmem>>, %arg5: memref<8x1xf32, #tpu.memory_space<vmem>>, %arg6: memref<1x8x256xf32, #tpu.memory_space<vmem>>, %arg7: memref<18x18x8xf32, #tpu.memory_space<vmem>>, %arg8: memref<256x72xf32, #tpu.memory_space<vmem>>, %arg9: memref<18x18x8xf32, #tpu.memory_space<vmem>>, %arg10: memref<256x72xf32, #tpu.memory_space<vmem>>) attributes {dimension_semantics = [#tpu.dimension_semantics<parallel>], iteration_bounds = array<i64: 2>, scalar_prefetch = 0 : i64, scratch_operands = 4 : i64, tpu.core_type = #tpu.core_type<tc>, window_params = [{transform_indices = @transform_0, window_bounds = array<i64: 1, 16, 16, 8>}, {pipeline_mode = #tpu.pipeline_mode<synchronous>, transform_indices = @transform_1, window_bounds = array<i64: 72, 8>}, {pipeline_mode = #tpu.pipeline_mode<synchronous>, transform_indices = @transform_2, window_bounds = array<i64: 1, 8>}, {pipeline_mode = #tpu.pipeline_mode<synchronous>, transform_indices = @transform_3, window_bounds = array<i64: 8, 72>}, {pipeline_mode = #tpu.pipeline_mode<synchronous>, transform_indices = @transform_4, window_bounds = array<i64: 8, 1>}, {transform_indices = @transform_5, window_bounds = array<i64: 1, 8, 256>}]} {
    %cst = arith.constant 0.000000e+00 : f32
    %0 = vector.broadcast %cst : f32 to vector<1x18x8xf32>
    %c0 = arith.constant 0 : index
    %c0_0 = arith.constant 0 : index
    %c0_1 = arith.constant 0 : index
    %1 = vector.load %arg7[%c0, %c0_0, %c0_1] : memref<18x18x8xf32, #tpu.memory_space<vmem>>, vector<1x18x8xf32>
    tpu.vector_store %arg7[%c0, %c0_0, %c0_1], %0 {strides = array<i32>} : memref<18x18x8xf32, #tpu.memory_space<vmem>>, vector<1x18x8xf32>,
    %cst_2 = arith.constant 0.000000e+00 : f32
    %2 = vector.broadcast %cst_2 : f32 to vector<18x1x8xf32>
    %c0_3 = arith.constant 0 : index
    %c0_4 = arith.constant 0 : index
    %c0_5 = arith.constant 0 : index
    %3 = vector.load %arg7[%c0_3, %c0_4, %c0_5] : memref<18x18x8xf32, #tpu.memory_space<vmem>>, vector<18x1x8xf32>
    tpu.vector_store %arg7[%c0_3, %c0_4, %c0_5], %2 {strides = array<i32>} : memref<18x18x8xf32, #tpu.memory_space<vmem>>, vector<18x1x8xf32>,
    %cst_6 = arith.constant 0.000000e+00 : f32
    %4 = vector.broadcast %cst_6 : f32 to vector<1x18x8xf32>
    %c17 = arith.constant 17 : index
    %c0_7 = arith.constant 0 : index
    %c0_8 = arith.constant 0 : index
    %5 = vector.load %arg7[%c17, %c0_7, %c0_8] : memref<18x18x8xf32, #tpu.memory_space<vmem>>, vector<1x18x8xf32>
    tpu.vector_store %arg7[%c17, %c0_7, %c0_8], %4 {strides = array<i32>} : memref<18x18x8xf32, #tpu.memory_space<vmem>>, vector<1x18x8xf32>,
    %cst_9 = arith.constant 0.000000e+00 : f32
    %6 = vector.broadcast %cst_9 : f32 to vector<18x1x8xf32>
    %c0_10 = arith.constant 0 : index
    %c17_11 = arith.constant 17 : index
    %c0_12 = arith.constant 0 : index
    %7 = vector.load %arg7[%c0_10, %c17_11, %c0_12] : memref<18x18x8xf32, #tpu.memory_space<vmem>>, vector<18x1x8xf32>
    tpu.vector_store %arg7[%c0_10, %c17_11, %c0_12], %6 {strides = array<i32>} : memref<18x18x8xf32, #tpu.memory_space<vmem>>, vector<18x1x8xf32>,
    %cst_13 = arith.constant 0.000000e+00 : f32
    %8 = vector.broadcast %cst_13 : f32 to vector<1x18x8xf32>
    %c0_14 = arith.constant 0 : index
    %c0_15 = arith.constant 0 : index
    %c0_16 = arith.constant 0 : index
    %9 = vector.load %arg9[%c0_14, %c0_15, %c0_16] : memref<18x18x8xf32, #tpu.memory_space<vmem>>, vector<1x18x8xf32>
    tpu.vector_store %arg9[%c0_14, %c0_15, %c0_16], %8 {strides = array<i32>} : memref<18x18x8xf32, #tpu.memory_space<vmem>>, vector<1x18x8xf32>,
    %cst_17 = arith.constant 0.000000e+00 : f32
    %10 = vector.broadcast %cst_17 : f32 to vector<1x18x8xf32>
    %c17_18 = arith.constant 17 : index
    %c0_19 = arith.constant 0 : index
    %c0_20 = arith.constant 0 : index
    %11 = vector.load %arg9[%c17_18, %c0_19, %c0_20] : memref<18x18x8xf32, #tpu.memory_space<vmem>>, vector<1x18x8xf32>
    tpu.vector_store %arg9[%c17_18, %c0_19, %c0_20], %10 {strides = array<i32>} : memref<18x18x8xf32, #tpu.memory_space<vmem>>, vector<1x18x8xf32>,
    %cst_21 = arith.constant 0.000000e+00 : f32
    %12 = vector.broadcast %cst_21 : f32 to vector<18x1x8xf32>
    %c0_22 = arith.constant 0 : index
    %c0_23 = arith.constant 0 : index
    %c0_24 = arith.constant 0 : index
    %13 = vector.load %arg9[%c0_22, %c0_23, %c0_24] : memref<18x18x8xf32, #tpu.memory_space<vmem>>, vector<18x1x8xf32>
    tpu.vector_store %arg9[%c0_22, %c0_23, %c0_24], %12 {strides = array<i32>} : memref<18x18x8xf32, #tpu.memory_space<vmem>>, vector<18x1x8xf32>,
    %cst_25 = arith.constant 0.000000e+00 : f32
    %14 = vector.broadcast %cst_25 : f32 to vector<18x1x8xf32>
    %c0_26 = arith.constant 0 : index
    %c17_27 = arith.constant 17 : index
    %c0_28 = arith.constant 0 : index
    %15 = vector.load %arg9[%c0_26, %c17_27, %c0_28] : memref<18x18x8xf32, #tpu.memory_space<vmem>>, vector<18x1x8xf32>
    tpu.vector_store %arg9[%c0_26, %c17_27, %c0_28], %14 {strides = array<i32>} : memref<18x18x8xf32, #tpu.memory_space<vmem>>, vector<18x1x8xf32>,
    %c0_29 = arith.constant 0 : index
    %c0_30 = arith.constant 0 : index
    %c0_31 = arith.constant 0 : index
    %c0_32 = arith.constant 0 : index
    %16 = vector.load %arg1[%c0_29, %c0_30, %c0_31, %c0_32] : memref<1x16x16x8xf32, #tpu.memory_space<vmem>>, vector<1x16x16x8xf32>
    %17 = vector.shape_cast %16 : vector<1x16x16x8xf32> to vector<16x16x8xf32>
    %c1 = arith.constant 1 : index
    %c1_33 = arith.constant 1 : index
    %c0_34 = arith.constant 0 : index
    %18 = vector.load %arg7[%c1, %c1_33, %c0_34] : memref<18x18x8xf32, #tpu.memory_space<vmem>>, vector<16x16x8xf32>
    tpu.vector_store %arg7[%c1, %c1_33, %c0_34], %17 {strides = array<i32>} : memref<18x18x8xf32, #tpu.memory_space<vmem>>, vector<16x16x8xf32>,
    %c0_35 = arith.constant 0 : index
    %c0_36 = arith.constant 0 : index
    %c0_37 = arith.constant 0 : index
    %19 = vector.load %arg7[%c0_35, %c0_36, %c0_37] : memref<18x18x8xf32, #tpu.memory_space<vmem>>, vector<16x16x8xf32>
    %20 = vector.shape_cast %19 : vector<16x16x8xf32> to vector<256x8xf32>
    %c0_38 = arith.constant 0 : index
    %c0_39 = arith.constant 0 : index
    %21 = vector.load %arg8[%c0_38, %c0_39] : memref<256x72xf32, #tpu.memory_space<vmem>>, vector<256x8xf32>
    tpu.vector_store %arg8[%c0_38, %c0_39], %20 {strides = array<i32>} : memref<256x72xf32, #tpu.memory_space<vmem>>, vector<256x8xf32>,
    %c0_40 = arith.constant 0 : index
    %c1_41 = arith.constant 1 : index
    %c0_42 = arith.constant 0 : index
    %22 = vector.load %arg7[%c0_40, %c1_41, %c0_42] : memref<18x18x8xf32, #tpu.memory_space<vmem>>, vector<16x16x8xf32>
    %23 = vector.shape_cast %22 : vector<16x16x8xf32> to vector<256x8xf32>
    %c0_43 = arith.constant 0 : index
    %c8 = arith.constant 8 : index
    %24 = vector.load %arg8[%c0_43, %c8] : memref<256x72xf32, #tpu.memory_space<vmem>>, vector<256x8xf32>
    tpu.vector_store %arg8[%c0_43, %c8], %23 {strides = array<i32>} : memref<256x72xf32, #tpu.memory_space<vmem>>, vector<256x8xf32>,
    %c0_44 = arith.constant 0 : index
    %c2 = arith.constant 2 : index
    %c0_45 = arith.constant 0 : index
    %25 = vector.load %arg7[%c0_44, %c2, %c0_45] : memref<18x18x8xf32, #tpu.memory_space<vmem>>, vector<16x16x8xf32>
    %26 = vector.shape_cast %25 : vector<16x16x8xf32> to vector<256x8xf32>
    %c0_46 = arith.constant 0 : index
    %c16 = arith.constant 16 : index
    %27 = vector.load %arg8[%c0_46, %c16] : memref<256x72xf32, #tpu.memory_space<vmem>>, vector<256x8xf32>
    tpu.vector_store %arg8[%c0_46, %c16], %26 {strides = array<i32>} : memref<256x72xf32, #tpu.memory_space<vmem>>, vector<256x8xf32>,
    %c1_47 = arith.constant 1 : index
    %c0_48 = arith.constant 0 : index
    %c0_49 = arith.constant 0 : index
    %28 = vector.load %arg7[%c1_47, %c0_48, %c0_49] : memref<18x18x8xf32, #tpu.memory_space<vmem>>, vector<16x16x8xf32>
    %29 = vector.shape_cast %28 : vector<16x16x8xf32> to vector<256x8xf32>
    %c0_50 = arith.constant 0 : index
    %c24 = arith.constant 24 : index
    %30 = vector.load %arg8[%c0_50, %c24] : memref<256x72xf32, #tpu.memory_space<vmem>>, vector<256x8xf32>
    tpu.vector_store %arg8[%c0_50, %c24], %29 {strides = array<i32>} : memref<256x72xf32, #tpu.memory_space<vmem>>, vector<256x8xf32>,
    %c1_51 = arith.constant 1 : index
    %c1_52 = arith.constant 1 : index
    %c0_53 = arith.constant 0 : index
    %31 = vector.load %arg7[%c1_51, %c1_52, %c0_53] : memref<18x18x8xf32, #tpu.memory_space<vmem>>, vector<16x16x8xf32>
    %32 = vector.shape_cast %31 : vector<16x16x8xf32> to vector<256x8xf32>
    %c0_54 = arith.constant 0 : index
    %c32 = arith.constant 32 : index
    %33 = vector.load %arg8[%c0_54, %c32] : memref<256x72xf32, #tpu.memory_space<vmem>>, vector<256x8xf32>
    tpu.vector_store %arg8[%c0_54, %c32], %32 {strides = array<i32>} : memref<256x72xf32, #tpu.memory_space<vmem>>, vector<256x8xf32>,
    %c1_55 = arith.constant 1 : index
    %c2_56 = arith.constant 2 : index
    %c0_57 = arith.constant 0 : index
    %34 = vector.load %arg7[%c1_55, %c2_56, %c0_57] : memref<18x18x8xf32, #tpu.memory_space<vmem>>, vector<16x16x8xf32>
    %35 = vector.shape_cast %34 : vector<16x16x8xf32> to vector<256x8xf32>
    %c0_58 = arith.constant 0 : index
    %c40 = arith.constant 40 : index
    %36 = vector.load %arg8[%c0_58, %c40] : memref<256x72xf32, #tpu.memory_space<vmem>>, vector<256x8xf32>
    tpu.vector_store %arg8[%c0_58, %c40], %35 {strides = array<i32>} : memref<256x72xf32, #tpu.memory_space<vmem>>, vector<256x8xf32>,
    %c2_59 = arith.constant 2 : index
    %c0_60 = arith.constant 0 : index
    %c0_61 = arith.constant 0 : index
    %37 = vector.load %arg7[%c2_59, %c0_60, %c0_61] : memref<18x18x8xf32, #tpu.memory_space<vmem>>, vector<16x16x8xf32>
    %38 = vector.shape_cast %37 : vector<16x16x8xf32> to vector<256x8xf32>
    %c0_62 = arith.constant 0 : index
    %c48 = arith.constant 48 : index
    %39 = vector.load %arg8[%c0_62, %c48] : memref<256x72xf32, #tpu.memory_space<vmem>>, vector<256x8xf32>
    tpu.vector_store %arg8[%c0_62, %c48], %38 {strides = array<i32>} : memref<256x72xf32, #tpu.memory_space<vmem>>, vector<256x8xf32>,
    %c2_63 = arith.constant 2 : index
    %c1_64 = arith.constant 1 : index
    %c0_65 = arith.constant 0 : index
    %40 = vector.load %arg7[%c2_63, %c1_64, %c0_65] : memref<18x18x8xf32, #tpu.memory_space<vmem>>, vector<16x16x8xf32>
    %41 = vector.shape_cast %40 : vector<16x16x8xf32> to vector<256x8xf32>
    %c0_66 = arith.constant 0 : index
    %c56 = arith.constant 56 : index
    %42 = vector.load %arg8[%c0_66, %c56] : memref<256x72xf32, #tpu.memory_space<vmem>>, vector<256x8xf32>
    tpu.vector_store %arg8[%c0_66, %c56], %41 {strides = array<i32>} : memref<256x72xf32, #tpu.memory_space<vmem>>, vector<256x8xf32>,
    %c2_67 = arith.constant 2 : index
    %c2_68 = arith.constant 2 : index
    %c0_69 = arith.constant 0 : index
    %43 = vector.load %arg7[%c2_67, %c2_68, %c0_69] : memref<18x18x8xf32, #tpu.memory_space<vmem>>, vector<16x16x8xf32>
    %44 = vector.shape_cast %43 : vector<16x16x8xf32> to vector<256x8xf32>
    %c0_70 = arith.constant 0 : index
    %c64 = arith.constant 64 : index
    %45 = vector.load %arg8[%c0_70, %c64] : memref<256x72xf32, #tpu.memory_space<vmem>>, vector<256x8xf32>
    tpu.vector_store %arg8[%c0_70, %c64], %44 {strides = array<i32>} : memref<256x72xf32, #tpu.memory_space<vmem>>, vector<256x8xf32>,
    %c0_71 = arith.constant 0 : index
    %c0_72 = arith.constant 0 : index
    %46 = vector.load %arg8[%c0_71, %c0_72] : memref<256x72xf32, #tpu.memory_space<vmem>>, vector<256x72xf32>
    %c0_73 = arith.constant 0 : index
    %c0_74 = arith.constant 0 : index
    %47 = vector.load %arg2[%c0_73, %c0_74] : memref<72x8xf32, #tpu.memory_space<vmem>>, vector<72x8xf32>
    %cst_75 = arith.constant dense<0.000000e+00> : vector<256x8xf32>
    %48 = tpu.matmul %46, %47, %cst_75 {dimension_numbers = #tpu.dot_dimension_numbers<[1], [0], [0], [1], [0, 0, 1, 1], [], []>} : vector<256x72xf32>, vector<72x8xf32>, vector<256x8xf32> -> vector<256x8xf32>
    %c0_76 = arith.constant 0 : index
    %c0_77 = arith.constant 0 : index
    %49 = vector.load %arg3[%c0_76, %c0_77] : memref<1x8xf32, #tpu.memory_space<vmem>>, vector<1x8xf32>
    %50 = vector.broadcast %49 : vector<1x8xf32> to vector<256x8xf32>
    %51 = arith.addf %48, %50 : vector<256x8xf32>
    %cst_78 = arith.constant 0.000000e+00 : f32
    %52 = vector.broadcast %cst_78 : f32 to vector<256x8xf32>
    %53 = arith.maximumf %51, %52 : vector<256x8xf32>
    %54 = vector.shape_cast %53 : vector<256x8xf32> to vector<16x16x8xf32>
    %c1_79 = arith.constant 1 : index
    %c1_80 = arith.constant 1 : index
    %c0_81 = arith.constant 0 : index
    %55 = vector.load %arg9[%c1_79, %c1_80, %c0_81] : memref<18x18x8xf32, #tpu.memory_space<vmem>>, vector<16x16x8xf32>
    tpu.vector_store %arg9[%c1_79, %c1_80, %c0_81], %54 {strides = array<i32>} : memref<18x18x8xf32, #tpu.memory_space<vmem>>, vector<16x16x8xf32>,
    %c0_82 = arith.constant 0 : index
    %c0_83 = arith.constant 0 : index
    %c0_84 = arith.constant 0 : index
    %56 = vector.load %arg9[%c0_82, %c0_83, %c0_84] : memref<18x18x8xf32, #tpu.memory_space<vmem>>, vector<16x16x8xf32>
    %57 = vector.shape_cast %56 : vector<16x16x8xf32> to vector<256x8xf32>
    %c0_85 = arith.constant 0 : index
    %c0_86 = arith.constant 0 : index
    %58 = vector.load %arg10[%c0_85, %c0_86] : memref<256x72xf32, #tpu.memory_space<vmem>>, vector<256x8xf32>
    tpu.vector_store %arg10[%c0_85, %c0_86], %57 {strides = array<i32>} : memref<256x72xf32, #tpu.memory_space<vmem>>, vector<256x8xf32>,
    %c0_87 = arith.constant 0 : index
    %c1_88 = arith.constant 1 : index
    %c0_89 = arith.constant 0 : index
    %59 = vector.load %arg9[%c0_87, %c1_88, %c0_89] : memref<18x18x8xf32, #tpu.memory_space<vmem>>, vector<16x16x8xf32>
    %60 = vector.shape_cast %59 : vector<16x16x8xf32> to vector<256x8xf32>
    %c0_90 = arith.constant 0 : index
    %c8_91 = arith.constant 8 : index
    %61 = vector.load %arg10[%c0_90, %c8_91] : memref<256x72xf32, #tpu.memory_space<vmem>>, vector<256x8xf32>
    tpu.vector_store %arg10[%c0_90, %c8_91], %60 {strides = array<i32>} : memref<256x72xf32, #tpu.memory_space<vmem>>, vector<256x8xf32>,
    %c0_92 = arith.constant 0 : index
    %c2_93 = arith.constant 2 : index
    %c0_94 = arith.constant 0 : index
    %62 = vector.load %arg9[%c0_92, %c2_93, %c0_94] : memref<18x18x8xf32, #tpu.memory_space<vmem>>, vector<16x16x8xf32>
    %63 = vector.shape_cast %62 : vector<16x16x8xf32> to vector<256x8xf32>
    %c0_95 = arith.constant 0 : index
    %c16_96 = arith.constant 16 : index
    %64 = vector.load %arg10[%c0_95, %c16_96] : memref<256x72xf32, #tpu.memory_space<vmem>>, vector<256x8xf32>
    tpu.vector_store %arg10[%c0_95, %c16_96], %63 {strides = array<i32>} : memref<256x72xf32, #tpu.memory_space<vmem>>, vector<256x8xf32>,
    %c1_97 = arith.constant 1 : index
    %c0_98 = arith.constant 0 : index
    %c0_99 = arith.constant 0 : index
    %65 = vector.load %arg9[%c1_97, %c0_98, %c0_99] : memref<18x18x8xf32, #tpu.memory_space<vmem>>, vector<16x16x8xf32>
    %66 = vector.shape_cast %65 : vector<16x16x8xf32> to vector<256x8xf32>
    %c0_100 = arith.constant 0 : index
    %c24_101 = arith.constant 24 : index
    %67 = vector.load %arg10[%c0_100, %c24_101] : memref<256x72xf32, #tpu.memory_space<vmem>>, vector<256x8xf32>
    tpu.vector_store %arg10[%c0_100, %c24_101], %66 {strides = array<i32>} : memref<256x72xf32, #tpu.memory_space<vmem>>, vector<256x8xf32>,
    %c1_102 = arith.constant 1 : index
    %c1_103 = arith.constant 1 : index
    %c0_104 = arith.constant 0 : index
    %68 = vector.load %arg9[%c1_102, %c1_103, %c0_104] : memref<18x18x8xf32, #tpu.memory_space<vmem>>, vector<16x16x8xf32>
    %69 = vector.shape_cast %68 : vector<16x16x8xf32> to vector<256x8xf32>
    %c0_105 = arith.constant 0 : index
    %c32_106 = arith.constant 32 : index
    %70 = vector.load %arg10[%c0_105, %c32_106] : memref<256x72xf32, #tpu.memory_space<vmem>>, vector<256x8xf32>
    tpu.vector_store %arg10[%c0_105, %c32_106], %69 {strides = array<i32>} : memref<256x72xf32, #tpu.memory_space<vmem>>, vector<256x8xf32>,
    %c1_107 = arith.constant 1 : index
    %c2_108 = arith.constant 2 : index
    %c0_109 = arith.constant 0 : index
    %71 = vector.load %arg9[%c1_107, %c2_108, %c0_109] : memref<18x18x8xf32, #tpu.memory_space<vmem>>, vector<16x16x8xf32>
    %72 = vector.shape_cast %71 : vector<16x16x8xf32> to vector<256x8xf32>
    %c0_110 = arith.constant 0 : index
    %c40_111 = arith.constant 40 : index
    %73 = vector.load %arg10[%c0_110, %c40_111] : memref<256x72xf32, #tpu.memory_space<vmem>>, vector<256x8xf32>
    tpu.vector_store %arg10[%c0_110, %c40_111], %72 {strides = array<i32>} : memref<256x72xf32, #tpu.memory_space<vmem>>, vector<256x8xf32>,
    %c2_112 = arith.constant 2 : index
    %c0_113 = arith.constant 0 : index
    %c0_114 = arith.constant 0 : index
    %74 = vector.load %arg9[%c2_112, %c0_113, %c0_114] : memref<18x18x8xf32, #tpu.memory_space<vmem>>, vector<16x16x8xf32>
    %75 = vector.shape_cast %74 : vector<16x16x8xf32> to vector<256x8xf32>
    %c0_115 = arith.constant 0 : index
    %c48_116 = arith.constant 48 : index
    %76 = vector.load %arg10[%c0_115, %c48_116] : memref<256x72xf32, #tpu.memory_space<vmem>>, vector<256x8xf32>
    tpu.vector_store %arg10[%c0_115, %c48_116], %75 {strides = array<i32>} : memref<256x72xf32, #tpu.memory_space<vmem>>, vector<256x8xf32>,
    %c2_117 = arith.constant 2 : index
    %c1_118 = arith.constant 1 : index
    %c0_119 = arith.constant 0 : index
    %77 = vector.load %arg9[%c2_117, %c1_118, %c0_119] : memref<18x18x8xf32, #tpu.memory_space<vmem>>, vector<16x16x8xf32>
    %78 = vector.shape_cast %77 : vector<16x16x8xf32> to vector<256x8xf32>
    %c0_120 = arith.constant 0 : index
    %c56_121 = arith.constant 56 : index
    %79 = vector.load %arg10[%c0_120, %c56_121] : memref<256x72xf32, #tpu.memory_space<vmem>>, vector<256x8xf32>
    tpu.vector_store %arg10[%c0_120, %c56_121], %78 {strides = array<i32>} : memref<256x72xf32, #tpu.memory_space<vmem>>, vector<256x8xf32>,
    %c2_122 = arith.constant 2 : index
    %c2_123 = arith.constant 2 : index
    %c0_124 = arith.constant 0 : index
    %80 = vector.load %arg9[%c2_122, %c2_123, %c0_124] : memref<18x18x8xf32, #tpu.memory_space<vmem>>, vector<16x16x8xf32>
    %81 = vector.shape_cast %80 : vector<16x16x8xf32> to vector<256x8xf32>
    %c0_125 = arith.constant 0 : index
    %c64_126 = arith.constant 64 : index
    %82 = vector.load %arg10[%c0_125, %c64_126] : memref<256x72xf32, #tpu.memory_space<vmem>>, vector<256x8xf32>
    tpu.vector_store %arg10[%c0_125, %c64_126], %81 {strides = array<i32>} : memref<256x72xf32, #tpu.memory_space<vmem>>, vector<256x8xf32>,
    %c0_127 = arith.constant 0 : index
    %c0_128 = arith.constant 0 : index
    %83 = vector.load %arg4[%c0_127, %c0_128] : memref<8x72xf32, #tpu.memory_space<vmem>>, vector<8x72xf32>
    %c0_129 = arith.constant 0 : index
    %c0_130 = arith.constant 0 : index
    %84 = vector.load %arg10[%c0_129, %c0_130] : memref<256x72xf32, #tpu.memory_space<vmem>>, vector<256x72xf32>
    %cst_131 = arith.constant dense<0.000000e+00> : vector<8x256xf32>
    %85 = tpu.matmul %83, %84, %cst_131 {dimension_numbers = #tpu.dot_dimension_numbers<[1], [1], [0], [0], [0, 0, 1, 0], [], []>} : vector<8x72xf32>, vector<256x72xf32>, vector<8x256xf32> -> vector<8x256xf32>
    %c0_132 = arith.constant 0 : index
    %c0_133 = arith.constant 0 : index
    %86 = vector.load %arg5[%c0_132, %c0_133] : memref<8x1xf32, #tpu.memory_space<vmem>>, vector<8x1xf32>
    %87 = vector.broadcast %86 : vector<8x1xf32> to vector<8x256xf32>
    %88 = arith.addf %85, %87 : vector<8x256xf32>
    %c0_134 = arith.constant 0 : index
    %c0_135 = arith.constant 0 : index
    %c0_136 = arith.constant 0 : index
    %c0_137 = arith.constant 0 : index
    %89 = vector.load %arg1[%c0_134, %c0_135, %c0_136, %c0_137] : memref<1x16x16x8xf32, #tpu.memory_space<vmem>>, vector<1x16x16x8xf32>
    %90 = vector.shape_cast %89 : vector<1x16x16x8xf32> to vector<16x16x8xf32>
    %91 = vector.shape_cast %90 : vector<16x16x8xf32> to vector<256x8xf32>
    %92 = tpu.transpose %91, [1, 0] : vector<256x8xf32> -> vector<8x256xf32>
    %93 = arith.addf %88, %92 : vector<8x256xf32>
    %cst_138 = arith.constant 0.000000e+00 : f32
    %94 = vector.broadcast %cst_138 : f32 to vector<8x256xf32>
    %95 = arith.maximumf %93, %94 : vector<8x256xf32>
    %c0_139 = arith.constant 0 : index
    %c0_140 = arith.constant 0 : index
    %c0_141 = arith.constant 0 : index
    %96 = vector.load %arg6[%c0_139, %c0_140, %c0_141] : memref<1x8x256xf32, #tpu.memory_space<vmem>>, vector<1x8x256xf32>
    %97 = vector.shape_cast %96 : vector<1x8x256xf32> to vector<8x256xf32>
    %98 = vector.shape_cast %95 : vector<8x256xf32> to vector<1x8x256xf32>
    tpu.vector_store %arg6[%c0_139, %c0_140, %c0_141], %98 {strides = array<i32>} : memref<1x8x256xf32, #tpu.memory_space<vmem>>, vector<1x8x256xf32>,
    return
  }
  func.func @transform_0(%arg0: i32) -> (i32, i32, i32, i32) {
    %c0_i32 = arith.constant 0 : i32
    %c0_i32_0 = arith.constant 0 : i32
    %c0_i32_1 = arith.constant 0 : i32
    %c0_i32_2 = arith.constant 0 : i32
    return %arg0, %c0_i32, %c0_i32_0, %c0_i32_1 : i32, i32, i32, i32
  }
  func.func @transform_1(%arg0: i32) -> (i32, i32) {
    %c0_i32 = arith.constant 0 : i32
    %c0_i32_0 = arith.constant 0 : i32
    %c0_i32_1 = arith.constant 0 : i32
    return %c0_i32, %c0_i32_0 : i32, i32
  }
  func.func @transform_2(%arg0: i32) -> (i32, i32) {
    %c0_i32 = arith.constant 0 : i32
    %c0_i32_0 = arith.constant 0 : i32
    %c0_i32_1 = arith.constant 0 : i32
    return %c0_i32, %c0_i32_0 : i32, i32
  }
  func.func @transform_3(%arg0: i32) -> (i32, i32) {
    %c0_i32 = arith.constant 0 : i32
    %c0_i32_0 = arith.constant 0 : i32
    %c0_i32_1 = arith.constant 0 : i32
    return %c0_i32, %c0_i32_0 : i32, i32
  }
  func.func @transform_4(%arg0: i32) -> (i32, i32) {
    %c0_i32 = arith.constant 0 : i32
    %c0_i32_0 = arith.constant 0 : i32
    %c0_i32_1 = arith.constant 0 : i32
    return %c0_i32, %c0_i32_0 : i32, i32
  }
  func.func @transform_5(%arg0: i32) -> (i32, i32, i32) {
    %c0_i32 = arith.constant 0 : i32
    %c0_i32_0 = arith.constant 0 : i32
    %c0_i32_1 = arith.constant 0 : i32
    return %arg0, %c0_i32, %c0_i32_0 : i32, i32, i32
  }
}

</mosaic_0001>

<llo_original>
// kernel: basic_block_forward.1
$region0: #{basic_block_forward.1}
  #allocation0 [shape = 'u32[]', space=smem, size = 0x4, offset = 0x4, fixed_abs, tag = 'smem constant byte address 0x4 - core index']
  #allocation1 [shape = 'u32[144,128]{1,0:T(1,128)}', space=vmem, size = 0x12000, scoped, tag = 'internal scratch']
  #allocation2 [shape = 'f32[18,18,8]{2,1,0:T(8,128)}', space=vmem, size = 0x36000, scoped, tag = 'scratch operand']
  #allocation3 [shape = 'f32[256,72]{1,0:T(8,128)}', space=vmem, size = 0x20000, scoped, tag = 'scratch operand']
  #allocation4 [shape = 'f32[18,18,8]{2,1,0:T(8,128)}', space=vmem, size = 0x36000, scoped, tag = 'scratch operand']
  #allocation5 [shape = 'f32[256,72]{1,0:T(8,128)}', space=vmem, size = 0x20000, scoped, tag = 'scratch operand']
  %s0 = inlined_call_operand.vmem [shape: f32[2,16,16,8], index: 0, kind: input, shape index: {}]
  %s1 = inlined_call_operand.vmem [shape: f32[72,8], index: 1, kind: input, shape index: {}]
  %s2 = inlined_call_operand.vmem [shape: f32[1,8], index: 2, kind: input, shape index: {}]
  %s3 = inlined_call_operand.vmem [shape: f32[8,72], index: 3, kind: input, shape index: {}]
  %s4 = inlined_call_operand.vmem [shape: f32[8,1], index: 4, kind: input, shape index: {}]
  %s5 = inlined_call_operand.vmem [shape: f32[2,8,256], index: 5, kind: output, shape index: {}]
  %s6 = sld [smem:[#allocation0]]
  $region53: #{basic_block_forward.1} parent=0
    _
  %s8 = ssub.s32 1, %s6
  %s9 = scalar_select 0, %s8, %s6
  loop: start=0, step=1, limit=4
  $region2: #{basic_block_forward.1} parent=0 // loop_pre_header
    _
  $region3: #{basic_block_forward.1} parent=0 // loop_header
    %s11 = sphi 0, %s15
    %p12 = scmp.ge.s32.totalorder %s11, 4
    %s21 = sphi 0, %s23
    %s24 = sphi 0, %s21
    %s25 = sphi 0, %s24
    %s41 = sphi 0, %s25
    %s45 = sphi 0, %s45
    %s47 = sphi 0, %s45
    %s48 = sphi 0, %s47
    %s62 = sphi 0, %s48
    %s66 = sphi 0, %s66
    %s68 = sphi 0, %s66
    %s69 = sphi 0, %s68
    %s83 = sphi 0, %s69
    %s87 = sphi 0, %s87
    %s89 = sphi 0, %s87
    %s90 = sphi 0, %s89
    %s104 = sphi 0, %s90
    %s108 = sphi 0, %s108
    %s110 = sphi 0, %s108
    %s111 = sphi 0, %s110
    %s125 = sphi 0, %s111
    %s131 = sphi 0, %s133
    %s134 = sphi 0, %s131
    %s135 = sphi 0, %s134
    %s151 = sphi 0, %s135
  $region4: #{basic_block_forward.1} parent=0 // loop_header_branch
    %14 = sbr.rel (%p12) target = $region8
  $region5: #{basic_block_forward.1} parent=0 // loop_body
    %s16 = ssub.s32 %s11, 1
    %s17 = ssub.s32 %s11, 2
    %s18 = sadd.s32 %s11, 1
    %s19 = ssub.s32 %s11, %s18
    %p20 = scmp.eq.s32.totalorder %s19, 0
    %s22 = sadd.s32 %s21, 1
    %s23 = scalar_select %p20, %s21, %s22
    %p26 = pneg %p20
    %p27 = scmp.eq.s32.totalorder %s11, 1
    %p28 = por %p26, %p27
    %p29 = scmp.ne.s32.totalorder %s21, %s24
    %p30 = scmp.eq.s32.totalorder %s11, 0
    %p31 = por %p29, %p30
    %p32 = scmp.ne.s32.totalorder %s21, %s24
    %p33 = scmp.eq.s32.totalorder %s16, 1
    %p34 = por %p32, %p33
    %p35 = scmp.ne.s32.totalorder %s24, %s25
    %p36 = scmp.eq.s32.totalorder %s16, 0
    %p37 = por %p35, %p36
    %p38 = scmp.ne.s32.totalorder %s24, %s25
    %p39 = scmp.eq.s32.totalorder %s17, 1
    %p40 = por %p38, %p39
    %p42 = scmp.ne.s32.totalorder %s25, %s41
    %p43 = scmp.eq.s32.totalorder %s17, 0
    %p44 = por %p42, %p43
    %s46 = sadd.s32 %s45, 1
    %p49 = scmp.eq.s32.totalorder %s11, 1
    %p50 = scmp.ne.s32.totalorder %s45, %s47
    %p51 = scmp.eq.s32.totalorder %s11, 0
    %p52 = por %p50, %p51
    %p53 = scmp.ne.s32.totalorder %s45, %s47
    %p54 = scmp.eq.s32.totalorder %s16, 1
    %p55 = por %p53, %p54
    %p56 = scmp.ne.s32.totalorder %s47, %s48
    %p57 = scmp.eq.s32.totalorder %s16, 0
    %p58 = por %p56, %p57
    %p59 = scmp.ne.s32.totalorder %s47, %s48
    %p60 = scmp.eq.s32.totalorder %s17, 1
    %p61 = por %p59, %p60
    %p63 = scmp.ne.s32.totalorder %s48, %s62
    %p64 = scmp.eq.s32.totalorder %s17, 0
    %p65 = por %p63, %p64
    %s67 = sadd.s32 %s66, 1
    %p70 = scmp.eq.s32.totalorder %s11, 1
    %p71 = scmp.ne.s32.totalorder %s66, %s68
    %p72 = scmp.eq.s32.totalorder %s11, 0
    %p73 = por %p71, %p72
    %p74 = scmp.ne.s32.totalorder %s66, %s68
    %p75 = scmp.eq.s32.totalorder %s16, 1
    %p76 = por %p74, %p75
    %p77 = scmp.ne.s32.totalorder %s68, %s69
    %p78 = scmp.eq.s32.totalorder %s16, 0
    %p79 = por %p77, %p78
    %p80 = scmp.ne.s32.totalorder %s68, %s69
    %p81 = scmp.eq.s32.totalorder %s17, 1
    %p82 = por %p80, %p81
    %p84 = scmp.ne.s32.totalorder %s69, %s83
    %p85 = scmp.eq.s32.totalorder %s17, 0
    %p86 = por %p84, %p85
    %s88 = sadd.s32 %s87, 1
    %p91 = scmp.eq.s32.totalorder %s11, 1
    %p92 = scmp.ne.s32.totalorder %s87, %s89
    %p93 = scmp.eq.s32.totalorder %s11, 0
    %p94 = por %p92, %p93
    %p95 = scmp.ne.s32.totalorder %s87, %s89
    %p96 = scmp.eq.s32.totalorder %s16, 1
    %p97 = por %p95, %p96
    %p98 = scmp.ne.s32.totalorder %s89, %s90
    %p99 = scmp.eq.s32.totalorder %s16, 0
    %p100 = por %p98, %p99
    %p101 = scmp.ne.s32.totalorder %s89, %s90
    %p102 = scmp.eq.s32.totalorder %s17, 1
    %p103 = por %p101, %p102
    %p105 = scmp.ne.s32.totalorder %s90, %s104
    %p106 = scmp.eq.s32.totalorder %s17, 0
    %p107 = por %p105, %p106
    %s109 = sadd.s32 %s108, 1
    %p112 = scmp.eq.s32.totalorder %s11, 1
    %p113 = scmp.ne.s32.totalorder %s108, %s110
    %p114 = scmp.eq.s32.totalorder %s11, 0
    %p115 = por %p113, %p114
    %p116 = scmp.ne.s32.totalorder %s108, %s110
    %p117 = scmp.eq.s32.totalorder %s16, 1
    %p118 = por %p116, %p117
    %p119 = scmp.ne.s32.totalorder %s110, %s111
    %p120 = scmp.eq.s32.totalorder %s16, 0
    %p121 = por %p119, %p120
    %p122 = scmp.ne.s32.totalorder %s110, %s111
    %p123 = scmp.eq.s32.totalorder %s17, 1
    %p124 = por %p122, %p123
    %p126 = scmp.ne.s32.totalorder %s111, %s125
    %p127 = scmp.eq.s32.totalorder %s17, 0
    %p128 = por %p126, %p127
    %s129 = ssub.s32 %s11, %s18
    %p130 = scmp.eq.s32.totalorder %s129, 0
    %s132 = sadd.s32 %s131, 1
    %s133 = scalar_select %p130, %s131, %s132
    %p136 = pneg %p130
    %p137 = scmp.eq.s32.totalorder %s11, 1
    %p138 = por %p136, %p137
    %p139 = scmp.ne.s32.totalorder %s131, %s134
    %p140 = scmp.eq.s32.totalorder %s11, 0
    %p141 = por %p139, %p140
    %p142 = scmp.ne.s32.totalorder %s131, %s134
    %p143 = scmp.eq.s32.totalorder %s16, 1
    %p144 = por %p142, %p143
    %p145 = scmp.ne.s32.totalorder %s134, %s135
    %p146 = scmp.eq.s32.totalorder %s16, 0
    %p147 = por %p145, %p146
    %p148 = scmp.ne.s32.totalorder %s134, %s135
    %p149 = scmp.eq.s32.totalorder %s17, 1
    %p150 = por %p148, %p149
    %p152 = scmp.ne.s32.totalorder %s135, %s151
    %p153 = scmp.eq.s32.totalorder %s17, 0
    %p154 = por %p152, %p153
    %p155 = scmp.le.s32.totalorder 1, %s11
    %p156 = scmp.lt.s32.totalorder %s11, 3
    %p157 = pnand %p155, %p156
    %p158 = pneg %p157
    // Predicated region
    $region9: #{basic_block_forward.1} parent=5 // pred_check
      _
    $region10: #{basic_block_forward.1} parent=5 // pred_check_branch
      %160 = sbr.rel (%p157) target = $region12
    $region11: #{basic_block_forward.1} parent=5 // pred_region
      %s161 = ssub.s32 %s11, 1
      // Predicated region
      $region13: #{basic_block_forward.1} parent=11 // pred_check
        %p162 = pneg %p58
      $region14: #{basic_block_forward.1} parent=11 // pred_check_branch
        %164 = sbr.rel (%p162) target = $region16
      $region15: #{basic_block_forward.1} parent=11 // pred_region
        _
      $region16: #{basic_block_forward.1} parent=11 // pred_fallthru
        _
      // Predicated region
      $region17: #{basic_block_forward.1} parent=11 // pred_check
        %p165 = pneg %p79
      $region18: #{basic_block_forward.1} parent=11 // pred_check_branch
        %167 = sbr.rel (%p165) target = $region20
      $region19: #{basic_block_forward.1} parent=11 // pred_region
        _
      $region20: #{basic_block_forward.1} parent=11 // pred_fallthru
        _
      // Predicated region
      $region21: #{basic_block_forward.1} parent=11 // pred_check
        %p168 = pneg %p100
      $region22: #{basic_block_forward.1} parent=11 // pred_check_branch
        %170 = sbr.rel (%p168) target = $region24
      $region23: #{basic_block_forward.1} parent=11 // pred_region
        _
      $region24: #{basic_block_forward.1} parent=11 // pred_fallthru
        _
      // Predicated region
      $region25: #{basic_block_forward.1} parent=11 // pred_check
        %p171 = pneg %p121
      $region26: #{basic_block_forward.1} parent=11 // pred_check_branch
        %173 = sbr.rel (%p171) target = $region28
      $region27: #{basic_block_forward.1} parent=11 // pred_region
        _
      $region28: #{basic_block_forward.1} parent=11 // pred_fallthru
        _
    $region12: #{basic_block_forward.1} parent=5 // pred_fallthru
      _
    %p174 = scmp.lt.s32.totalorder %s11, 2
    // Predicated region
    $region29: #{basic_block_forward.1} parent=5 // pred_check
      %p175 = pneg %p174
    $region30: #{basic_block_forward.1} parent=5 // pred_check_branch
      %177 = sbr.rel (%p175) target = $region32
    $region31: #{basic_block_forward.1} parent=5 // pred_region
      // Predicated region
      $region33: #{basic_block_forward.1} parent=31 // pred_check
        %p178 = pneg %p31
      $region34: #{basic_block_forward.1} parent=31 // pred_check_branch
        %180 = sbr.rel (%p178) target = $region36
      $region35: #{basic_block_forward.1} parent=31 // pred_region
        %p181 = scmp.lt.s32.totalorder %s11, 1
        %s182 = scalar_select %p181, %s11, 1
        %s183 = smul.addr %s182, 32
        %s184 = smul.addr %s183, 8
        %s185 = scalar_lea.vmem %s0, %s184
      $region36: #{basic_block_forward.1} parent=31 // pred_fallthru
        _
    $region32: #{basic_block_forward.1} parent=5 // pred_fallthru
      _
    %p186 = scmp.le.s32.totalorder 1, %s11
    %p187 = scmp.lt.s32.totalorder %s11, 3
    %p188 = pnand %p186, %p187
    %p189 = pneg %p188
    // Predicated region
    $region37: #{basic_block_forward.1} parent=5 // pred_check
      _
    $region38: #{basic_block_forward.1} parent=5 // pred_check_branch
      %191 = sbr.rel (%p188) target = $region40
    $region39: #{basic_block_forward.1} parent=5 // pred_region
      %s192 = ssub.s32 %s11, 1
      %p193 = scmp.lt.s32.totalorder %s16, 1
      %s194 = scalar_select %p193, %s16, 1
      %s195 = smul.addr %s194, 32
      %s196 = smul.addr %s195, 8
      %s197 = scalar_lea.vmem %s0, %s196
      %p198 = pneg %p37
      %p199 = pneg %p34
      %p200 = pneg %p58
      %p201 = pneg %p55
      %p202 = pneg %p79
      %p203 = pneg %p76
      %p204 = pneg %p100
      %p205 = pneg %p97
      %p206 = pneg %p121
      %p207 = pneg %p118
      %p208 = pneg %p147
      %p209 = pneg %p144
      %p210 = scmp.lt.s32.totalorder %s16, 1
      %s211 = scalar_select %p210, %s16, 1
      %s212 = smul.addr %s211, 2
      %s213 = smul.addr %s212, 8
      %s214 = scalar_lea.vmem %s5, %s213
      %p215 = scmp.lt.s32.totalorder %s16, 1
      %s216 = scalar_select %p215, %s16, 1
      %s217 = smul.addr %s216, 32
      %s218 = smul.addr %s217, 8
      %s219 = scalar_lea.vmem %s0, %s218
      %p220 = scmp.lt.s32.totalorder %s16, 1
      %s221 = scalar_select %p220, %s16, 1
      %s222 = smul.addr %s221, 2
      %s223 = smul.addr %s222, 8
      %s224 = scalar_lea.vmem %s5, %s223
      %vm225 = vcmask 64512
      %226 = vst.msk [vmem:[#allocation2] sm:$0xff] %vm225, 0.0
      %227 = vst.msk [vmem:[#allocation2 + $0x8] sm:$0xff] %vm225, 0.0
      %vm228 = vcmask 58368
      %229 = vst.msk [vmem:[#allocation2 + $0x10] sm:$0x3] %vm228, 0.0
      %vm230 = vcmask 57344
      %231 = vst.msk [vmem:[#allocation2] sm:$0x1] %vm230, 0.0
      %232 = vst.msk [vmem:[#allocation2 + $0x18] sm:$0x1] %vm230, 0.0
      %233 = vst.msk [vmem:[#allocation2 + $0x30] sm:$0x1] %vm230, 0.0
      %234 = vst.msk [vmem:[#allocation2 + $0x48] sm:$0x1] %vm230, 0.0
      %235 = vst.msk [vmem:[#allocation2 + $0x60] sm:$0x1] %vm230, 0.0
      %236 = vst.msk [vmem:[#allocation2 + $0x78] sm:$0x1] %vm230, 0.0
      %237 = vst.msk [vmem:[#allocation2 + $0x90] sm:$0x1] %vm230, 0.0
      %238 = vst.msk [vmem:[#allocation2 + $0xa8] sm:$0x1] %vm230, 0.0
      %239 = vst.msk [vmem:[#allocation2 + $0xc0] sm:$0x1] %vm230, 0.0
      %240 = vst.msk [vmem:[#allocation2 + $0xd8] sm:$0x1] %vm230, 0.0
      %241 = vst.msk [vmem:[#allocation2 + $0xf0] sm:$0x1] %vm230, 0.0
      %242 = vst.msk [vmem:[#allocation2 + $0x108] sm:$0x1] %vm230, 0.0
      %243 = vst.msk [vmem:[#allocation2 + $0x120] sm:$0x1] %vm230, 0.0
      %244 = vst.msk [vmem:[#allocation2 + $0x138] sm:$0x1] %vm230, 0.0
      %245 = vst.msk [vmem:[#allocation2 + $0x150] sm:$0x1] %vm230, 0.0
      %246 = vst.msk [vmem:[#allocation2 + $0x168] sm:$0x1] %vm230, 0.0
      %247 = vst.msk [vmem:[#allocation2 + $0x180] sm:$0x1] %vm230, 0.0
      %248 = vst.msk [vmem:[#allocation2 + $0x198] sm:$0x1] %vm230, 0.0
      %s249 = scalar_lea.vmem [#allocation2], 408
      %250 = vst.msk [vmem:[%s249] sm:$0xff] %vm225, 0.0
      %251 = vst.msk [vmem:[%s249 + $0x8] sm:$0xff] %vm225, 0.0
      %252 = vst.msk [vmem:[%s249 + $0x10] sm:$0x3] %vm228, 0.0
      %253 = vst.msk [vmem:[#allocation2 + $0x11] sm:$0x1] %vm230, 0.0
      %254 = vst.msk [vmem:[#allocation2 + $0x29] sm:$0x1] %vm230, 0.0
      %255 = vst.msk [vmem:[#allocation2 + $0x41] sm:$0x1] %vm230, 0.0
      %256 = vst.msk [vmem:[#allocation2 + $0x59] sm:$0x1] %vm230, 0.0
      %257 = vst.msk [vmem:[#allocation2 + $0x71] sm:$0x1] %vm230, 0.0
      %258 = vst.msk [vmem:[#allocation2 + $0x89] sm:$0x1] %vm230, 0.0
      %259 = vst.msk [vmem:[#allocation2 + $0xa1] sm:$0x1] %vm230, 0.0
      %260 = vst.msk [vmem:[#allocation2 + $0xb9] sm:$0x1] %vm230, 0.0
      %261 = vst.msk [vmem:[#allocation2 + $0xd1] sm:$0x1] %vm230, 0.0
      %262 = vst.msk [vmem:[#allocation2 + $0xe9] sm:$0x1] %vm230, 0.0
      %263 = vst.msk [vmem:[#allocation2 + $0x101] sm:$0x1] %vm230, 0.0
      %264 = vst.msk [vmem:[#allocation2 + $0x119] sm:$0x1] %vm230, 0.0
      %265 = vst.msk [vmem:[#allocation2 + $0x131] sm:$0x1] %vm230, 0.0
      %266 = vst.msk [vmem:[#allocation2 + $0x149] sm:$0x1] %vm230, 0.0
      %267 = vst.msk [vmem:[#allocation2 + $0x161] sm:$0x1] %vm230, 0.0
      %268 = vst.msk [vmem:[#allocation2 + $0x179] sm:$0x1] %vm230, 0.0
      %269 = vst.msk [vmem:[#allocation2 + $0x191] sm:$0x1] %vm230, 0.0
      %270 = vst.msk [vmem:[#allocation2 + $0x1a9] sm:$0x1] %vm230, 0.0
      %271 = vst.msk [vmem:[#allocation4] sm:$0xff] %vm225, 0.0
      %272 = vst.msk [vmem:[#allocation4 + $0x8] sm:$0xff] %vm225, 0.0
      %273 = vst.msk [vmem:[#allocation4 + $0x10] sm:$0x3] %vm228, 0.0
      %s274 = scalar_lea.vmem [#allocation4], 408
      %275 = vst.msk [vmem:[%s274] sm:$0xff] %vm225, 0.0
      %276 = vst.msk [vmem:[%s274 + $0x8] sm:$0xff] %vm225, 0.0
      %277 = vst.msk [vmem:[%s274 + $0x10] sm:$0x3] %vm228, 0.0
      %278 = vst.msk [vmem:[#allocation4] sm:$0x1] %vm230, 0.0
      %279 = vst.msk [vmem:[#allocation4 + $0x18] sm:$0x1] %vm230, 0.0
      %280 = vst.msk [vmem:[#allocation4 + $0x30] sm:$0x1] %vm230, 0.0
      %281 = vst.msk [vmem:[#allocation4 + $0x48] sm:$0x1] %vm230, 0.0
      %282 = vst.msk [vmem:[#allocation4 + $0x60] sm:$0x1] %vm230, 0.0
      %283 = vst.msk [vmem:[#allocation4 + $0x78] sm:$0x1] %vm230, 0.0
      %284 = vst.msk [vmem:[#allocation4 + $0x90] sm:$0x1] %vm230, 0.0
      %285 = vst.msk [vmem:[#allocation4 + $0xa8] sm:$0x1] %vm230, 0.0
      %286 = vst.msk [vmem:[#allocation4 + $0xc0] sm:$0x1] %vm230, 0.0
      %287 = vst.msk [vmem:[#allocation4 + $0xd8] sm:$0x1] %vm230, 0.0
      %288 = vst.msk [vmem:[#allocation4 + $0xf0] sm:$0x1] %vm230, 0.0
      %289 = vst.msk [vmem:[#allocation4 + $0x108] sm:$0x1] %vm230, 0.0
      %290 = vst.msk [vmem:[#allocation4 + $0x120] sm:$0x1] %vm230, 0.0
      %291 = vst.msk [vmem:[#allocation4 + $0x138] sm:$0x1] %vm230, 0.0
      %292 = vst.msk [vmem:[#allocation4 + $0x150] sm:$0x1] %vm230, 0.0
      %293 = vst.msk [vmem:[#allocation4 + $0x168] sm:$0x1] %vm230, 0.0
      %294 = vst.msk [vmem:[#allocation4 + $0x180] sm:$0x1] %vm230, 0.0
      %295 = vst.msk [vmem:[#allocation4 + $0x198] sm:$0x1] %vm230, 0.0
      %296 = vst.msk [vmem:[#allocation4 + $0x11] sm:$0x1] %vm230, 0.0
      %297 = vst.msk [vmem:[#allocation4 + $0x29] sm:$0x1] %vm230, 0.0
      %298 = vst.msk [vmem:[#allocation4 + $0x41] sm:$0x1] %vm230, 0.0
      %299 = vst.msk [vmem:[#allocation4 + $0x59] sm:$0x1] %vm230, 0.0
      %300 = vst.msk [vmem:[#allocation4 + $0x71] sm:$0x1] %vm230, 0.0
      %301 = vst.msk [vmem:[#allocation4 + $0x89] sm:$0x1] %vm230, 0.0
      %302 = vst.msk [vmem:[#allocation4 + $0xa1] sm:$0x1] %vm230, 0.0
      %303 = vst.msk [vmem:[#allocation4 + $0xb9] sm:$0x1] %vm230, 0.0
      %304 = vst.msk [vmem:[#allocation4 + $0xd1] sm:$0x1] %vm230, 0.0
      %305 = vst.msk [vmem:[#allocation4 + $0xe9] sm:$0x1] %vm230, 0.0
      %306 = vst.msk [vmem:[#allocation4 + $0x101] sm:$0x1] %vm230, 0.0
      %307 = vst.msk [vmem:[#allocation4 + $0x119] sm:$0x1] %vm230, 0.0
      %308 = vst.msk [vmem:[#allocation4 + $0x131] sm:$0x1] %vm230, 0.0
      %309 = vst.msk [vmem:[#allocation4 + $0x149] sm:$0x1] %vm230, 0.0
      %310 = vst.msk [vmem:[#allocation4 + $0x161] sm:$0x1] %vm230, 0.0
      %311 = vst.msk [vmem:[#allocation4 + $0x179] sm:$0x1] %vm230, 0.0
      %312 = vst.msk [vmem:[#allocation4 + $0x191] sm:$0x1] %vm230, 0.0
      %313 = vst.msk [vmem:[#allocation4 + $0x1a9] sm:$0x1] %vm230, 0.0
      %v314 = vld [vmem:[%s219] sm:$0xff]
      %v315 = vld [vmem:[%s219 + $0x8] sm:$0xff]
      %v316 = vld [vmem:[%s219 + $0x10] sm:$0xff]
      %v317 = vld [vmem:[%s219 + $0x18] sm:$0xff]
      %v318 = vld [vmem:[%s219 + $0x20] sm:$0xff]
      %v319 = vld [vmem:[%s219 + $0x28] sm:$0xff]
      %v320 = vld [vmem:[%s219 + $0x30] sm:$0xff]
      %v321 = vld [vmem:[%s219 + $0x38] sm:$0xff]
      %v322 = vld [vmem:[%s219 + $0x40] sm:$0xff]
      %v323 = vld [vmem:[%s219 + $0x48] sm:$0xff]
      %v324 = vld [vmem:[%s219 + $0x50] sm:$0xff]
      %v325 = vld [vmem:[%s219 + $0x58] sm:$0xff]
      %v326 = vld [vmem:[%s219 + $0x60] sm:$0xff]
      %v327 = vld [vmem:[%s219 + $0x68] sm:$0xff]
      %v328 = vld [vmem:[%s219 + $0x70] sm:$0xff]
      %v329 = vld [vmem:[%s219 + $0x78] sm:$0xff]
      %v330 = vld [vmem:[%s219 + $0x80] sm:$0xff]
      %v331 = vld [vmem:[%s219 + $0x88] sm:$0xff]
      %v332 = vld [vmem:[%s219 + $0x90] sm:$0xff]
      %v333 = vld [vmem:[%s219 + $0x98] sm:$0xff]
      %v334 = vld [vmem:[%s219 + $0xa0] sm:$0xff]
      %v335 = vld [vmem:[%s219 + $0xa8] sm:$0xff]
      %v336 = vld [vmem:[%s219 + $0xb0] sm:$0xff]
      %v337 = vld [vmem:[%s219 + $0xb8] sm:$0xff]
      %v338 = vld [vmem:[%s219 + $0xc0] sm:$0xff]
      %v339 = vld [vmem:[%s219 + $0xc8] sm:$0xff]
      %v340 = vld [vmem:[%s219 + $0xd0] sm:$0xff]
      %v341 = vld [vmem:[%s219 + $0xd8] sm:$0xff]
      %v342 = vld [vmem:[%s219 + $0xe0] sm:$0xff]
      %v343 = vld [vmem:[%s219 + $0xe8] sm:$0xff]
      %v344 = vld [vmem:[%s219 + $0xf0] sm:$0xff]
      %v345 = vld [vmem:[%s219 + $0xf8] sm:$0xff]
      %s346 = scalar_lea.vmem [#allocation2], 24
      %347 = vst.msk [vmem:[%s346 + $0x1] sm:$0xff] %vm225, %v314
      %348 = vst.msk [vmem:[%s346 + $0x9] sm:$0xff] %vm225, %v315
      %349 = vst.msk [vmem:[%s346 + $0x19] sm:$0xff] %vm225, %v316
      %350 = vst.msk [vmem:[%s346 + $0x21] sm:$0xff] %vm225, %v317
      %351 = vst.msk [vmem:[%s346 + $0x31] sm:$0xff] %vm225, %v318
      %352 = vst.msk [vmem:[%s346 + $0x39] sm:$0xff] %vm225, %v319
      %353 = vst.msk [vmem:[%s346 + $0x49] sm:$0xff] %vm225, %v320
      %354 = vst.msk [vmem:[%s346 + $0x51] sm:$0xff] %vm225, %v321
      %355 = vst.msk [vmem:[%s346 + $0x61] sm:$0xff] %vm225, %v322
      %356 = vst.msk [vmem:[%s346 + $0x69] sm:$0xff] %vm225, %v323
      %357 = vst.msk [vmem:[%s346 + $0x79] sm:$0xff] %vm225, %v324
      %358 = vst.msk [vmem:[%s346 + $0x81] sm:$0xff] %vm225, %v325
      %359 = vst.msk [vmem:[%s346 + $0x91] sm:$0xff] %vm225, %v326
      %360 = vst.msk [vmem:[%s346 + $0x99] sm:$0xff] %vm225, %v327
      %361 = vst.msk [vmem:[%s346 + $0xa9] sm:$0xff] %vm225, %v328
      %362 = vst.msk [vmem:[%s346 + $0xb1] sm:$0xff] %vm225, %v329
      %363 = vst.msk [vmem:[%s346 + $0xc1] sm:$0xff] %vm225, %v330
      %364 = vst.msk [vmem:[%s346 + $0xc9] sm:$0xff] %vm225, %v331
      %365 = vst.msk [vmem:[%s346 + $0xd9] sm:$0xff] %vm225, %v332
      %366 = vst.msk [vmem:[%s346 + $0xe1] sm:$0xff] %vm225, %v333
      %367 = vst.msk [vmem:[%s346 + $0xf1] sm:$0xff] %vm225, %v334
      %368 = vst.msk [vmem:[%s346 + $0xf9] sm:$0xff] %vm225, %v335
      %369 = vst.msk [vmem:[%s346 + $0x109] sm:$0xff] %vm225, %v336
      %370 = vst.msk [vmem:[%s346 + $0x111] sm:$0xff] %vm225, %v337
      %371 = vst.msk [vmem:[%s346 + $0x121] sm:$0xff] %vm225, %v338
      %372 = vst.msk [vmem:[%s346 + $0x129] sm:$0xff] %vm225, %v339
      %373 = vst.msk [vmem:[%s346 + $0x139] sm:$0xff] %vm225, %v340
      %374 = vst.msk [vmem:[%s346 + $0x141] sm:$0xff] %vm225, %v341
      %375 = vst.msk [vmem:[%s346 + $0x151] sm:$0xff] %vm225, %v342
      %376 = vst.msk [vmem:[%s346 + $0x159] sm:$0xff] %vm225, %v343
      %377 = vst.msk [vmem:[%s346 + $0x169] sm:$0xff] %vm225, %v344
      %378 = vst.msk [vmem:[%s346 + $0x171] sm:$0xff] %vm225, %v345
      %v379 = vld [vmem:[#allocation2] sm:$0xff]
      %v380 = vld [vmem:[#allocation2 + $0x8] sm:$0xff]
      %v381 = vld [vmem:[#allocation2 + $0x18] sm:$0xff]
      %v382 = vld [vmem:[#allocation2 + $0x20] sm:$0xff]
      %v383 = vld [vmem:[#allocation2 + $0x30] sm:$0xff]
      %v384 = vld [vmem:[#allocation2 + $0x38] sm:$0xff]
      %v385 = vld [vmem:[#allocation2 + $0x48] sm:$0xff]
      %v386 = vld [vmem:[#allocation2 + $0x50] sm:$0xff]
      %v387 = vld [vmem:[#allocation2 + $0x60] sm:$0xff]
      %v388 = vld [vmem:[#allocation2 + $0x68] sm:$0xff]
      %v389 = vld [vmem:[#allocation2 + $0x78] sm:$0xff]
      %v390 = vld [vmem:[#allocation2 + $0x80] sm:$0xff]
      %v391 = vld [vmem:[#allocation2 + $0x90] sm:$0xff]
      %v392 = vld [vmem:[#allocation2 + $0x98] sm:$0xff]
      %v393 = vld [vmem:[#allocation2 + $0xa8] sm:$0xff]
      %v394 = vld [vmem:[#allocation2 + $0xb0] sm:$0xff]
      %v395 = vld [vmem:[#allocation2 + $0xc0] sm:$0xff]
      %v396 = vld [vmem:[#allocation2 + $0xc8] sm:$0xff]
      %v397 = vld [vmem:[#allocation2 + $0xd8] sm:$0xff]
      %v398 = vld [vmem:[#allocation2 + $0xe0] sm:$0xff]
      %v399 = vld [vmem:[#allocation2 + $0xf0] sm:$0xff]
      %v400 = vld [vmem:[#allocation2 + $0xf8] sm:$0xff]
      %v401 = vld [vmem:[#allocation2 + $0x108] sm:$0xff]
      %v402 = vld [vmem:[#allocation2 + $0x110] sm:$0xff]
      %v403 = vld [vmem:[#allocation2 + $0x120] sm:$0xff]
      %v404 = vld [vmem:[#allocation2 + $0x128] sm:$0xff]
      %v405 = vld [vmem:[#allocation2 + $0x138] sm:$0xff]
      %v406 = vld [vmem:[#allocation2 + $0x140] sm:$0xff]
      %v407 = vld [vmem:[#allocation2 + $0x150] sm:$0xff]
      %v408 = vld [vmem:[#allocation2 + $0x158] sm:$0xff]
      %v409 = vld [vmem:[#allocation2 + $0x168] sm:$0xff]
      %v410 = vld [vmem:[#allocation2 + $0x170] sm:$0xff]
      %411 = vst.msk [vmem:[#allocation3] sm:$0xff] %vm225, %v379
      %412 = vst.msk [vmem:[#allocation3 + $0x8] sm:$0xff] %vm225, %v380
      %413 = vst.msk [vmem:[#allocation3 + $0x10] sm:$0xff] %vm225, %v381
      %414 = vst.msk [vmem:[#allocation3 + $0x18] sm:$0xff] %vm225, %v382
      %415 = vst.msk [vmem:[#allocation3 + $0x20] sm:$0xff] %vm225, %v383
      %416 = vst.msk [vmem:[#allocation3 + $0x28] sm:$0xff] %vm225, %v384
      %417 = vst.msk [vmem:[#allocation3 + $0x30] sm:$0xff] %vm225, %v385
      %418 = vst.msk [vmem:[#allocation3 + $0x38] sm:$0xff] %vm225, %v386
      %419 = vst.msk [vmem:[#allocation3 + $0x40] sm:$0xff] %vm225, %v387
      %420 = vst.msk [vmem:[#allocation3 + $0x48] sm:$0xff] %vm225, %v388
      %421 = vst.msk [vmem:[#allocation3 + $0x50] sm:$0xff] %vm225, %v389
      %422 = vst.msk [vmem:[#allocation3 + $0x58] sm:$0xff] %vm225, %v390
      %423 = vst.msk [vmem:[#allocation3 + $0x60] sm:$0xff] %vm225, %v391
      %424 = vst.msk [vmem:[#allocation3 + $0x68] sm:$0xff] %vm225, %v392
      %425 = vst.msk [vmem:[#allocation3 + $0x70] sm:$0xff] %vm225, %v393
      %426 = vst.msk [vmem:[#allocation3 + $0x78] sm:$0xff] %vm225, %v394
      %427 = vst.msk [vmem:[#allocation3 + $0x80] sm:$0xff] %vm225, %v395
      %428 = vst.msk [vmem:[#allocation3 + $0x88] sm:$0xff] %vm225, %v396
      %429 = vst.msk [vmem:[#allocation3 + $0x90] sm:$0xff] %vm225, %v397
      %430 = vst.msk [vmem:[#allocation3 + $0x98] sm:$0xff] %vm225, %v398
      %431 = vst.msk [vmem:[#allocation3 + $0xa0] sm:$0xff] %vm225, %v399
      %432 = vst.msk [vmem:[#allocation3 + $0xa8] sm:$0xff] %vm225, %v400
      %433 = vst.msk [vmem:[#allocation3 + $0xb0] sm:$0xff] %vm225, %v401
      %434 = vst.msk [vmem:[#allocation3 + $0xb8] sm:$0xff] %vm225, %v402
      %435 = vst.msk [vmem:[#allocation3 + $0xc0] sm:$0xff] %vm225, %v403
      %436 = vst.msk [vmem:[#allocation3 + $0xc8] sm:$0xff] %vm225, %v404
      %437 = vst.msk [vmem:[#allocation3 + $0xd0] sm:$0xff] %vm225, %v405
      %438 = vst.msk [vmem:[#allocation3 + $0xd8] sm:$0xff] %vm225, %v406
      %439 = vst.msk [vmem:[#allocation3 + $0xe0] sm:$0xff] %vm225, %v407
      %440 = vst.msk [vmem:[#allocation3 + $0xe8] sm:$0xff] %vm225, %v408
      %441 = vst.msk [vmem:[#allocation3 + $0xf0] sm:$0xff] %vm225, %v409
      %442 = vst.msk [vmem:[#allocation3 + $0xf8] sm:$0xff] %vm225, %v410
      %v443 = vld [vmem:[#allocation2 + $0x1] sm:$0xff]
      %v444 = vld [vmem:[#allocation2 + $0x9] sm:$0xff]
      %v445 = vld [vmem:[#allocation2 + $0x19] sm:$0xff]
      %v446 = vld [vmem:[#allocation2 + $0x21] sm:$0xff]
      %v447 = vld [vmem:[#allocation2 + $0x31] sm:$0xff]
      %v448 = vld [vmem:[#allocation2 + $0x39] sm:$0xff]
      %v449 = vld [vmem:[#allocation2 + $0x49] sm:$0xff]
      %v450 = vld [vmem:[#allocation2 + $0x51] sm:$0xff]
      %v451 = vld [vmem:[#allocation2 + $0x61] sm:$0xff]
      %v452 = vld [vmem:[#allocation2 + $0x69] sm:$0xff]
      %v453 = vld [vmem:[#allocation2 + $0x79] sm:$0xff]
      %v454 = vld [vmem:[#allocation2 + $0x81] sm:$0xff]
      %v455 = vld [vmem:[#allocation2 + $0x91] sm:$0xff]
      %v456 = vld [vmem:[#allocation2 + $0x99] sm:$0xff]
      %v457 = vld [vmem:[#allocation2 + $0xa9] sm:$0xff]
      %v458 = vld [vmem:[#allocation2 + $0xb1] sm:$0xff]
      %v459 = vld [vmem:[#allocation2 + $0xc1] sm:$0xff]
      %v460 = vld [vmem:[#allocation2 + $0xc9] sm:$0xff]
      %v461 = vld [vmem:[#allocation2 + $0xd9] sm:$0xff]
      %v462 = vld [vmem:[#allocation2 + $0xe1] sm:$0xff]
      %v463 = vld [vmem:[#allocation2 + $0xf1] sm:$0xff]
      %v464 = vld [vmem:[#allocation2 + $0xf9] sm:$0xff]
      %v465 = vld [vmem:[#allocation2 + $0x109] sm:$0xff]
      %v466 = vld [vmem:[#allocation2 + $0x111] sm:$0xff]
      %v467 = vld [vmem:[#allocation2 + $0x121] sm:$0xff]
      %v468 = vld [vmem:[#allocation2 + $0x129] sm:$0xff]
      %v469 = vld [vmem:[#allocation2 + $0x139] sm:$0xff]
      %v470 = vld [vmem:[#allocation2 + $0x141] sm:$0xff]
      %v471 = vld [vmem:[#allocation2 + $0x151] sm:$0xff]
      %v472 = vld [vmem:[#allocation2 + $0x159] sm:$0xff]
      %v473 = vld [vmem:[#allocation2 + $0x169] sm:$0xff]
      %v474 = vld [vmem:[#allocation2 + $0x171] sm:$0xff]
      %507 = vrot.lane.b32.xlu0 %v443, 8
      %v508 = vpop.permute.xlu0 %507
      %509 = vrot.lane.b32.xlu0 %v444, 8
      %v510 = vpop.permute.xlu0 %509
      %511 = vrot.lane.b32.xlu0 %v445, 8
      %v512 = vpop.permute.xlu0 %511
      %513 = vrot.lane.b32.xlu0 %v446, 8
      %v514 = vpop.permute.xlu0 %513
      %515 = vrot.lane.b32.xlu0 %v447, 8
      %v516 = vpop.permute.xlu0 %515
      %517 = vrot.lane.b32.xlu0 %v448, 8
      %v518 = vpop.permute.xlu0 %517
      %519 = vrot.lane.b32.xlu0 %v449, 8
      %v520 = vpop.permute.xlu0 %519
      %521 = vrot.lane.b32.xlu0 %v450, 8
      %v522 = vpop.permute.xlu0 %521
      %523 = vrot.lane.b32.xlu0 %v451, 8
      %v524 = vpop.permute.xlu0 %523
      %525 = vrot.lane.b32.xlu0 %v452, 8
      %v526 = vpop.permute.xlu0 %525
      %527 = vrot.lane.b32.xlu0 %v453, 8
      %v528 = vpop.permute.xlu0 %527
      %529 = vrot.lane.b32.xlu0 %v454, 8
      %v530 = vpop.permute.xlu0 %529
      %531 = vrot.lane.b32.xlu0 %v455, 8
      %v532 = vpop.permute.xlu0 %531
      %533 = vrot.lane.b32.xlu0 %v456, 8
      %v534 = vpop.permute.xlu0 %533
      %535 = vrot.lane.b32.xlu0 %v457, 8
      %v536 = vpop.permute.xlu0 %535
      %537 = vrot.lane.b32.xlu0 %v458, 8
      %v538 = vpop.permute.xlu0 %537
      %539 = vrot.lane.b32.xlu0 %v459, 8
      %v540 = vpop.permute.xlu0 %539
      %541 = vrot.lane.b32.xlu0 %v460, 8
      %v542 = vpop.permute.xlu0 %541
      %543 = vrot.lane.b32.xlu0 %v461, 8
      %v544 = vpop.permute.xlu0 %543
      %545 = vrot.lane.b32.xlu0 %v462, 8
      %v546 = vpop.permute.xlu0 %545
      %547 = vrot.lane.b32.xlu0 %v463, 8
      %v548 = vpop.permute.xlu0 %547
      %549 = vrot.lane.b32.xlu0 %v464, 8
      %v550 = vpop.permute.xlu0 %549
      %551 = vrot.lane.b32.xlu0 %v465, 8
      %v552 = vpop.permute.xlu0 %551
      %553 = vrot.lane.b32.xlu0 %v466, 8
      %v554 = vpop.permute.xlu0 %553
      %555 = vrot.lane.b32.xlu0 %v467, 8
      %v556 = vpop.permute.xlu0 %555
      %557 = vrot.lane.b32.xlu0 %v468, 8
      %v558 = vpop.permute.xlu0 %557
      %559 = vrot.lane.b32.xlu0 %v469, 8
      %v560 = vpop.permute.xlu0 %559
      %561 = vrot.lane.b32.xlu0 %v470, 8
      %v562 = vpop.permute.xlu0 %561
      %563 = vrot.lane.b32.xlu0 %v471, 8
      %v564 = vpop.permute.xlu0 %563
      %565 = vrot.lane.b32.xlu0 %v472, 8
      %v566 = vpop.permute.xlu0 %565
      %567 = vrot.lane.b32.xlu0 %v473, 8
      %v568 = vpop.permute.xlu0 %567
      %569 = vrot.lane.b32.xlu0 %v474, 8
      %v570 = vpop.permute.xlu0 %569
      %vm603 = vcmask 130112
      %604 = vst.msk [vmem:[#allocation3] sm:$0xff] %vm603, %v508
      %605 = vst.msk [vmem:[#allocation3 + $0x8] sm:$0xff] %vm603, %v510
      %606 = vst.msk [vmem:[#allocation3 + $0x10] sm:$0xff] %vm603, %v512
      %607 = vst.msk [vmem:[#allocation3 + $0x18] sm:$0xff] %vm603, %v514
      %608 = vst.msk [vmem:[#allocation3 + $0x20] sm:$0xff] %vm603, %v516
      %609 = vst.msk [vmem:[#allocation3 + $0x28] sm:$0xff] %vm603, %v518
      %610 = vst.msk [vmem:[#allocation3 + $0x30] sm:$0xff] %vm603, %v520
      %611 = vst.msk [vmem:[#allocation3 + $0x38] sm:$0xff] %vm603, %v522
      %612 = vst.msk [vmem:[#allocation3 + $0x40] sm:$0xff] %vm603, %v524
      %613 = vst.msk [vmem:[#allocation3 + $0x48] sm:$0xff] %vm603, %v526
      %614 = vst.msk [vmem:[#allocation3 + $0x50] sm:$0xff] %vm603, %v528
      %615 = vst.msk [vmem:[#allocation3 + $0x58] sm:$0xff] %vm603, %v530
      %616 = vst.msk [vmem:[#allocation3 + $0x60] sm:$0xff] %vm603, %v532
      %617 = vst.msk [vmem:[#allocation3 + $0x68] sm:$0xff] %vm603, %v534
      %618 = vst.msk [vmem:[#allocation3 + $0x70] sm:$0xff] %vm603, %v536
      %619 = vst.msk [vmem:[#allocation3 + $0x78] sm:$0xff] %vm603, %v538
      %620 = vst.msk [vmem:[#allocation3 + $0x80] sm:$0xff] %vm603, %v540
      %621 = vst.msk [vmem:[#allocation3 + $0x88] sm:$0xff] %vm603, %v542
      %622 = vst.msk [vmem:[#allocation3 + $0x90] sm:$0xff] %vm603, %v544
      %623 = vst.msk [vmem:[#allocation3 + $0x98] sm:$0xff] %vm603, %v546
      %624 = vst.msk [vmem:[#allocation3 + $0xa0] sm:$0xff] %vm603, %v548
      %625 = vst.msk [vmem:[#allocation3 + $0xa8] sm:$0xff] %vm603, %v550
      %626 = vst.msk [vmem:[#allocation3 + $0xb0] sm:$0xff] %vm603, %v552
      %627 = vst.msk [vmem:[#allocation3 + $0xb8] sm:$0xff] %vm603, %v554
      %628 = vst.msk [vmem:[#allocation3 + $0xc0] sm:$0xff] %vm603, %v556
      %629 = vst.msk [vmem:[#allocation3 + $0xc8] sm:$0xff] %vm603, %v558
      %630 = vst.msk [vmem:[#allocation3 + $0xd0] sm:$0xff] %vm603, %v560
      %631 = vst.msk [vmem:[#allocation3 + $0xd8] sm:$0xff] %vm603, %v562
      %632 = vst.msk [vmem:[#allocation3 + $0xe0] sm:$0xff] %vm603, %v564
      %633 = vst.msk [vmem:[#allocation3 + $0xe8] sm:$0xff] %vm603, %v566
      %634 = vst.msk [vmem:[#allocation3 + $0xf0] sm:$0xff] %vm603, %v568
      %635 = vst.msk [vmem:[#allocation3 + $0xf8] sm:$0xff] %vm603, %v570
      %v636 = vld [vmem:[#allocation2 + $0x2] sm:$0xff]
      %v637 = vld [vmem:[#allocation2 + $0xa] sm:$0xff]
      %v638 = vld [vmem:[#allocation2 + $0x1a] sm:$0xff]
      %v639 = vld [vmem:[#allocation2 + $0x22] sm:$0xff]
      %v640 = vld [vmem:[#allocation2 + $0x32] sm:$0xff]
      %v641 = vld [vmem:[#allocation2 + $0x3a] sm:$0xff]
      %v642 = vld [vmem:[#allocation2 + $0x4a] sm:$0xff]
      %v643 = vld [vmem:[#allocation2 + $0x52] sm:$0xff]
      %v644 = vld [vmem:[#allocation2 + $0x62] sm:$0xff]
      %v645 = vld [vmem:[#allocation2 + $0x6a] sm:$0xff]
      %v646 = vld [vmem:[#allocation2 + $0x7a] sm:$0xff]
      %v647 = vld [vmem:[#allocation2 + $0x82] sm:$0xff]
      %v648 = vld [vmem:[#allocation2 + $0x92] sm:$0xff]
      %v649 = vld [vmem:[#allocation2 + $0x9a] sm:$0xff]
      %v650 = vld [vmem:[#allocation2 + $0xaa] sm:$0xff]
      %v651 = vld [vmem:[#allocation2 + $0xb2] sm:$0xff]
      %v652 = vld [vmem:[#allocation2 + $0xc2] sm:$0xff]
      %v653 = vld [vmem:[#allocation2 + $0xca] sm:$0xff]
      %v654 = vld [vmem:[#allocation2 + $0xda] sm:$0xff]
      %v655 = vld [vmem:[#allocation2 + $0xe2] sm:$0xff]
      %v656 = vld [vmem:[#allocation2 + $0xf2] sm:$0xff]
      %v657 = vld [vmem:[#allocation2 + $0xfa] sm:$0xff]
      %v658 = vld [vmem:[#allocation2 + $0x10a] sm:$0xff]
      %v659 = vld [vmem:[#allocation2 + $0x112] sm:$0xff]
      %v660 = vld [vmem:[#allocation2 + $0x122] sm:$0xff]
      %v661 = vld [vmem:[#allocation2 + $0x12a] sm:$0xff]
      %v662 = vld [vmem:[#allocation2 + $0x13a] sm:$0xff]
      %v663 = vld [vmem:[#allocation2 + $0x142] sm:$0xff]
      %v664 = vld [vmem:[#allocation2 + $0x152] sm:$0xff]
      %v665 = vld [vmem:[#allocation2 + $0x15a] sm:$0xff]
      %v666 = vld [vmem:[#allocation2 + $0x16a] sm:$0xff]
      %v667 = vld [vmem:[#allocation2 + $0x172] sm:$0xff]
      %700 = vrot.lane.b32.xlu0 %v636, 16
      %v701 = vpop.permute.xlu0 %700
      %702 = vrot.lane.b32.xlu0 %v637, 16
      %v703 = vpop.permute.xlu0 %702
      %704 = vrot.lane.b32.xlu0 %v638, 16
      %v705 = vpop.permute.xlu0 %704
      %706 = vrot.lane.b32.xlu0 %v639, 16
      %v707 = vpop.permute.xlu0 %706
      %708 = vrot.lane.b32.xlu0 %v640, 16
      %v709 = vpop.permute.xlu0 %708
      %710 = vrot.lane.b32.xlu0 %v641, 16
      %v711 = vpop.permute.xlu0 %710
      %712 = vrot.lane.b32.xlu0 %v642, 16
      %v713 = vpop.permute.xlu0 %712
      %714 = vrot.lane.b32.xlu0 %v643, 16
      %v715 = vpop.permute.xlu0 %714
      %716 = vrot.lane.b32.xlu0 %v644, 16
      %v717 = vpop.permute.xlu0 %716
      %718 = vrot.lane.b32.xlu0 %v645, 16
      %v719 = vpop.permute.xlu0 %718
      %720 = vrot.lane.b32.xlu0 %v646, 16
      %v721 = vpop.permute.xlu0 %720
      %722 = vrot.lane.b32.xlu0 %v647, 16
      %v723 = vpop.permute.xlu0 %722
      %724 = vrot.lane.b32.xlu0 %v648, 16
      %v725 = vpop.permute.xlu0 %724
      %726 = vrot.lane.b32.xlu0 %v649, 16
      %v727 = vpop.permute.xlu0 %726
      %728 = vrot.lane.b32.xlu0 %v650, 16
      %v729 = vpop.permute.xlu0 %728
      %730 = vrot.lane.b32.xlu0 %v651, 16
      %v731 = vpop.permute.xlu0 %730
      %732 = vrot.lane.b32.xlu0 %v652, 16
      %v733 = vpop.permute.xlu0 %732
      %734 = vrot.lane.b32.xlu0 %v653, 16
      %v735 = vpop.permute.xlu0 %734
      %736 = vrot.lane.b32.xlu0 %v654, 16
      %v737 = vpop.permute.xlu0 %736
      %738 = vrot.lane.b32.xlu0 %v655, 16
      %v739 = vpop.permute.xlu0 %738
      %740 = vrot.lane.b32.xlu0 %v656, 16
      %v741 = vpop.permute.xlu0 %740
      %742 = vrot.lane.b32.xlu0 %v657, 16
      %v743 = vpop.permute.xlu0 %742
      %744 = vrot.lane.b32.xlu0 %v658, 16
      %v745 = vpop.permute.xlu0 %744
      %746 = vrot.lane.b32.xlu0 %v659, 16
      %v747 = vpop.permute.xlu0 %746
      %748 = vrot.lane.b32.xlu0 %v660, 16
      %v749 = vpop.permute.xlu0 %748
      %750 = vrot.lane.b32.xlu0 %v661, 16
      %v751 = vpop.permute.xlu0 %750
      %752 = vrot.lane.b32.xlu0 %v662, 16
      %v753 = vpop.permute.xlu0 %752
      %754 = vrot.lane.b32.xlu0 %v663, 16
      %v755 = vpop.permute.xlu0 %754
      %756 = vrot.lane.b32.xlu0 %v664, 16
      %v757 = vpop.permute.xlu0 %756
      %758 = vrot.lane.b32.xlu0 %v665, 16
      %v759 = vpop.permute.xlu0 %758
      %760 = vrot.lane.b32.xlu0 %v666, 16
      %v761 = vpop.permute.xlu0 %760
      %762 = vrot.lane.b32.xlu0 %v667, 16
      %v763 = vpop.permute.xlu0 %762
      %vm796 = vcmask 195712
      %797 = vst.msk [vmem:[#allocation3] sm:$0xff] %vm796, %v701
      %798 = vst.msk [vmem:[#allocation3 + $0x8] sm:$0xff] %vm796, %v703
      %799 = vst.msk [vmem:[#allocation3 + $0x10] sm:$0xff] %vm796, %v705
      %800 = vst.msk [vmem:[#allocation3 + $0x18] sm:$0xff] %vm796, %v707
      %801 = vst.msk [vmem:[#allocation3 + $0x20] sm:$0xff] %vm796, %v709
      %802 = vst.msk [vmem:[#allocation3 + $0x28] sm:$0xff] %vm796, %v711
      %803 = vst.msk [vmem:[#allocation3 + $0x30] sm:$0xff] %vm796, %v713
      %804 = vst.msk [vmem:[#allocation3 + $0x38] sm:$0xff] %vm796, %v715
      %805 = vst.msk [vmem:[#allocation3 + $0x40] sm:$0xff] %vm796, %v717
      %806 = vst.msk [vmem:[#allocation3 + $0x48] sm:$0xff] %vm796, %v719
      %807 = vst.msk [vmem:[#allocation3 + $0x50] sm:$0xff] %vm796, %v721
      %808 = vst.msk [vmem:[#allocation3 + $0x58] sm:$0xff] %vm796, %v723
      %809 = vst.msk [vmem:[#allocation3 + $0x60] sm:$0xff] %vm796, %v725
      %810 = vst.msk [vmem:[#allocation3 + $0x68] sm:$0xff] %vm796, %v727
      %811 = vst.msk [vmem:[#allocation3 + $0x70] sm:$0xff] %vm796, %v729
      %812 = vst.msk [vmem:[#allocation3 + $0x78] sm:$0xff] %vm796, %v731
      %813 = vst.msk [vmem:[#allocation3 + $0x80] sm:$0xff] %vm796, %v733
      %814 = vst.msk [vmem:[#allocation3 + $0x88] sm:$0xff] %vm796, %v735
      %815 = vst.msk [vmem:[#allocation3 + $0x90] sm:$0xff] %vm796, %v737
      %816 = vst.msk [vmem:[#allocation3 + $0x98] sm:$0xff] %vm796, %v739
      %817 = vst.msk [vmem:[#allocation3 + $0xa0] sm:$0xff] %vm796, %v741
      %818 = vst.msk [vmem:[#allocation3 + $0xa8] sm:$0xff] %vm796, %v743
      %819 = vst.msk [vmem:[#allocation3 + $0xb0] sm:$0xff] %vm796, %v745
      %820 = vst.msk [vmem:[#allocation3 + $0xb8] sm:$0xff] %vm796, %v747
      %821 = vst.msk [vmem:[#allocation3 + $0xc0] sm:$0xff] %vm796, %v749
      %822 = vst.msk [vmem:[#allocation3 + $0xc8] sm:$0xff] %vm796, %v751
      %823 = vst.msk [vmem:[#allocation3 + $0xd0] sm:$0xff] %vm796, %v753
      %824 = vst.msk [vmem:[#allocation3 + $0xd8] sm:$0xff] %vm796, %v755
      %825 = vst.msk [vmem:[#allocation3 + $0xe0] sm:$0xff] %vm796, %v757
      %826 = vst.msk [vmem:[#allocation3 + $0xe8] sm:$0xff] %vm796, %v759
      %827 = vst.msk [vmem:[#allocation3 + $0xf0] sm:$0xff] %vm796, %v761
      %828 = vst.msk [vmem:[#allocation3 + $0xf8] sm:$0xff] %vm796, %v763
      %v829 = vld [vmem:[%s346] sm:$0xff]
      %v830 = vld [vmem:[%s346 + $0x8] sm:$0xff]
      %v831 = vld [vmem:[%s346 + $0x18] sm:$0xff]
      %v832 = vld [vmem:[%s346 + $0x20] sm:$0xff]
      %v833 = vld [vmem:[%s346 + $0x30] sm:$0xff]
      %v834 = vld [vmem:[%s346 + $0x38] sm:$0xff]
      %v835 = vld [vmem:[%s346 + $0x48] sm:$0xff]
      %v836 = vld [vmem:[%s346 + $0x50] sm:$0xff]
      %v837 = vld [vmem:[%s346 + $0x60] sm:$0xff]
      %v838 = vld [vmem:[%s346 + $0x68] sm:$0xff]
      %v839 = vld [vmem:[%s346 + $0x78] sm:$0xff]
      %v840 = vld [vmem:[%s346 + $0x80] sm:$0xff]
      %v841 = vld [vmem:[%s346 + $0x90] sm:$0xff]
      %v842 = vld [vmem:[%s346 + $0x98] sm:$0xff]
      %v843 = vld [vmem:[%s346 + $0xa8] sm:$0xff]
      %v844 = vld [vmem:[%s346 + $0xb0] sm:$0xff]
      %v845 = vld [vmem:[%s346 + $0xc0] sm:$0xff]
      %v846 = vld [vmem:[%s346 + $0xc8] sm:$0xff]
      %v847 = vld [vmem:[%s346 + $0xd8] sm:$0xff]
      %v848 = vld [vmem:[%s346 + $0xe0] sm:$0xff]
      %v849 = vld [vmem:[%s346 + $0xf0] sm:$0xff]
      %v850 = vld [vmem:[%s346 + $0xf8] sm:$0xff]
      %v851 = vld [vmem:[%s346 + $0x108] sm:$0xff]
      %v852 = vld [vmem:[%s346 + $0x110] sm:$0xff]
      %v853 = vld [vmem:[%s346 + $0x120] sm:$0xff]
      %v854 = vld [vmem:[%s346 + $0x128] sm:$0xff]
      %v855 = vld [vmem:[%s346 + $0x138] sm:$0xff]
      %v856 = vld [vmem:[%s346 + $0x140] sm:$0xff]
      %v857 = vld [vmem:[%s346 + $0x150] sm:$0xff]
      %v858 = vld [vmem:[%s346 + $0x158] sm:$0xff]
      %v859 = vld [vmem:[%s346 + $0x168] sm:$0xff]
      %v860 = vld [vmem:[%s346 + $0x170] sm:$0xff]
      %893 = vrot.lane.b32.xlu0 %v829, 24
      %v894 = vpop.permute.xlu0 %893
      %895 = vrot.lane.b32.xlu0 %v830, 24
      %v896 = vpop.permute.xlu0 %895
      %897 = vrot.lane.b32.xlu0 %v831, 24
      %v898 = vpop.permute.xlu0 %897
      %899 = vrot.lane.b32.xlu0 %v832, 24
      %v900 = vpop.permute.xlu0 %899
      %901 = vrot.lane.b32.xlu0 %v833, 24
      %v902 = vpop.permute.xlu0 %901
      %903 = vrot.lane.b32.xlu0 %v834, 24
      %v904 = vpop.permute.xlu0 %903
      %905 = vrot.lane.b32.xlu0 %v835, 24
      %v906 = vpop.permute.xlu0 %905
      %907 = vrot.lane.b32.xlu0 %v836, 24
      %v908 = vpop.permute.xlu0 %907
      %909 = vrot.lane.b32.xlu0 %v837, 24
      %v910 = vpop.permute.xlu0 %909
      %911 = vrot.lane.b32.xlu0 %v838, 24
      %v912 = vpop.permute.xlu0 %911
      %913 = vrot.lane.b32.xlu0 %v839, 24
      %v914 = vpop.permute.xlu0 %913
      %915 = vrot.lane.b32.xlu0 %v840, 24
      %v916 = vpop.permute.xlu0 %915
      %917 = vrot.lane.b32.xlu0 %v841, 24
      %v918 = vpop.permute.xlu0 %917
      %919 = vrot.lane.b32.xlu0 %v842, 24
      %v920 = vpop.permute.xlu0 %919
      %921 = vrot.lane.b32.xlu0 %v843, 24
      %v922 = vpop.permute.xlu0 %921
      %923 = vrot.lane.b32.xlu0 %v844, 24
      %v924 = vpop.permute.xlu0 %923
      %925 = vrot.lane.b32.xlu0 %v845, 24
      %v926 = vpop.permute.xlu0 %925
      %927 = vrot.lane.b32.xlu0 %v846, 24
      %v928 = vpop.permute.xlu0 %927
      %929 = vrot.lane.b32.xlu0 %v847, 24
      %v930 = vpop.permute.xlu0 %929
      %931 = vrot.lane.b32.xlu0 %v848, 24
      %v932 = vpop.permute.xlu0 %931
      %933 = vrot.lane.b32.xlu0 %v849, 24
      %v934 = vpop.permute.xlu0 %933
      %935 = vrot.lane.b32.xlu0 %v850, 24
      %v936 = vpop.permute.xlu0 %935
      %937 = vrot.lane.b32.xlu0 %v851, 24
      %v938 = vpop.permute.xlu0 %937
      %939 = vrot.lane.b32.xlu0 %v852, 24
      %v940 = vpop.permute.xlu0 %939
      %941 = vrot.lane.b32.xlu0 %v853, 24
      %v942 = vpop.permute.xlu0 %941
      %943 = vrot.lane.b32.xlu0 %v854, 24
      %v944 = vpop.permute.xlu0 %943
      %945 = vrot.lane.b32.xlu0 %v855, 24
      %v946 = vpop.permute.xlu0 %945
      %947 = vrot.lane.b32.xlu0 %v856, 24
      %v948 = vpop.permute.xlu0 %947
      %949 = vrot.lane.b32.xlu0 %v857, 24
      %v950 = vpop.permute.xlu0 %949
      %951 = vrot.lane.b32.xlu0 %v858, 24
      %v952 = vpop.permute.xlu0 %951
      %953 = vrot.lane.b32.xlu0 %v859, 24
      %v954 = vpop.permute.xlu0 %953
      %955 = vrot.lane.b32.xlu0 %v860, 24
      %v956 = vpop.permute.xlu0 %955
      %vm989 = vcmask 261312
      %990 = vst.msk [vmem:[#allocation3] sm:$0xff] %vm989, %v894
      %991 = vst.msk [vmem:[#allocation3 + $0x8] sm:$0xff] %vm989, %v896
      %992 = vst.msk [vmem:[#allocation3 + $0x10] sm:$0xff] %vm989, %v898
      %993 = vst.msk [vmem:[#allocation3 + $0x18] sm:$0xff] %vm989, %v900
      %994 = vst.msk [vmem:[#allocation3 + $0x20] sm:$0xff] %vm989, %v902
      %995 = vst.msk [vmem:[#allocation3 + $0x28] sm:$0xff] %vm989, %v904
      %996 = vst.msk [vmem:[#allocation3 + $0x30] sm:$0xff] %vm989, %v906
      %997 = vst.msk [vmem:[#allocation3 + $0x38] sm:$0xff] %vm989, %v908
      %998 = vst.msk [vmem:[#allocation3 + $0x40] sm:$0xff] %vm989, %v910
      %999 = vst.msk [vmem:[#allocation3 + $0x48] sm:$0xff] %vm989, %v912
      %1000 = vst.msk [vmem:[#allocation3 + $0x50] sm:$0xff] %vm989, %v914
      %1001 = vst.msk [vmem:[#allocation3 + $0x58] sm:$0xff] %vm989, %v916
      %1002 = vst.msk [vmem:[#allocation3 + $0x60] sm:$0xff] %vm989, %v918
      %1003 = vst.msk [vmem:[#allocation3 + $0x68] sm:$0xff] %vm989, %v920
      %1004 = vst.msk [vmem:[#allocation3 + $0x70] sm:$0xff] %vm989, %v922
      %1005 = vst.msk [vmem:[#allocation3 + $0x78] sm:$0xff] %vm989, %v924
      %1006 = vst.msk [vmem:[#allocation3 + $0x80] sm:$0xff] %vm989, %v926
      %1007 = vst.msk [vmem:[#allocation3 + $0x88] sm:$0xff] %vm989, %v928
      %1008 = vst.msk [vmem:[#allocation3 + $0x90] sm:$0xff] %vm989, %v930
      %1009 = vst.msk [vmem:[#allocation3 + $0x98] sm:$0xff] %vm989, %v932
      %1010 = vst.msk [vmem:[#allocation3 + $0xa0] sm:$0xff] %vm989, %v934
      %1011 = vst.msk [vmem:[#allocation3 + $0xa8] sm:$0xff] %vm989, %v936
      %1012 = vst.msk [vmem:[#allocation3 + $0xb0] sm:$0xff] %vm989, %v938
      %1013 = vst.msk [vmem:[#allocation3 + $0xb8] sm:$0xff] %vm989, %v940
      %1014 = vst.msk [vmem:[#allocation3 + $0xc0] sm:$0xff] %vm989, %v942
      %1015 = vst.msk [vmem:[#allocation3 + $0xc8] sm:$0xff] %vm989, %v944
      %1016 = vst.msk [vmem:[#allocation3 + $0xd0] sm:$0xff] %vm989, %v946
      %1017 = vst.msk [vmem:[#allocation3 + $0xd8] sm:$0xff] %vm989, %v948
      %1018 = vst.msk [vmem:[#allocation3 + $0xe0] sm:$0xff] %vm989, %v950
      %1019 = vst.msk [vmem:[#allocation3 + $0xe8] sm:$0xff] %vm989, %v952
      %1020 = vst.msk [vmem:[#allocation3 + $0xf0] sm:$0xff] %vm989, %v954
      %1021 = vst.msk [vmem:[#allocation3 + $0xf8] sm:$0xff] %vm989, %v956
      %v1022 = vld [vmem:[%s346 + $0x1] sm:$0xff]
      %v1023 = vld [vmem:[%s346 + $0x9] sm:$0xff]
      %v1024 = vld [vmem:[%s346 + $0x19] sm:$0xff]
      %v1025 = vld [vmem:[%s346 + $0x21] sm:$0xff]
      %v1026 = vld [vmem:[%s346 + $0x31] sm:$0xff]
      %v1027 = vld [vmem:[%s346 + $0x39] sm:$0xff]
      %v1028 = vld [vmem:[%s346 + $0x49] sm:$0xff]
      %v1029 = vld [vmem:[%s346 + $0x51] sm:$0xff]
      %v1030 = vld [vmem:[%s346 + $0x61] sm:$0xff]
      %v1031 = vld [vmem:[%s346 + $0x69] sm:$0xff]
      %v1032 = vld [vmem:[%s346 + $0x79] sm:$0xff]
      %v1033 = vld [vmem:[%s346 + $0x81] sm:$0xff]
      %v1034 = vld [vmem:[%s346 + $0x91] sm:$0xff]
      %v1035 = vld [vmem:[%s346 + $0x99] sm:$0xff]
      %v1036 = vld [vmem:[%s346 + $0xa9] sm:$0xff]
      %v1037 = vld [vmem:[%s346 + $0xb1] sm:$0xff]
      %v1038 = vld [vmem:[%s346 + $0xc1] sm:$0xff]
      %v1039 = vld [vmem:[%s346 + $0xc9] sm:$0xff]
      %v1040 = vld [vmem:[%s346 + $0xd9] sm:$0xff]
      %v1041 = vld [vmem:[%s346 + $0xe1] sm:$0xff]
      %v1042 = vld [vmem:[%s346 + $0xf1] sm:$0xff]
      %v1043 = vld [vmem:[%s346 + $0xf9] sm:$0xff]
      %v1044 = vld [vmem:[%s346 + $0x109] sm:$0xff]
      %v1045 = vld [vmem:[%s346 + $0x111] sm:$0xff]
      %v1046 = vld [vmem:[%s346 + $0x121] sm:$0xff]
      %v1047 = vld [vmem:[%s346 + $0x129] sm:$0xff]
      %v1048 = vld [vmem:[%s346 + $0x139] sm:$0xff]
      %v1049 = vld [vmem:[%s346 + $0x141] sm:$0xff]
      %v1050 = vld [vmem:[%s346 + $0x151] sm:$0xff]
      %v1051 = vld [vmem:[%s346 + $0x159] sm:$0xff]
      %v1052 = vld [vmem:[%s346 + $0x169] sm:$0xff]
      %v1053 = vld [vmem:[%s346 + $0x171] sm:$0xff]
      %1086 = vrot.lane.b32.xlu0 %v1022, 32
      %v1087 = vpop.permute.xlu0 %1086
      %1088 = vrot.lane.b32.xlu0 %v1023, 32
      %v1089 = vpop.permute.xlu0 %1088
      %1090 = vrot.lane.b32.xlu0 %v1024, 32
      %v1091 = vpop.permute.xlu0 %1090
      %1092 = vrot.lane.b32.xlu0 %v1025, 32
      %v1093 = vpop.permute.xlu0 %1092
      %1094 = vrot.lane.b32.xlu0 %v1026, 32
      %v1095 = vpop.permute.xlu0 %1094
      %1096 = vrot.lane.b32.xlu0 %v1027, 32
      %v1097 = vpop.permute.xlu0 %1096
      %1098 = vrot.lane.b32.xlu0 %v1028, 32
      %v1099 = vpop.permute.xlu0 %1098
      %1100 = vrot.lane.b32.xlu0 %v1029, 32
      %v1101 = vpop.permute.xlu0 %1100
      %1102 = vrot.lane.b32.xlu0 %v1030, 32
      %v1103 = vpop.permute.xlu0 %1102
      %1104 = vrot.lane.b32.xlu0 %v1031, 32
      %v1105 = vpop.permute.xlu0 %1104
      %1106 = vrot.lane.b32.xlu0 %v1032, 32
      %v1107 = vpop.permute.xlu0 %1106
      %1108 = vrot.lane.b32.xlu0 %v1033, 32
      %v1109 = vpop.permute.xlu0 %1108
      %1110 = vrot.lane.b32.xlu0 %v1034, 32
      %v1111 = vpop.permute.xlu0 %1110
      %1112 = vrot.lane.b32.xlu0 %v1035, 32
      %v1113 = vpop.permute.xlu0 %1112
      %1114 = vrot.lane.b32.xlu0 %v1036, 32
      %v1115 = vpop.permute.xlu0 %1114
      %1116 = vrot.lane.b32.xlu0 %v1037, 32
      %v1117 = vpop.permute.xlu0 %1116
      %1118 = vrot.lane.b32.xlu0 %v1038, 32
      %v1119 = vpop.permute.xlu0 %1118
      %1120 = vrot.lane.b32.xlu0 %v1039, 32
      %v1121 = vpop.permute.xlu0 %1120
      %1122 = vrot.lane.b32.xlu0 %v1040, 32
      %v1123 = vpop.permute.xlu0 %1122
      %1124 = vrot.lane.b32.xlu0 %v1041, 32
      %v1125 = vpop.permute.xlu0 %1124
      %1126 = vrot.lane.b32.xlu0 %v1042, 32
      %v1127 = vpop.permute.xlu0 %1126
      %1128 = vrot.lane.b32.xlu0 %v1043, 32
      %v1129 = vpop.permute.xlu0 %1128
      %1130 = vrot.lane.b32.xlu0 %v1044, 32
      %v1131 = vpop.permute.xlu0 %1130
      %1132 = vrot.lane.b32.xlu0 %v1045, 32
      %v1133 = vpop.permute.xlu0 %1132
      %1134 = vrot.lane.b32.xlu0 %v1046, 32
      %v1135 = vpop.permute.xlu0 %1134
      %1136 = vrot.lane.b32.xlu0 %v1047, 32
      %v1137 = vpop.permute.xlu0 %1136
      %1138 = vrot.lane.b32.xlu0 %v1048, 32
      %v1139 = vpop.permute.xlu0 %1138
      %1140 = vrot.lane.b32.xlu0 %v1049, 32
      %v1141 = vpop.permute.xlu0 %1140
      %1142 = vrot.lane.b32.xlu0 %v1050, 32
      %v1143 = vpop.permute.xlu0 %1142
      %1144 = vrot.lane.b32.xlu0 %v1051, 32
      %v1145 = vpop.permute.xlu0 %1144
      %1146 = vrot.lane.b32.xlu0 %v1052, 32
      %v1147 = vpop.permute.xlu0 %1146
      %1148 = vrot.lane.b32.xlu0 %v1053, 32
      %v1149 = vpop.permute.xlu0 %1148
      %vm1182 = vcmask 326912
      %1183 = vst.msk [vmem:[#allocation3] sm:$0xff] %vm1182, %v1087
      %1184 = vst.msk [vmem:[#allocation3 + $0x8] sm:$0xff] %vm1182, %v1089
      %1185 = vst.msk [vmem:[#allocation3 + $0x10] sm:$0xff] %vm1182, %v1091
      %1186 = vst.msk [vmem:[#allocation3 + $0x18] sm:$0xff] %vm1182, %v1093
      %1187 = vst.msk [vmem:[#allocation3 + $0x20] sm:$0xff] %vm1182, %v1095
      %1188 = vst.msk [vmem:[#allocation3 + $0x28] sm:$0xff] %vm1182, %v1097
      %1189 = vst.msk [vmem:[#allocation3 + $0x30] sm:$0xff] %vm1182, %v1099
      %1190 = vst.msk [vmem:[#allocation3 + $0x38] sm:$0xff] %vm1182, %v1101
      %1191 = vst.msk [vmem:[#allocation3 + $0x40] sm:$0xff] %vm1182, %v1103
      %1192 = vst.msk [vmem:[#allocation3 + $0x48] sm:$0xff] %vm1182, %v1105
      %1193 = vst.msk [vmem:[#allocation3 + $0x50] sm:$0xff] %vm1182, %v1107
      %1194 = vst.msk [vmem:[#allocation3 + $0x58] sm:$0xff] %vm1182, %v1109
      %1195 = vst.msk [vmem:[#allocation3 + $0x60] sm:$0xff] %vm1182, %v1111
      %1196 = vst.msk [vmem:[#allocation3 + $0x68] sm:$0xff] %vm1182, %v1113
      %1197 = vst.msk [vmem:[#allocation3 + $0x70] sm:$0xff] %vm1182, %v1115
      %1198 = vst.msk [vmem:[#allocation3 + $0x78] sm:$0xff] %vm1182, %v1117
      %1199 = vst.msk [vmem:[#allocation3 + $0x80] sm:$0xff] %vm1182, %v1119
      %1200 = vst.msk [vmem:[#allocation3 + $0x88] sm:$0xff] %vm1182, %v1121
      %1201 = vst.msk [vmem:[#allocation3 + $0x90] sm:$0xff] %vm1182, %v1123
      %1202 = vst.msk [vmem:[#allocation3 + $0x98] sm:$0xff] %vm1182, %v1125
      %1203 = vst.msk [vmem:[#allocation3 + $0xa0] sm:$0xff] %vm1182, %v1127
      %1204 = vst.msk [vmem:[#allocation3 + $0xa8] sm:$0xff] %vm1182, %v1129
      %1205 = vst.msk [vmem:[#allocation3 + $0xb0] sm:$0xff] %vm1182, %v1131
      %1206 = vst.msk [vmem:[#allocation3 + $0xb8] sm:$0xff] %vm1182, %v1133
      %1207 = vst.msk [vmem:[#allocation3 + $0xc0] sm:$0xff] %vm1182, %v1135
      %1208 = vst.msk [vmem:[#allocation3 + $0xc8] sm:$0xff] %vm1182, %v1137
      %1209 = vst.msk [vmem:[#allocation3 + $0xd0] sm:$0xff] %vm1182, %v1139
      %1210 = vst.msk [vmem:[#allocation3 + $0xd8] sm:$0xff] %vm1182, %v1141
      %1211 = vst.msk [vmem:[#allocation3 + $0xe0] sm:$0xff] %vm1182, %v1143
      %1212 = vst.msk [vmem:[#allocation3 + $0xe8] sm:$0xff] %vm1182, %v1145
      %1213 = vst.msk [vmem:[#allocation3 + $0xf0] sm:$0xff] %vm1182, %v1147
      %1214 = vst.msk [vmem:[#allocation3 + $0xf8] sm:$0xff] %vm1182, %v1149
      %v1215 = vld [vmem:[%s346 + $0x2] sm:$0xff]
      %v1216 = vld [vmem:[%s346 + $0xa] sm:$0xff]
      %v1217 = vld [vmem:[%s346 + $0x1a] sm:$0xff]
      %v1218 = vld [vmem:[%s346 + $0x22] sm:$0xff]
      %v1219 = vld [vmem:[%s346 + $0x32] sm:$0xff]
      %v1220 = vld [vmem:[%s346 + $0x3a] sm:$0xff]
      %v1221 = vld [vmem:[%s346 + $0x4a] sm:$0xff]
      %v1222 = vld [vmem:[%s346 + $0x52] sm:$0xff]
      %v1223 = vld [vmem:[%s346 + $0x62] sm:$0xff]
      %v1224 = vld [vmem:[%s346 + $0x6a] sm:$0xff]
      %v1225 = vld [vmem:[%s346 + $0x7a] sm:$0xff]
      %v1226 = vld [vmem:[%s346 + $0x82] sm:$0xff]
      %v1227 = vld [vmem:[%s346 + $0x92] sm:$0xff]
      %v1228 = vld [vmem:[%s346 + $0x9a] sm:$0xff]
      %v1229 = vld [vmem:[%s346 + $0xaa] sm:$0xff]
      %v1230 = vld [vmem:[%s346 + $0xb2] sm:$0xff]
      %v1231 = vld [vmem:[%s346 + $0xc2] sm:$0xff]
      %v1232 = vld [vmem:[%s346 + $0xca] sm:$0xff]
      %v1233 = vld [vmem:[%s346 + $0xda] sm:$0xff]
      %v1234 = vld [vmem:[%s346 + $0xe2] sm:$0xff]
      %v1235 = vld [vmem:[%s346 + $0xf2] sm:$0xff]
      %v1236 = vld [vmem:[%s346 + $0xfa] sm:$0xff]
      %v1237 = vld [vmem:[%s346 + $0x10a] sm:$0xff]
      %v1238 = vld [vmem:[%s346 + $0x112] sm:$0xff]
      %v1239 = vld [vmem:[%s346 + $0x122] sm:$0xff]
      %v1240 = vld [vmem:[%s346 + $0x12a] sm:$0xff]
      %v1241 = vld [vmem:[%s346 + $0x13a] sm:$0xff]
      %v1242 = vld [vmem:[%s346 + $0x142] sm:$0xff]
      %v1243 = vld [vmem:[%s346 + $0x152] sm:$0xff]
      %v1244 = vld [vmem:[%s346 + $0x15a] sm:$0xff]
      %v1245 = vld [vmem:[%s346 + $0x16a] sm:$0xff]
      %v1246 = vld [vmem:[%s346 + $0x172] sm:$0xff]
      %1279 = vrot.lane.b32.xlu0 %v1215, 40
      %v1280 = vpop.permute.xlu0 %1279
      %1281 = vrot.lane.b32.xlu0 %v1216, 40
      %v1282 = vpop.permute.xlu0 %1281
      %1283 = vrot.lane.b32.xlu0 %v1217, 40
      %v1284 = vpop.permute.xlu0 %1283
      %1285 = vrot.lane.b32.xlu0 %v1218, 40
      %v1286 = vpop.permute.xlu0 %1285
      %1287 = vrot.lane.b32.xlu0 %v1219, 40
      %v1288 = vpop.permute.xlu0 %1287
      %1289 = vrot.lane.b32.xlu0 %v1220, 40
      %v1290 = vpop.permute.xlu0 %1289
      %1291 = vrot.lane.b32.xlu0 %v1221, 40
      %v1292 = vpop.permute.xlu0 %1291
      %1293 = vrot.lane.b32.xlu0 %v1222, 40
      %v1294 = vpop.permute.xlu0 %1293
      %1295 = vrot.lane.b32.xlu0 %v1223, 40
      %v1296 = vpop.permute.xlu0 %1295
      %1297 = vrot.lane.b32.xlu0 %v1224, 40
      %v1298 = vpop.permute.xlu0 %1297
      %1299 = vrot.lane.b32.xlu0 %v1225, 40
      %v1300 = vpop.permute.xlu0 %1299
      %1301 = vrot.lane.b32.xlu0 %v1226, 40
      %v1302 = vpop.permute.xlu0 %1301
      %1303 = vrot.lane.b32.xlu0 %v1227, 40
      %v1304 = vpop.permute.xlu0 %1303
      %1305 = vrot.lane.b32.xlu0 %v1228, 40
      %v1306 = vpop.permute.xlu0 %1305
      %1307 = vrot.lane.b32.xlu0 %v1229, 40
      %v1308 = vpop.permute.xlu0 %1307
      %1309 = vrot.lane.b32.xlu0 %v1230, 40
      %v1310 = vpop.permute.xlu0 %1309
      %1311 = vrot.lane.b32.xlu0 %v1231, 40
      %v1312 = vpop.permute.xlu0 %1311
      %1313 = vrot.lane.b32.xlu0 %v1232, 40
      %v1314 = vpop.permute.xlu0 %1313
      %1315 = vrot.lane.b32.xlu0 %v1233, 40
      %v1316 = vpop.permute.xlu0 %1315
      %1317 = vrot.lane.b32.xlu0 %v1234, 40
      %v1318 = vpop.permute.xlu0 %1317
      %1319 = vrot.lane.b32.xlu0 %v1235, 40
      %v1320 = vpop.permute.xlu0 %1319
      %1321 = vrot.lane.b32.xlu0 %v1236, 40
      %v1322 = vpop.permute.xlu0 %1321
      %1323 = vrot.lane.b32.xlu0 %v1237, 40
      %v1324 = vpop.permute.xlu0 %1323
      %1325 = vrot.lane.b32.xlu0 %v1238, 40
      %v1326 = vpop.permute.xlu0 %1325
      %1327 = vrot.lane.b32.xlu0 %v1239, 40
      %v1328 = vpop.permute.xlu0 %1327
      %1329 = vrot.lane.b32.xlu0 %v1240, 40
      %v1330 = vpop.permute.xlu0 %1329
      %1331 = vrot.lane.b32.xlu0 %v1241, 40
      %v1332 = vpop.permute.xlu0 %1331
      %1333 = vrot.lane.b32.xlu0 %v1242, 40
      %v1334 = vpop.permute.xlu0 %1333
      %1335 = vrot.lane.b32.xlu0 %v1243, 40
      %v1336 = vpop.permute.xlu0 %1335
      %1337 = vrot.lane.b32.xlu0 %v1244, 40
      %v1338 = vpop.permute.xlu0 %1337
      %1339 = vrot.lane.b32.xlu0 %v1245, 40
      %v1340 = vpop.permute.xlu0 %1339
      %1341 = vrot.lane.b32.xlu0 %v1246, 40
      %v1342 = vpop.permute.xlu0 %1341
      %vm1375 = vcmask 392512
      %1376 = vst.msk [vmem:[#allocation3] sm:$0xff] %vm1375, %v1280
      %1377 = vst.msk [vmem:[#allocation3 + $0x8] sm:$0xff] %vm1375, %v1282
      %1378 = vst.msk [vmem:[#allocation3 + $0x10] sm:$0xff] %vm1375, %v1284
      %1379 = vst.msk [vmem:[#allocation3 + $0x18] sm:$0xff] %vm1375, %v1286
      %1380 = vst.msk [vmem:[#allocation3 + $0x20] sm:$0xff] %vm1375, %v1288
      %1381 = vst.msk [vmem:[#allocation3 + $0x28] sm:$0xff] %vm1375, %v1290
      %1382 = vst.msk [vmem:[#allocation3 + $0x30] sm:$0xff] %vm1375, %v1292
      %1383 = vst.msk [vmem:[#allocation3 + $0x38] sm:$0xff] %vm1375, %v1294
      %1384 = vst.msk [vmem:[#allocation3 + $0x40] sm:$0xff] %vm1375, %v1296
      %1385 = vst.msk [vmem:[#allocation3 + $0x48] sm:$0xff] %vm1375, %v1298
      %1386 = vst.msk [vmem:[#allocation3 + $0x50] sm:$0xff] %vm1375, %v1300
      %1387 = vst.msk [vmem:[#allocation3 + $0x58] sm:$0xff] %vm1375, %v1302
      %1388 = vst.msk [vmem:[#allocation3 + $0x60] sm:$0xff] %vm1375, %v1304
      %1389 = vst.msk [vmem:[#allocation3 + $0x68] sm:$0xff] %vm1375, %v1306
      %1390 = vst.msk [vmem:[#allocation3 + $0x70] sm:$0xff] %vm1375, %v1308
      %1391 = vst.msk [vmem:[#allocation3 + $0x78] sm:$0xff] %vm1375, %v1310
      %1392 = vst.msk [vmem:[#allocation3 + $0x80] sm:$0xff] %vm1375, %v1312
      %1393 = vst.msk [vmem:[#allocation3 + $0x88] sm:$0xff] %vm1375, %v1314
      %1394 = vst.msk [vmem:[#allocation3 + $0x90] sm:$0xff] %vm1375, %v1316
      %1395 = vst.msk [vmem:[#allocation3 + $0x98] sm:$0xff] %vm1375, %v1318
      %1396 = vst.msk [vmem:[#allocation3 + $0xa0] sm:$0xff] %vm1375, %v1320
      %1397 = vst.msk [vmem:[#allocation3 + $0xa8] sm:$0xff] %vm1375, %v1322
      %1398 = vst.msk [vmem:[#allocation3 + $0xb0] sm:$0xff] %vm1375, %v1324
      %1399 = vst.msk [vmem:[#allocation3 + $0xb8] sm:$0xff] %vm1375, %v1326
      %1400 = vst.msk [vmem:[#allocation3 + $0xc0] sm:$0xff] %vm1375, %v1328
      %1401 = vst.msk [vmem:[#allocation3 + $0xc8] sm:$0xff] %vm1375, %v1330
      %1402 = vst.msk [vmem:[#allocation3 + $0xd0] sm:$0xff] %vm1375, %v1332
      %1403 = vst.msk [vmem:[#allocation3 + $0xd8] sm:$0xff] %vm1375, %v1334
      %1404 = vst.msk [vmem:[#allocation3 + $0xe0] sm:$0xff] %vm1375, %v1336
      %1405 = vst.msk [vmem:[#allocation3 + $0xe8] sm:$0xff] %vm1375, %v1338
      %1406 = vst.msk [vmem:[#allocation3 + $0xf0] sm:$0xff] %vm1375, %v1340
      %1407 = vst.msk [vmem:[#allocation3 + $0xf8] sm:$0xff] %vm1375, %v1342
      %s1408 = scalar_lea.vmem [#allocation2], 48
      %v1409 = vld [vmem:[%s1408] sm:$0xff]
      %v1410 = vld [vmem:[%s1408 + $0x8] sm:$0xff]
      %v1411 = vld [vmem:[%s1408 + $0x18] sm:$0xff]
      %v1412 = vld [vmem:[%s1408 + $0x20] sm:$0xff]
      %v1413 = vld [vmem:[%s1408 + $0x30] sm:$0xff]
      %v1414 = vld [vmem:[%s1408 + $0x38] sm:$0xff]
      %v1415 = vld [vmem:[%s1408 + $0x48] sm:$0xff]
      %v1416 = vld [vmem:[%s1408 + $0x50] sm:$0xff]
      %v1417 = vld [vmem:[%s1408 + $0x60] sm:$0xff]
      %v1418 = vld [vmem:[%s1408 + $0x68] sm:$0xff]
      %v1419 = vld [vmem:[%s1408 + $0x78] sm:$0xff]
      %v1420 = vld [vmem:[%s1408 + $0x80] sm:$0xff]
      %v1421 = vld [vmem:[%s1408 + $0x90] sm:$0xff]
      %v1422 = vld [vmem:[%s1408 + $0x98] sm:$0xff]
      %v1423 = vld [vmem:[%s1408 + $0xa8] sm:$0xff]
      %v1424 = vld [vmem:[%s1408 + $0xb0] sm:$0xff]
      %v1425 = vld [vmem:[%s1408 + $0xc0] sm:$0xff]
      %v1426 = vld [vmem:[%s1408 + $0xc8] sm:$0xff]
      %v1427 = vld [vmem:[%s1408 + $0xd8] sm:$0xff]
      %v1428 = vld [vmem:[%s1408 + $0xe0] sm:$0xff]
      %v1429 = vld [vmem:[%s1408 + $0xf0] sm:$0xff]
      %v1430 = vld [vmem:[%s1408 + $0xf8] sm:$0xff]
      %v1431 = vld [vmem:[%s1408 + $0x108] sm:$0xff]
      %v1432 = vld [vmem:[%s1408 + $0x110] sm:$0xff]
      %v1433 = vld [vmem:[%s1408 + $0x120] sm:$0xff]
      %v1434 = vld [vmem:[%s1408 + $0x128] sm:$0xff]
      %v1435 = vld [vmem:[%s1408 + $0x138] sm:$0xff]
      %v1436 = vld [vmem:[%s1408 + $0x140] sm:$0xff]
      %v1437 = vld [vmem:[%s1408 + $0x150] sm:$0xff]
      %v1438 = vld [vmem:[%s1408 + $0x158] sm:$0xff]
      %v1439 = vld [vmem:[%s1408 + $0x168] sm:$0xff]
      %v1440 = vld [vmem:[%s1408 + $0x170] sm:$0xff]
      %1473 = vrot.lane.b32.xlu0 %v1409, 48
      %v1474 = vpop.permute.xlu0 %1473
      %1475 = vrot.lane.b32.xlu0 %v1410, 48
      %v1476 = vpop.permute.xlu0 %1475
      %1477 = vrot.lane.b32.xlu0 %v1411, 48
      %v1478 = vpop.permute.xlu0 %1477
      %1479 = vrot.lane.b32.xlu0 %v1412, 48
      %v1480 = vpop.permute.xlu0 %1479
      %1481 = vrot.lane.b32.xlu0 %v1413, 48
      %v1482 = vpop.permute.xlu0 %1481
      %1483 = vrot.lane.b32.xlu0 %v1414, 48
      %v1484 = vpop.permute.xlu0 %1483
      %1485 = vrot.lane.b32.xlu0 %v1415, 48
      %v1486 = vpop.permute.xlu0 %1485
      %1487 = vrot.lane.b32.xlu0 %v1416, 48
      %v1488 = vpop.permute.xlu0 %1487
      %1489 = vrot.lane.b32.xlu0 %v1417, 48
      %v1490 = vpop.permute.xlu0 %1489
      %1491 = vrot.lane.b32.xlu0 %v1418, 48
      %v1492 = vpop.permute.xlu0 %1491
      %1493 = vrot.lane.b32.xlu0 %v1419, 48
      %v1494 = vpop.permute.xlu0 %1493
      %1495 = vrot.lane.b32.xlu0 %v1420, 48
      %v1496 = vpop.permute.xlu0 %1495
      %1497 = vrot.lane.b32.xlu0 %v1421, 48
      %v1498 = vpop.permute.xlu0 %1497
      %1499 = vrot.lane.b32.xlu0 %v1422, 48
      %v1500 = vpop.permute.xlu0 %1499
      %1501 = vrot.lane.b32.xlu0 %v1423, 48
      %v1502 = vpop.permute.xlu0 %1501
      %1503 = vrot.lane.b32.xlu0 %v1424, 48
      %v1504 = vpop.permute.xlu0 %1503
      %1505 = vrot.lane.b32.xlu0 %v1425, 48
      %v1506 = vpop.permute.xlu0 %1505
      %1507 = vrot.lane.b32.xlu0 %v1426, 48
      %v1508 = vpop.permute.xlu0 %1507
      %1509 = vrot.lane.b32.xlu0 %v1427, 48
      %v1510 = vpop.permute.xlu0 %1509
      %1511 = vrot.lane.b32.xlu0 %v1428, 48
      %v1512 = vpop.permute.xlu0 %1511
      %1513 = vrot.lane.b32.xlu0 %v1429, 48
      %v1514 = vpop.permute.xlu0 %1513
      %1515 = vrot.lane.b32.xlu0 %v1430, 48
      %v1516 = vpop.permute.xlu0 %1515
      %1517 = vrot.lane.b32.xlu0 %v1431, 48
      %v1518 = vpop.permute.xlu0 %1517
      %1519 = vrot.lane.b32.xlu0 %v1432, 48
      %v1520 = vpop.permute.xlu0 %1519
      %1521 = vrot.lane.b32.xlu0 %v1433, 48
      %v1522 = vpop.permute.xlu0 %1521
      %1523 = vrot.lane.b32.xlu0 %v1434, 48
      %v1524 = vpop.permute.xlu0 %1523
      %1525 = vrot.lane.b32.xlu0 %v1435, 48
      %v1526 = vpop.permute.xlu0 %1525
      %1527 = vrot.lane.b32.xlu0 %v1436, 48
      %v1528 = vpop.permute.xlu0 %1527
      %1529 = vrot.lane.b32.xlu0 %v1437, 48
      %v1530 = vpop.permute.xlu0 %1529
      %1531 = vrot.lane.b32.xlu0 %v1438, 48
      %v1532 = vpop.permute.xlu0 %1531
      %1533 = vrot.lane.b32.xlu0 %v1439, 48
      %v1534 = vpop.permute.xlu0 %1533
      %1535 = vrot.lane.b32.xlu0 %v1440, 48
      %v1536 = vpop.permute.xlu0 %1535
      %vm1569 = vcmask 458112
      %1570 = vst.msk [vmem:[#allocation3] sm:$0xff] %vm1569, %v1474
      %1571 = vst.msk [vmem:[#allocation3 + $0x8] sm:$0xff] %vm1569, %v1476
      %1572 = vst.msk [vmem:[#allocation3 + $0x10] sm:$0xff] %vm1569, %v1478
      %1573 = vst.msk [vmem:[#allocation3 + $0x18] sm:$0xff] %vm1569, %v1480
      %1574 = vst.msk [vmem:[#allocation3 + $0x20] sm:$0xff] %vm1569, %v1482
      %1575 = vst.msk [vmem:[#allocation3 + $0x28] sm:$0xff] %vm1569, %v1484
      %1576 = vst.msk [vmem:[#allocation3 + $0x30] sm:$0xff] %vm1569, %v1486
      %1577 = vst.msk [vmem:[#allocation3 + $0x38] sm:$0xff] %vm1569, %v1488
      %1578 = vst.msk [vmem:[#allocation3 + $0x40] sm:$0xff] %vm1569, %v1490
      %1579 = vst.msk [vmem:[#allocation3 + $0x48] sm:$0xff] %vm1569, %v1492
      %1580 = vst.msk [vmem:[#allocation3 + $0x50] sm:$0xff] %vm1569, %v1494
      %1581 = vst.msk [vmem:[#allocation3 + $0x58] sm:$0xff] %vm1569, %v1496
      %1582 = vst.msk [vmem:[#allocation3 + $0x60] sm:$0xff] %vm1569, %v1498
      %1583 = vst.msk [vmem:[#allocation3 + $0x68] sm:$0xff] %vm1569, %v1500
      %1584 = vst.msk [vmem:[#allocation3 + $0x70] sm:$0xff] %vm1569, %v1502
      %1585 = vst.msk [vmem:[#allocation3 + $0x78] sm:$0xff] %vm1569, %v1504
      %1586 = vst.msk [vmem:[#allocation3 + $0x80] sm:$0xff] %vm1569, %v1506
      %1587 = vst.msk [vmem:[#allocation3 + $0x88] sm:$0xff] %vm1569, %v1508
      %1588 = vst.msk [vmem:[#allocation3 + $0x90] sm:$0xff] %vm1569, %v1510
      %1589 = vst.msk [vmem:[#allocation3 + $0x98] sm:$0xff] %vm1569, %v1512
      %1590 = vst.msk [vmem:[#allocation3 + $0xa0] sm:$0xff] %vm1569, %v1514
      %1591 = vst.msk [vmem:[#allocation3 + $0xa8] sm:$0xff] %vm1569, %v1516
      %1592 = vst.msk [vmem:[#allocation3 + $0xb0] sm:$0xff] %vm1569, %v1518
      %1593 = vst.msk [vmem:[#allocation3 + $0xb8] sm:$0xff] %vm1569, %v1520
      %1594 = vst.msk [vmem:[#allocation3 + $0xc0] sm:$0xff] %vm1569, %v1522
      %1595 = vst.msk [vmem:[#allocation3 + $0xc8] sm:$0xff] %vm1569, %v1524
      %1596 = vst.msk [vmem:[#allocation3 + $0xd0] sm:$0xff] %vm1569, %v1526
      %1597 = vst.msk [vmem:[#allocation3 + $0xd8] sm:$0xff] %vm1569, %v1528
      %1598 = vst.msk [vmem:[#allocation3 + $0xe0] sm:$0xff] %vm1569, %v1530
      %1599 = vst.msk [vmem:[#allocation3 + $0xe8] sm:$0xff] %vm1569, %v1532
      %1600 = vst.msk [vmem:[#allocation3 + $0xf0] sm:$0xff] %vm1569, %v1534
      %1601 = vst.msk [vmem:[#allocation3 + $0xf8] sm:$0xff] %vm1569, %v1536
      %v1602 = vld [vmem:[%s1408 + $0x1] sm:$0xff]
      %v1603 = vld [vmem:[%s1408 + $0x9] sm:$0xff]
      %v1604 = vld [vmem:[%s1408 + $0x19] sm:$0xff]
      %v1605 = vld [vmem:[%s1408 + $0x21] sm:$0xff]
      %v1606 = vld [vmem:[%s1408 + $0x31] sm:$0xff]
      %v1607 = vld [vmem:[%s1408 + $0x39] sm:$0xff]
      %v1608 = vld [vmem:[%s1408 + $0x49] sm:$0xff]
      %v1609 = vld [vmem:[%s1408 + $0x51] sm:$0xff]
      %v1610 = vld [vmem:[%s1408 + $0x61] sm:$0xff]
      %v1611 = vld [vmem:[%s1408 + $0x69] sm:$0xff]
      %v1612 = vld [vmem:[%s1408 + $0x79] sm:$0xff]
      %v1613 = vld [vmem:[%s1408 + $0x81] sm:$0xff]
      %v1614 = vld [vmem:[%s1408 + $0x91] sm:$0xff]
      %v1615 = vld [vmem:[%s1408 + $0x99] sm:$0xff]
      %v1616 = vld [vmem:[%s1408 + $0xa9] sm:$0xff]
      %v1617 = vld [vmem:[%s1408 + $0xb1] sm:$0xff]
      %v1618 = vld [vmem:[%s1408 + $0xc1] sm:$0xff]
      %v1619 = vld [vmem:[%s1408 + $0xc9] sm:$0xff]
      %v1620 = vld [vmem:[%s1408 + $0xd9] sm:$0xff]
      %v1621 = vld [vmem:[%s1408 + $0xe1] sm:$0xff]
      %v1622 = vld [vmem:[%s1408 + $0xf1] sm:$0xff]
      %v1623 = vld [vmem:[%s1408 + $0xf9] sm:$0xff]
      %v1624 = vld [vmem:[%s1408 + $0x109] sm:$0xff]
      %v1625 = vld [vmem:[%s1408 + $0x111] sm:$0xff]
      %v1626 = vld [vmem:[%s1408 + $0x121] sm:$0xff]
      %v1627 = vld [vmem:[%s1408 + $0x129] sm:$0xff]
      %v1628 = vld [vmem:[%s1408 + $0x139] sm:$0xff]
      %v1629 = vld [vmem:[%s1408 + $0x141] sm:$0xff]
      %v1630 = vld [vmem:[%s1408 + $0x151] sm:$0xff]
      %v1631 = vld [vmem:[%s1408 + $0x159] sm:$0xff]
      %v1632 = vld [vmem:[%s1408 + $0x169] sm:$0xff]
      %v1633 = vld [vmem:[%s1408 + $0x171] sm:$0xff]
      %1666 = vrot.lane.b32.xlu0 %v1602, 56
      %v1667 = vpop.permute.xlu0 %1666
      %1668 = vrot.lane.b32.xlu0 %v1603, 56
      %v1669 = vpop.permute.xlu0 %1668
      %1670 = vrot.lane.b32.xlu0 %v1604, 56
      %v1671 = vpop.permute.xlu0 %1670
      %1672 = vrot.lane.b32.xlu0 %v1605, 56
      %v1673 = vpop.permute.xlu0 %1672
      %1674 = vrot.lane.b32.xlu0 %v1606, 56
      %v1675 = vpop.permute.xlu0 %1674
      %1676 = vrot.lane.b32.xlu0 %v1607, 56
      %v1677 = vpop.permute.xlu0 %1676
      %1678 = vrot.lane.b32.xlu0 %v1608, 56
      %v1679 = vpop.permute.xlu0 %1678
      %1680 = vrot.lane.b32.xlu0 %v1609, 56
      %v1681 = vpop.permute.xlu0 %1680
      %1682 = vrot.lane.b32.xlu0 %v1610, 56
      %v1683 = vpop.permute.xlu0 %1682
      %1684 = vrot.lane.b32.xlu0 %v1611, 56
      %v1685 = vpop.permute.xlu0 %1684
      %1686 = vrot.lane.b32.xlu0 %v1612, 56
      %v1687 = vpop.permute.xlu0 %1686
      %1688 = vrot.lane.b32.xlu0 %v1613, 56
      %v1689 = vpop.permute.xlu0 %1688
      %1690 = vrot.lane.b32.xlu0 %v1614, 56
      %v1691 = vpop.permute.xlu0 %1690
      %1692 = vrot.lane.b32.xlu0 %v1615, 56
      %v1693 = vpop.permute.xlu0 %1692
      %1694 = vrot.lane.b32.xlu0 %v1616, 56
      %v1695 = vpop.permute.xlu0 %1694
      %1696 = vrot.lane.b32.xlu0 %v1617, 56
      %v1697 = vpop.permute.xlu0 %1696
      %1698 = vrot.lane.b32.xlu0 %v1618, 56
      %v1699 = vpop.permute.xlu0 %1698
      %1700 = vrot.lane.b32.xlu0 %v1619, 56
      %v1701 = vpop.permute.xlu0 %1700
      %1702 = vrot.lane.b32.xlu0 %v1620, 56
      %v1703 = vpop.permute.xlu0 %1702
      %1704 = vrot.lane.b32.xlu0 %v1621, 56
      %v1705 = vpop.permute.xlu0 %1704
      %1706 = vrot.lane.b32.xlu0 %v1622, 56
      %v1707 = vpop.permute.xlu0 %1706
      %1708 = vrot.lane.b32.xlu0 %v1623, 56
      %v1709 = vpop.permute.xlu0 %1708
      %1710 = vrot.lane.b32.xlu0 %v1624, 56
      %v1711 = vpop.permute.xlu0 %1710
      %1712 = vrot.lane.b32.xlu0 %v1625, 56
      %v1713 = vpop.permute.xlu0 %1712
      %1714 = vrot.lane.b32.xlu0 %v1626, 56
      %v1715 = vpop.permute.xlu0 %1714
      %1716 = vrot.lane.b32.xlu0 %v1627, 56
      %v1717 = vpop.permute.xlu0 %1716
      %1718 = vrot.lane.b32.xlu0 %v1628, 56
      %v1719 = vpop.permute.xlu0 %1718
      %1720 = vrot.lane.b32.xlu0 %v1629, 56
      %v1721 = vpop.permute.xlu0 %1720
      %1722 = vrot.lane.b32.xlu0 %v1630, 56
      %v1723 = vpop.permute.xlu0 %1722
      %1724 = vrot.lane.b32.xlu0 %v1631, 56
      %v1725 = vpop.permute.xlu0 %1724
      %1726 = vrot.lane.b32.xlu0 %v1632, 56
      %v1727 = vpop.permute.xlu0 %1726
      %1728 = vrot.lane.b32.xlu0 %v1633, 56
      %v1729 = vpop.permute.xlu0 %1728
      %vm1762 = vcmask 523712
      %1763 = vst.msk [vmem:[#allocation3] sm:$0xff] %vm1762, %v1667
      %1764 = vst.msk [vmem:[#allocation3 + $0x8] sm:$0xff] %vm1762, %v1669
      %1765 = vst.msk [vmem:[#allocation3 + $0x10] sm:$0xff] %vm1762, %v1671
      %1766 = vst.msk [vmem:[#allocation3 + $0x18] sm:$0xff] %vm1762, %v1673
      %1767 = vst.msk [vmem:[#allocation3 + $0x20] sm:$0xff] %vm1762, %v1675
      %1768 = vst.msk [vmem:[#allocation3 + $0x28] sm:$0xff] %vm1762, %v1677
      %1769 = vst.msk [vmem:[#allocation3 + $0x30] sm:$0xff] %vm1762, %v1679
      %1770 = vst.msk [vmem:[#allocation3 + $0x38] sm:$0xff] %vm1762, %v1681
      %1771 = vst.msk [vmem:[#allocation3 + $0x40] sm:$0xff] %vm1762, %v1683
      %1772 = vst.msk [vmem:[#allocation3 + $0x48] sm:$0xff] %vm1762, %v1685
      %1773 = vst.msk [vmem:[#allocation3 + $0x50] sm:$0xff] %vm1762, %v1687
      %1774 = vst.msk [vmem:[#allocation3 + $0x58] sm:$0xff] %vm1762, %v1689
      %1775 = vst.msk [vmem:[#allocation3 + $0x60] sm:$0xff] %vm1762, %v1691
      %1776 = vst.msk [vmem:[#allocation3 + $0x68] sm:$0xff] %vm1762, %v1693
      %1777 = vst.msk [vmem:[#allocation3 + $0x70] sm:$0xff] %vm1762, %v1695
      %1778 = vst.msk [vmem:[#allocation3 + $0x78] sm:$0xff] %vm1762, %v1697
      %1779 = vst.msk [vmem:[#allocation3 + $0x80] sm:$0xff] %vm1762, %v1699
      %1780 = vst.msk [vmem:[#allocation3 + $0x88] sm:$0xff] %vm1762, %v1701
      %1781 = vst.msk [vmem:[#allocation3 + $0x90] sm:$0xff] %vm1762, %v1703
      %1782 = vst.msk [vmem:[#allocation3 + $0x98] sm:$0xff] %vm1762, %v1705
      %1783 = vst.msk [vmem:[#allocation3 + $0xa0] sm:$0xff] %vm1762, %v1707
      %1784 = vst.msk [vmem:[#allocation3 + $0xa8] sm:$0xff] %vm1762, %v1709
      %1785 = vst.msk [vmem:[#allocation3 + $0xb0] sm:$0xff] %vm1762, %v1711
      %1786 = vst.msk [vmem:[#allocation3 + $0xb8] sm:$0xff] %vm1762, %v1713
      %1787 = vst.msk [vmem:[#allocation3 + $0xc0] sm:$0xff] %vm1762, %v1715
      %1788 = vst.msk [vmem:[#allocation3 + $0xc8] sm:$0xff] %vm1762, %v1717
      %1789 = vst.msk [vmem:[#allocation3 + $0xd0] sm:$0xff] %vm1762, %v1719
      %1790 = vst.msk [vmem:[#allocation3 + $0xd8] sm:$0xff] %vm1762, %v1721
      %1791 = vst.msk [vmem:[#allocation3 + $0xe0] sm:$0xff] %vm1762, %v1723
      %1792 = vst.msk [vmem:[#allocation3 + $0xe8] sm:$0xff] %vm1762, %v1725
      %1793 = vst.msk [vmem:[#allocation3 + $0xf0] sm:$0xff] %vm1762, %v1727
      %1794 = vst.msk [vmem:[#allocation3 + $0xf8] sm:$0xff] %vm1762, %v1729
      %v1795 = vld [vmem:[%s1408 + $0x2] sm:$0xff]
      %v1796 = vld [vmem:[%s1408 + $0xa] sm:$0xff]
      %v1797 = vld [vmem:[%s1408 + $0x1a] sm:$0xff]
      %v1798 = vld [vmem:[%s1408 + $0x22] sm:$0xff]
      %v1799 = vld [vmem:[%s1408 + $0x32] sm:$0xff]
      %v1800 = vld [vmem:[%s1408 + $0x3a] sm:$0xff]
      %v1801 = vld [vmem:[%s1408 + $0x4a] sm:$0xff]
      %v1802 = vld [vmem:[%s1408 + $0x52] sm:$0xff]
      %v1803 = vld [vmem:[%s1408 + $0x62] sm:$0xff]
      %v1804 = vld [vmem:[%s1408 + $0x6a] sm:$0xff]
      %v1805 = vld [vmem:[%s1408 + $0x7a] sm:$0xff]
      %v1806 = vld [vmem:[%s1408 + $0x82] sm:$0xff]
      %v1807 = vld [vmem:[%s1408 + $0x92] sm:$0xff]
      %v1808 = vld [vmem:[%s1408 + $0x9a] sm:$0xff]
      %v1809 = vld [vmem:[%s1408 + $0xaa] sm:$0xff]
      %v1810 = vld [vmem:[%s1408 + $0xb2] sm:$0xff]
      %v1811 = vld [vmem:[%s1408 + $0xc2] sm:$0xff]
      %v1812 = vld [vmem:[%s1408 + $0xca] sm:$0xff]
      %v1813 = vld [vmem:[%s1408 + $0xda] sm:$0xff]
      %v1814 = vld [vmem:[%s1408 + $0xe2] sm:$0xff]
      %v1815 = vld [vmem:[%s1408 + $0xf2] sm:$0xff]
      %v1816 = vld [vmem:[%s1408 + $0xfa] sm:$0xff]
      %v1817 = vld [vmem:[%s1408 + $0x10a] sm:$0xff]
      %v1818 = vld [vmem:[%s1408 + $0x112] sm:$0xff]
      %v1819 = vld [vmem:[%s1408 + $0x122] sm:$0xff]
      %v1820 = vld [vmem:[%s1408 + $0x12a] sm:$0xff]
      %v1821 = vld [vmem:[%s1408 + $0x13a] sm:$0xff]
      %v1822 = vld [vmem:[%s1408 + $0x142] sm:$0xff]
      %v1823 = vld [vmem:[%s1408 + $0x152] sm:$0xff]
      %v1824 = vld [vmem:[%s1408 + $0x15a] sm:$0xff]
      %v1825 = vld [vmem:[%s1408 + $0x16a] sm:$0xff]
      %v1826 = vld [vmem:[%s1408 + $0x172] sm:$0xff]
      %1859 = vrot.lane.b32.xlu0 %v1795, 64
      %v1860 = vpop.permute.xlu0 %1859
      %1861 = vrot.lane.b32.xlu0 %v1796, 64
      %v1862 = vpop.permute.xlu0 %1861
      %1863 = vrot.lane.b32.xlu0 %v1797, 64
      %v1864 = vpop.permute.xlu0 %1863
      %1865 = vrot.lane.b32.xlu0 %v1798, 64
      %v1866 = vpop.permute.xlu0 %1865
      %1867 = vrot.lane.b32.xlu0 %v1799, 64
      %v1868 = vpop.permute.xlu0 %1867
      %1869 = vrot.lane.b32.xlu0 %v1800, 64
      %v1870 = vpop.permute.xlu0 %1869
      %1871 = vrot.lane.b32.xlu0 %v1801, 64
      %v1872 = vpop.permute.xlu0 %1871
      %1873 = vrot.lane.b32.xlu0 %v1802, 64
      %v1874 = vpop.permute.xlu0 %1873
      %1875 = vrot.lane.b32.xlu0 %v1803, 64
      %v1876 = vpop.permute.xlu0 %1875
      %1877 = vrot.lane.b32.xlu0 %v1804, 64
      %v1878 = vpop.permute.xlu0 %1877
      %1879 = vrot.lane.b32.xlu0 %v1805, 64
      %v1880 = vpop.permute.xlu0 %1879
      %1881 = vrot.lane.b32.xlu0 %v1806, 64
      %v1882 = vpop.permute.xlu0 %1881
      %1883 = vrot.lane.b32.xlu0 %v1807, 64
      %v1884 = vpop.permute.xlu0 %1883
      %1885 = vrot.lane.b32.xlu0 %v1808, 64
      %v1886 = vpop.permute.xlu0 %1885
      %1887 = vrot.lane.b32.xlu0 %v1809, 64
      %v1888 = vpop.permute.xlu0 %1887
      %1889 = vrot.lane.b32.xlu0 %v1810, 64
      %v1890 = vpop.permute.xlu0 %1889
      %1891 = vrot.lane.b32.xlu0 %v1811, 64
      %v1892 = vpop.permute.xlu0 %1891
      %1893 = vrot.lane.b32.xlu0 %v1812, 64
      %v1894 = vpop.permute.xlu0 %1893
      %1895 = vrot.lane.b32.xlu0 %v1813, 64
      %v1896 = vpop.permute.xlu0 %1895
      %1897 = vrot.lane.b32.xlu0 %v1814, 64
      %v1898 = vpop.permute.xlu0 %1897
      %1899 = vrot.lane.b32.xlu0 %v1815, 64
      %v1900 = vpop.permute.xlu0 %1899
      %1901 = vrot.lane.b32.xlu0 %v1816, 64
      %v1902 = vpop.permute.xlu0 %1901
      %1903 = vrot.lane.b32.xlu0 %v1817, 64
      %v1904 = vpop.permute.xlu0 %1903
      %1905 = vrot.lane.b32.xlu0 %v1818, 64
      %v1906 = vpop.permute.xlu0 %1905
      %1907 = vrot.lane.b32.xlu0 %v1819, 64
      %v1908 = vpop.permute.xlu0 %1907
      %1909 = vrot.lane.b32.xlu0 %v1820, 64
      %v1910 = vpop.permute.xlu0 %1909
      %1911 = vrot.lane.b32.xlu0 %v1821, 64
      %v1912 = vpop.permute.xlu0 %1911
      %1913 = vrot.lane.b32.xlu0 %v1822, 64
      %v1914 = vpop.permute.xlu0 %1913
      %1915 = vrot.lane.b32.xlu0 %v1823, 64
      %v1916 = vpop.permute.xlu0 %1915
      %1917 = vrot.lane.b32.xlu0 %v1824, 64
      %v1918 = vpop.permute.xlu0 %1917
      %1919 = vrot.lane.b32.xlu0 %v1825, 64
      %v1920 = vpop.permute.xlu0 %1919
      %1921 = vrot.lane.b32.xlu0 %v1826, 64
      %v1922 = vpop.permute.xlu0 %1921
      %vm1955 = vcmask 589312
      %1956 = vst.msk [vmem:[#allocation3] sm:$0xff] %vm1955, %v1860
      %1957 = vst.msk [vmem:[#allocation3 + $0x8] sm:$0xff] %vm1955, %v1862
      %1958 = vst.msk [vmem:[#allocation3 + $0x10] sm:$0xff] %vm1955, %v1864
      %1959 = vst.msk [vmem:[#allocation3 + $0x18] sm:$0xff] %vm1955, %v1866
      %1960 = vst.msk [vmem:[#allocation3 + $0x20] sm:$0xff] %vm1955, %v1868
      %1961 = vst.msk [vmem:[#allocation3 + $0x28] sm:$0xff] %vm1955, %v1870
      %1962 = vst.msk [vmem:[#allocation3 + $0x30] sm:$0xff] %vm1955, %v1872
      %1963 = vst.msk [vmem:[#allocation3 + $0x38] sm:$0xff] %vm1955, %v1874
      %1964 = vst.msk [vmem:[#allocation3 + $0x40] sm:$0xff] %vm1955, %v1876
      %1965 = vst.msk [vmem:[#allocation3 + $0x48] sm:$0xff] %vm1955, %v1878
      %1966 = vst.msk [vmem:[#allocation3 + $0x50] sm:$0xff] %vm1955, %v1880
      %1967 = vst.msk [vmem:[#allocation3 + $0x58] sm:$0xff] %vm1955, %v1882
      %1968 = vst.msk [vmem:[#allocation3 + $0x60] sm:$0xff] %vm1955, %v1884
      %1969 = vst.msk [vmem:[#allocation3 + $0x68] sm:$0xff] %vm1955, %v1886
      %1970 = vst.msk [vmem:[#allocation3 + $0x70] sm:$0xff] %vm1955, %v1888
      %1971 = vst.msk [vmem:[#allocation3 + $0x78] sm:$0xff] %vm1955, %v1890
      %1972 = vst.msk [vmem:[#allocation3 + $0x80] sm:$0xff] %vm1955, %v1892
      %1973 = vst.msk [vmem:[#allocation3 + $0x88] sm:$0xff] %vm1955, %v1894
      %1974 = vst.msk [vmem:[#allocation3 + $0x90] sm:$0xff] %vm1955, %v1896
      %1975 = vst.msk [vmem:[#allocation3 + $0x98] sm:$0xff] %vm1955, %v1898
      %1976 = vst.msk [vmem:[#allocation3 + $0xa0] sm:$0xff] %vm1955, %v1900
      %1977 = vst.msk [vmem:[#allocation3 + $0xa8] sm:$0xff] %vm1955, %v1902
      %1978 = vst.msk [vmem:[#allocation3 + $0xb0] sm:$0xff] %vm1955, %v1904
      %1979 = vst.msk [vmem:[#allocation3 + $0xb8] sm:$0xff] %vm1955, %v1906
      %1980 = vst.msk [vmem:[#allocation3 + $0xc0] sm:$0xff] %vm1955, %v1908
      %1981 = vst.msk [vmem:[#allocation3 + $0xc8] sm:$0xff] %vm1955, %v1910
      %1982 = vst.msk [vmem:[#allocation3 + $0xd0] sm:$0xff] %vm1955, %v1912
      %1983 = vst.msk [vmem:[#allocation3 + $0xd8] sm:$0xff] %vm1955, %v1914
      %1984 = vst.msk [vmem:[#allocation3 + $0xe0] sm:$0xff] %vm1955, %v1916
      %1985 = vst.msk [vmem:[#allocation3 + $0xe8] sm:$0xff] %vm1955, %v1918
      %1986 = vst.msk [vmem:[#allocation3 + $0xf0] sm:$0xff] %vm1955, %v1920
      %1987 = vst.msk [vmem:[#allocation3 + $0xf8] sm:$0xff] %vm1955, %v1922
      %v1988 = vld [vmem:[#allocation3] sm:$0xff]
      %v1989 = vld [vmem:[#allocation3 + $0x8] sm:$0xff]
      %v1990 = vld [vmem:[#allocation3 + $0x10] sm:$0xff]
      %v1991 = vld [vmem:[#allocation3 + $0x18] sm:$0xff]
      %v1992 = vld [vmem:[#allocation3 + $0x20] sm:$0xff]
      %v1993 = vld [vmem:[#allocation3 + $0x28] sm:$0xff]
      %v1994 = vld [vmem:[#allocation3 + $0x30] sm:$0xff]
      %v1995 = vld [vmem:[#allocation3 + $0x38] sm:$0xff]
      %v1996 = vld [vmem:[#allocation3 + $0x40] sm:$0xff]
      %v1997 = vld [vmem:[#allocation3 + $0x48] sm:$0xff]
      %v1998 = vld [vmem:[#allocation3 + $0x50] sm:$0xff]
      %v1999 = vld [vmem:[#allocation3 + $0x58] sm:$0xff]
      %v2000 = vld [vmem:[#allocation3 + $0x60] sm:$0xff]
      %v2001 = vld [vmem:[#allocation3 + $0x68] sm:$0xff]
      %v2002 = vld [vmem:[#allocation3 + $0x70] sm:$0xff]
      %v2003 = vld [vmem:[#allocation3 + $0x78] sm:$0xff]
      %v2004 = vld [vmem:[#allocation3 + $0x80] sm:$0xff]
      %v2005 = vld [vmem:[#allocation3 + $0x88] sm:$0xff]
      %v2006 = vld [vmem:[#allocation3 + $0x90] sm:$0xff]
      %v2007 = vld [vmem:[#allocation3 + $0x98] sm:$0xff]
      %v2008 = vld [vmem:[#allocation3 + $0xa0] sm:$0xff]
      %v2009 = vld [vmem:[#allocation3 + $0xa8] sm:$0xff]
      %v2010 = vld [vmem:[#allocation3 + $0xb0] sm:$0xff]
      %v2011 = vld [vmem:[#allocation3 + $0xb8] sm:$0xff]
      %v2012 = vld [vmem:[#allocation3 + $0xc0] sm:$0xff]
      %v2013 = vld [vmem:[#allocation3 + $0xc8] sm:$0xff]
      %v2014 = vld [vmem:[#allocation3 + $0xd0] sm:$0xff]
      %v2015 = vld [vmem:[#allocation3 + $0xd8] sm:$0xff]
      %v2016 = vld [vmem:[#allocation3 + $0xe0] sm:$0xff]
      %v2017 = vld [vmem:[#allocation3 + $0xe8] sm:$0xff]
      %v2018 = vld [vmem:[#allocation3 + $0xf0] sm:$0xff]
      %v2019 = vld [vmem:[#allocation3 + $0xf8] sm:$0xff]
      %v2020 = vld [vmem:[%s1] sm:$0xff]
      %v2021 = vld [vmem:[%s1 + $0x8] sm:$0xff]
      %v2022 = vld [vmem:[%s1 + $0x10] sm:$0xff]
      %v2023 = vld [vmem:[%s1 + $0x18] sm:$0xff]
      %v2024 = vld [vmem:[%s1 + $0x20] sm:$0xff]
      %v2025 = vld [vmem:[%s1 + $0x28] sm:$0xff]
      %v2026 = vld [vmem:[%s1 + $0x30] sm:$0xff]
      %v2027 = vld [vmem:[%s1 + $0x38] sm:$0xff]
      %v2028 = vld [vmem:[%s1 + $0x40] sm:$0xff]
      %v2029 = vld [vmem:[%s2] sm:$0x1]
      %v2031 = vlaneseq
      %v2032 = vshrl.u32 %v2031, 7
      %v2033 = vsub.s32 0, %v2032
      %v2034 = vrot.slane %v2029, %v2033
      %vm2036 = vcmask 588800
      %v2038 = vsel %vm2036, %v1988, 0
      %v2041 = vsel %vm2036, %v1989, 0
      %v2044 = vsel %vm2036, %v1990, 0
      %v2047 = vsel %vm2036, %v1991, 0
      %v2050 = vsel %vm2036, %v1992, 0
      %v2053 = vsel %vm2036, %v1993, 0
      %v2056 = vsel %vm2036, %v1994, 0
      %v2059 = vsel %vm2036, %v1995, 0
      %v2062 = vsel %vm2036, %v1996, 0
      %v2065 = vsel %vm2036, %v1997, 0
      %v2068 = vsel %vm2036, %v1998, 0
      %v2071 = vsel %vm2036, %v1999, 0
      %v2074 = vsel %vm2036, %v2000, 0
      %v2077 = vsel %vm2036, %v2001, 0
      %v2080 = vsel %vm2036, %v2002, 0
      %v2083 = vsel %vm2036, %v2003, 0
      %v2086 = vsel %vm2036, %v2004, 0
      %v2089 = vsel %vm2036, %v2005, 0
      %v2092 = vsel %vm2036, %v2006, 0
      %v2095 = vsel %vm2036, %v2007, 0
      %v2098 = vsel %vm2036, %v2008, 0
      %v2101 = vsel %vm2036, %v2009, 0
      %v2104 = vsel %vm2036, %v2010, 0
      %v2107 = vsel %vm2036, %v2011, 0
      %v2110 = vsel %vm2036, %v2012, 0
      %v2113 = vsel %vm2036, %v2013, 0
      %v2116 = vsel %vm2036, %v2014, 0
      %v2119 = vsel %vm2036, %v2015, 0
      %v2122 = vsel %vm2036, %v2016, 0
      %v2125 = vsel %vm2036, %v2017, 0
      %v2128 = vsel %vm2036, %v2018, 0
      %v2131 = vsel %vm2036, %v2019, 0
      %2133 = vmatprep.subr.mxu0 0.0
      %2134 = vmatpush1.msra.mxu0 0.0
      %2135 = vmatprep.subr.mxu0 0.0
      %2136 = vmatpush1.msra.mxu0 0.0
      %2137 = vmatprep.subr.mxu0 0.0
      %2138 = vmatpush1.msra.mxu0 0.0
      %2139 = vmatprep.subr.mxu0 0.0
      %2140 = vmatpush1.msra.mxu0 0.0
      %2141 = vmatprep.subr.mxu0 0.0
      %2142 = vmatpush1.msra.mxu0 0.0
      %2143 = vmatprep.subr.mxu0 0.0
      %2144 = vmatpush1.msra.mxu0 0.0
      %2145 = vmatprep.subr.mxu0 0.0
      %2146 = vmatpush1.msra.mxu0 0.0
      %2147 = vmatprep.subr.mxu0 0.0
      %2148 = vmatpush1.msra.mxu0 %v2028
      %2149 = vmatprep.subr.mxu0 0.0
      %2150 = vmatpush1.msra.mxu0 %v2027
      %2151 = vmatprep.subr.mxu0 0.0
      %2152 = vmatpush1.msra.mxu0 %v2026
      %2153 = vmatprep.subr.mxu0 0.0
      %2154 = vmatpush1.msra.mxu0 %v2025
      %2155 = vmatprep.subr.mxu0 0.0
      %2156 = vmatpush1.msra.mxu0 %v2024
      %2157 = vmatprep.subr.mxu0 0.0
      %2158 = vmatpush1.msra.mxu0 %v2023
      %2159 = vmatprep.subr.mxu0 0.0
      %2160 = vmatpush1.msra.mxu0 %v2022
      %2161 = vmatprep.subr.mxu0 0.0
      %2162 = vmatpush1.msra.mxu0 %v2021
      %2163 = vmatprep.subr.mxu0 0.0
      %2164 = vmatpush1.msra.mxu0 %v2020
      %2165 = vmatprep.subr.mxu0 0.0
      %2166 = vmatpush2.msra.mxu0 0.0
      %2167 = vmatprep.subr.mxu0 0.0
      %2168 = vmatpush2.msra.mxu0 0.0
      %2169 = vmatprep.subr.mxu0 0.0
      %2170 = vmatpush2.msra.mxu0 0.0
      %2171 = vmatprep.subr.mxu0 0.0
      %2172 = vmatpush2.msra.mxu0 0.0
      %2173 = vmatprep.subr.mxu0 0.0
      %2174 = vmatpush2.msra.mxu0 0.0
      %2175 = vmatprep.subr.mxu0 0.0
      %2176 = vmatpush2.msra.mxu0 0.0
      %2177 = vmatprep.subr.mxu0 0.0
      %2178 = vmatpush2.msra.mxu0 0.0
      %2179 = vmatprep.subr.mxu0 0.0
      %2180 = vmatpush2.msra.mxu0 0.0
      %2181 = vmatprep.subr.mxu0 0.0
      %2182 = vmatpush2.msra.mxu0 0.0
      %2183 = vmatprep.subr.mxu0 0.0
      %2184 = vmatpush2.msra.mxu0 0.0
      %2185 = vmatprep.subr.mxu0 0.0
      %2186 = vmatpush2.msra.mxu0 0.0
      %2187 = vmatprep.subr.mxu0 0.0
      %2188 = vmatpush2.msra.mxu0 0.0
      %2189 = vmatprep.subr.mxu0 0.0
      %2190 = vmatpush2.msra.mxu0 0.0
      %2191 = vmatprep.subr.mxu0 0.0
      %2192 = vmatpush2.msra.mxu0 0.0
      %2193 = vmatprep.subr.mxu0 0.0
      %2194 = vmatpush2.msra.mxu0 0.0
      %2195 = vmatprep.subr.mxu0 0.0
      %2196 = vmatpush2.msra.mxu0 0.0
      %2197 = vmatprep.mubr.f32.mxu0 0.0
      %2198 = vmatmul.mubr.f32.gmra.mxu0 %v2038
      %v2199 = vpop.f32.mrf.mxu0
      %v2200 = vadd.f32 %v2034, %v2199
      %v2201 = vpop.f32.mrf.mxu0
      %2202 = vmatprep.mubr.f32.mxu0 0.0
      %2203 = vmatmul.mubr.f32.gmra.mxu0 %v2041
      %v2204 = vpop.f32.mrf.mxu0
      %v2205 = vadd.f32 %v2034, %v2204
      %v2206 = vpop.f32.mrf.mxu0
      %2207 = vmatprep.mubr.f32.mxu0 0.0
      %2208 = vmatmul.mubr.f32.gmra.mxu0 %v2044
      %v2209 = vpop.f32.mrf.mxu0
      %v2210 = vadd.f32 %v2034, %v2209
      %v2211 = vpop.f32.mrf.mxu0
      %2212 = vmatprep.mubr.f32.mxu0 0.0
      %2213 = vmatmul.mubr.f32.gmra.mxu0 %v2047
      %v2214 = vpop.f32.mrf.mxu0
      %v2215 = vadd.f32 %v2034, %v2214
      %v2216 = vpop.f32.mrf.mxu0
      %2217 = vmatprep.mubr.f32.mxu0 0.0
      %2218 = vmatmul.mubr.f32.gmra.mxu0 %v2050
      %v2219 = vpop.f32.mrf.mxu0
      %v2220 = vadd.f32 %v2034, %v2219
      %v2221 = vpop.f32.mrf.mxu0
      %2222 = vmatprep.mubr.f32.mxu0 0.0
      %2223 = vmatmul.mubr.f32.gmra.mxu0 %v2053
      %v2224 = vpop.f32.mrf.mxu0
      %v2225 = vadd.f32 %v2034, %v2224
      %v2226 = vpop.f32.mrf.mxu0
      %2227 = vmatprep.mubr.f32.mxu0 0.0
      %2228 = vmatmul.mubr.f32.gmra.mxu0 %v2056
      %v2229 = vpop.f32.mrf.mxu0
      %v2230 = vadd.f32 %v2034, %v2229
      %v2231 = vpop.f32.mrf.mxu0
      %2232 = vmatprep.mubr.f32.mxu0 0.0
      %2233 = vmatmul.mubr.f32.gmra.mxu0 %v2059
      %v2234 = vpop.f32.mrf.mxu0
      %v2235 = vadd.f32 %v2034, %v2234
      %v2236 = vpop.f32.mrf.mxu0
      %2237 = vmatprep.mubr.f32.mxu0 0.0
      %2238 = vmatmul.mubr.f32.gmra.mxu0 %v2062
      %v2239 = vpop.f32.mrf.mxu0
      %v2240 = vadd.f32 %v2034, %v2239
      %v2241 = vpop.f32.mrf.mxu0
      %2242 = vmatprep.mubr.f32.mxu0 0.0
      %2243 = vmatmul.mubr.f32.gmra.mxu0 %v2065
      %v2244 = vpop.f32.mrf.mxu0
      %v2245 = vadd.f32 %v2034, %v2244
      %v2246 = vpop.f32.mrf.mxu0
      %2247 = vmatprep.mubr.f32.mxu0 0.0
      %2248 = vmatmul.mubr.f32.gmra.mxu0 %v2068
      %v2249 = vpop.f32.mrf.mxu0
      %v2250 = vadd.f32 %v2034, %v2249
      %v2251 = vpop.f32.mrf.mxu0
      %2252 = vmatprep.mubr.f32.mxu0 0.0
      %2253 = vmatmul.mubr.f32.gmra.mxu0 %v2071
      %v2254 = vpop.f32.mrf.mxu0
      %v2255 = vadd.f32 %v2034, %v2254
      %v2256 = vpop.f32.mrf.mxu0
      %2257 = vmatprep.mubr.f32.mxu0 0.0
      %2258 = vmatmul.mubr.f32.gmra.mxu0 %v2074
      %v2259 = vpop.f32.mrf.mxu0
      %v2260 = vadd.f32 %v2034, %v2259
      %v2261 = vpop.f32.mrf.mxu0
      %2262 = vmatprep.mubr.f32.mxu0 0.0
      %2263 = vmatmul.mubr.f32.gmra.mxu0 %v2077
      %v2264 = vpop.f32.mrf.mxu0
      %v2265 = vadd.f32 %v2034, %v2264
      %v2266 = vpop.f32.mrf.mxu0
      %2267 = vmatprep.mubr.f32.mxu0 0.0
      %2268 = vmatmul.mubr.f32.gmra.mxu0 %v2080
      %v2269 = vpop.f32.mrf.mxu0
      %v2270 = vadd.f32 %v2034, %v2269
      %v2271 = vpop.f32.mrf.mxu0
      %2272 = vmatprep.mubr.f32.mxu0 0.0
      %2273 = vmatmul.mubr.f32.gmra.mxu0 %v2083
      %v2274 = vpop.f32.mrf.mxu0
      %v2275 = vadd.f32 %v2034, %v2274
      %v2276 = vpop.f32.mrf.mxu0
      %2277 = vmatprep.mubr.f32.mxu0 0.0
      %2278 = vmatmul.mubr.f32.gmra.mxu0 %v2086
      %v2279 = vpop.f32.mrf.mxu0
      %v2280 = vadd.f32 %v2034, %v2279
      %v2281 = vpop.f32.mrf.mxu0
      %2282 = vmatprep.mubr.f32.mxu0 0.0
      %2283 = vmatmul.mubr.f32.gmra.mxu0 %v2089
      %v2284 = vpop.f32.mrf.mxu0
      %v2285 = vadd.f32 %v2034, %v2284
      %v2286 = vpop.f32.mrf.mxu0
      %2287 = vmatprep.mubr.f32.mxu0 0.0
      %2288 = vmatmul.mubr.f32.gmra.mxu0 %v2092
      %v2289 = vpop.f32.mrf.mxu0
      %v2290 = vadd.f32 %v2034, %v2289
      %v2291 = vpop.f32.mrf.mxu0
      %2292 = vmatprep.mubr.f32.mxu0 0.0
      %2293 = vmatmul.mubr.f32.gmra.mxu0 %v2095
      %v2294 = vpop.f32.mrf.mxu0
      %v2295 = vadd.f32 %v2034, %v2294
      %v2296 = vpop.f32.mrf.mxu0
      %2297 = vmatprep.mubr.f32.mxu0 0.0
      %2298 = vmatmul.mubr.f32.gmra.mxu0 %v2098
      %v2299 = vpop.f32.mrf.mxu0
      %v2300 = vadd.f32 %v2034, %v2299
      %v2301 = vpop.f32.mrf.mxu0
      %2302 = vmatprep.mubr.f32.mxu0 0.0
      %2303 = vmatmul.mubr.f32.gmra.mxu0 %v2101
      %v2304 = vpop.f32.mrf.mxu0
      %v2305 = vadd.f32 %v2034, %v2304
      %v2306 = vpop.f32.mrf.mxu0
      %2307 = vmatprep.mubr.f32.mxu0 0.0
      %2308 = vmatmul.mubr.f32.gmra.mxu0 %v2104
      %v2309 = vpop.f32.mrf.mxu0
      %v2310 = vadd.f32 %v2034, %v2309
      %v2311 = vpop.f32.mrf.mxu0
      %2312 = vmatprep.mubr.f32.mxu0 0.0
      %2313 = vmatmul.mubr.f32.gmra.mxu0 %v2107
      %v2314 = vpop.f32.mrf.mxu0
      %v2315 = vadd.f32 %v2034, %v2314
      %v2316 = vpop.f32.mrf.mxu0
      %2317 = vmatprep.mubr.f32.mxu0 0.0
      %2318 = vmatmul.mubr.f32.gmra.mxu0 %v2110
      %v2319 = vpop.f32.mrf.mxu0
      %v2320 = vadd.f32 %v2034, %v2319
      %v2321 = vpop.f32.mrf.mxu0
      %2322 = vmatprep.mubr.f32.mxu0 0.0
      %2323 = vmatmul.mubr.f32.gmra.mxu0 %v2113
      %v2324 = vpop.f32.mrf.mxu0
      %v2325 = vadd.f32 %v2034, %v2324
      %v2326 = vpop.f32.mrf.mxu0
      %2327 = vmatprep.mubr.f32.mxu0 0.0
      %2328 = vmatmul.mubr.f32.gmra.mxu0 %v2116
      %v2329 = vpop.f32.mrf.mxu0
      %v2330 = vadd.f32 %v2034, %v2329
      %v2331 = vpop.f32.mrf.mxu0
      %2332 = vmatprep.mubr.f32.mxu0 0.0
      %2333 = vmatmul.mubr.f32.gmra.mxu0 %v2119
      %v2334 = vpop.f32.mrf.mxu0
      %v2335 = vadd.f32 %v2034, %v2334
      %v2336 = vpop.f32.mrf.mxu0
      %2337 = vmatprep.mubr.f32.mxu0 0.0
      %2338 = vmatmul.mubr.f32.gmra.mxu0 %v2122
      %v2339 = vpop.f32.mrf.mxu0
      %v2340 = vadd.f32 %v2034, %v2339
      %v2341 = vpop.f32.mrf.mxu0
      %2342 = vmatprep.mubr.f32.mxu0 0.0
      %2343 = vmatmul.mubr.f32.gmra.mxu0 %v2125
      %v2344 = vpop.f32.mrf.mxu0
      %v2345 = vadd.f32 %v2034, %v2344
      %v2346 = vpop.f32.mrf.mxu0
      %2347 = vmatprep.mubr.f32.mxu0 0.0
      %2348 = vmatmul.mubr.f32.gmra.mxu0 %v2128
      %v2349 = vpop.f32.mrf.mxu0
      %v2350 = vadd.f32 %v2034, %v2349
      %v2351 = vpop.f32.mrf.mxu0
      %2352 = vmatprep.mubr.f32.mxu0 0.0
      %2353 = vmatmul.mubr.f32.gmra.mxu0 %v2131
      %v2354 = vpop.f32.mrf.mxu0
      %v2355 = vadd.f32 %v2034, %v2354
      %v2356 = vpop.f32.mrf.mxu0
      %2357 = vdwg.mxu0
      %v2358 = vmax.f32 %v2200, 0.0
      %v2359 = vmax.f32 %v2205, 0.0
      %v2360 = vmax.f32 %v2210, 0.0
      %v2361 = vmax.f32 %v2215, 0.0
      %v2362 = vmax.f32 %v2220, 0.0
      %v2363 = vmax.f32 %v2225, 0.0
      %v2364 = vmax.f32 %v2230, 0.0
      %v2365 = vmax.f32 %v2235, 0.0
      %v2366 = vmax.f32 %v2240, 0.0
      %v2367 = vmax.f32 %v2245, 0.0
      %v2368 = vmax.f32 %v2250, 0.0
      %v2369 = vmax.f32 %v2255, 0.0
      %v2370 = vmax.f32 %v2260, 0.0
      %v2371 = vmax.f32 %v2265, 0.0
      %v2372 = vmax.f32 %v2270, 0.0
      %v2373 = vmax.f32 %v2275, 0.0
      %v2374 = vmax.f32 %v2280, 0.0
      %v2375 = vmax.f32 %v2285, 0.0
      %v2376 = vmax.f32 %v2290, 0.0
      %v2377 = vmax.f32 %v2295, 0.0
      %v2378 = vmax.f32 %v2300, 0.0
      %v2379 = vmax.f32 %v2305, 0.0
      %v2380 = vmax.f32 %v2310, 0.0
      %v2381 = vmax.f32 %v2315, 0.0
      %v2382 = vmax.f32 %v2320, 0.0
      %v2383 = vmax.f32 %v2325, 0.0
      %v2384 = vmax.f32 %v2330, 0.0
      %v2385 = vmax.f32 %v2335, 0.0
      %v2386 = vmax.f32 %v2340, 0.0
      %v2387 = vmax.f32 %v2345, 0.0
      %v2388 = vmax.f32 %v2350, 0.0
      %v2389 = vmax.f32 %v2355, 0.0
      %s2390 = scalar_lea.vmem [#allocation4], 24
      %2391 = vst.msk [vmem:[%s2390 + $0x1] sm:$0xff] %vm225, %v2358
      %2392 = vst.msk [vmem:[%s2390 + $0x9] sm:$0xff] %vm225, %v2359
      %2393 = vst.msk [vmem:[%s2390 + $0x19] sm:$0xff] %vm225, %v2360
      %2394 = vst.msk [vmem:[%s2390 + $0x21] sm:$0xff] %vm225, %v2361
      %2395 = vst.msk [vmem:[%s2390 + $0x31] sm:$0xff] %vm225, %v2362
      %2396 = vst.msk [vmem:[%s2390 + $0x39] sm:$0xff] %vm225, %v2363
      %2397 = vst.msk [vmem:[%s2390 + $0x49] sm:$0xff] %vm225, %v2364
      %2398 = vst.msk [vmem:[%s2390 + $0x51] sm:$0xff] %vm225, %v2365
      %2399 = vst.msk [vmem:[%s2390 + $0x61] sm:$0xff] %vm225, %v2366
      %2400 = vst.msk [vmem:[%s2390 + $0x69] sm:$0xff] %vm225, %v2367
      %2401 = vst.msk [vmem:[%s2390 + $0x79] sm:$0xff] %vm225, %v2368
      %2402 = vst.msk [vmem:[%s2390 + $0x81] sm:$0xff] %vm225, %v2369
      %2403 = vst.msk [vmem:[%s2390 + $0x91] sm:$0xff] %vm225, %v2370
      %2404 = vst.msk [vmem:[%s2390 + $0x99] sm:$0xff] %vm225, %v2371
      %2405 = vst.msk [vmem:[%s2390 + $0xa9] sm:$0xff] %vm225, %v2372
      %2406 = vst.msk [vmem:[%s2390 + $0xb1] sm:$0xff] %vm225, %v2373
      %2407 = vst.msk [vmem:[%s2390 + $0xc1] sm:$0xff] %vm225, %v2374
      %2408 = vst.msk [vmem:[%s2390 + $0xc9] sm:$0xff] %vm225, %v2375
      %2409 = vst.msk [vmem:[%s2390 + $0xd9] sm:$0xff] %vm225, %v2376
      %2410 = vst.msk [vmem:[%s2390 + $0xe1] sm:$0xff] %vm225, %v2377
      %2411 = vst.msk [vmem:[%s2390 + $0xf1] sm:$0xff] %vm225, %v2378
      %2412 = vst.msk [vmem:[%s2390 + $0xf9] sm:$0xff] %vm225, %v2379
      %2413 = vst.msk [vmem:[%s2390 + $0x109] sm:$0xff] %vm225, %v2380
      %2414 = vst.msk [vmem:[%s2390 + $0x111] sm:$0xff] %vm225, %v2381
      %2415 = vst.msk [vmem:[%s2390 + $0x121] sm:$0xff] %vm225, %v2382
      %2416 = vst.msk [vmem:[%s2390 + $0x129] sm:$0xff] %vm225, %v2383
      %2417 = vst.msk [vmem:[%s2390 + $0x139] sm:$0xff] %vm225, %v2384
      %2418 = vst.msk [vmem:[%s2390 + $0x141] sm:$0xff] %vm225, %v2385
      %2419 = vst.msk [vmem:[%s2390 + $0x151] sm:$0xff] %vm225, %v2386
      %2420 = vst.msk [vmem:[%s2390 + $0x159] sm:$0xff] %vm225, %v2387
      %2421 = vst.msk [vmem:[%s2390 + $0x169] sm:$0xff] %vm225, %v2388
      %2422 = vst.msk [vmem:[%s2390 + $0x171] sm:$0xff] %vm225, %v2389
      %v2423 = vld [vmem:[#allocation4] sm:$0xff]
      %v2424 = vld [vmem:[#allocation4 + $0x8] sm:$0xff]
      %v2425 = vld [vmem:[#allocation4 + $0x18] sm:$0xff]
      %v2426 = vld [vmem:[#allocation4 + $0x20] sm:$0xff]
      %v2427 = vld [vmem:[#allocation4 + $0x30] sm:$0xff]
      %v2428 = vld [vmem:[#allocation4 + $0x38] sm:$0xff]
      %v2429 = vld [vmem:[#allocation4 + $0x48] sm:$0xff]
      %v2430 = vld [vmem:[#allocation4 + $0x50] sm:$0xff]
      %v2431 = vld [vmem:[#allocation4 + $0x60] sm:$0xff]
      %v2432 = vld [vmem:[#allocation4 + $0x68] sm:$0xff]
      %v2433 = vld [vmem:[#allocation4 + $0x78] sm:$0xff]
      %v2434 = vld [vmem:[#allocation4 + $0x80] sm:$0xff]
      %v2435 = vld [vmem:[#allocation4 + $0x90] sm:$0xff]
      %v2436 = vld [vmem:[#allocation4 + $0x98] sm:$0xff]
      %v2437 = vld [vmem:[#allocation4 + $0xa8] sm:$0xff]
      %v2438 = vld [vmem:[#allocation4 + $0xb0] sm:$0xff]
      %v2439 = vld [vmem:[#allocation4 + $0xc0] sm:$0xff]
      %v2440 = vld [vmem:[#allocation4 + $0xc8] sm:$0xff]
      %v2441 = vld [vmem:[#allocation4 + $0xd8] sm:$0xff]
      %v2442 = vld [vmem:[#allocation4 + $0xe0] sm:$0xff]
      %v2443 = vld [vmem:[#allocation4 + $0xf0] sm:$0xff]
      %v2444 = vld [vmem:[#allocation4 + $0xf8] sm:$0xff]
      %v2445 = vld [vmem:[#allocation4 + $0x108] sm:$0xff]
      %v2446 = vld [vmem:[#allocation4 + $0x110] sm:$0xff]
      %v2447 = vld [vmem:[#allocation4 + $0x120] sm:$0xff]
      %v2448 = vld [vmem:[#allocation4 + $0x128] sm:$0xff]
      %v2449 = vld [vmem:[#allocation4 + $0x138] sm:$0xff]
      %v2450 = vld [vmem:[#allocation4 + $0x140] sm:$0xff]
      %v2451 = vld [vmem:[#allocation4 + $0x150] sm:$0xff]
      %v2452 = vld [vmem:[#allocation4 + $0x158] sm:$0xff]
      %v2453 = vld [vmem:[#allocation4 + $0x168] sm:$0xff]
      %v2454 = vld [vmem:[#allocation4 + $0x170] sm:$0xff]
      %2455 = vst.msk [vmem:[#allocation5] sm:$0xff] %vm225, %v2423
      %2456 = vst.msk [vmem:[#allocation5 + $0x8] sm:$0xff] %vm225, %v2424
      %2457 = vst.msk [vmem:[#allocation5 + $0x10] sm:$0xff] %vm225, %v2425
      %2458 = vst.msk [vmem:[#allocation5 + $0x18] sm:$0xff] %vm225, %v2426
      %2459 = vst.msk [vmem:[#allocation5 + $0x20] sm:$0xff] %vm225, %v2427
      %2460 = vst.msk [vmem:[#allocation5 + $0x28] sm:$0xff] %vm225, %v2428
      %2461 = vst.msk [vmem:[#allocation5 + $0x30] sm:$0xff] %vm225, %v2429
      %2462 = vst.msk [vmem:[#allocation5 + $0x38] sm:$0xff] %vm225, %v2430
      %2463 = vst.msk [vmem:[#allocation5 + $0x40] sm:$0xff] %vm225, %v2431
      %2464 = vst.msk [vmem:[#allocation5 + $0x48] sm:$0xff] %vm225, %v2432
      %2465 = vst.msk [vmem:[#allocation5 + $0x50] sm:$0xff] %vm225, %v2433
      %2466 = vst.msk [vmem:[#allocation5 + $0x58] sm:$0xff] %vm225, %v2434
      %2467 = vst.msk [vmem:[#allocation5 + $0x60] sm:$0xff] %vm225, %v2435
      %2468 = vst.msk [vmem:[#allocation5 + $0x68] sm:$0xff] %vm225, %v2436
      %2469 = vst.msk [vmem:[#allocation5 + $0x70] sm:$0xff] %vm225, %v2437
      %2470 = vst.msk [vmem:[#allocation5 + $0x78] sm:$0xff] %vm225, %v2438
      %2471 = vst.msk [vmem:[#allocation5 + $0x80] sm:$0xff] %vm225, %v2439
      %2472 = vst.msk [vmem:[#allocation5 + $0x88] sm:$0xff] %vm225, %v2440
      %2473 = vst.msk [vmem:[#allocation5 + $0x90] sm:$0xff] %vm225, %v2441
      %2474 = vst.msk [vmem:[#allocation5 + $0x98] sm:$0xff] %vm225, %v2442
      %2475 = vst.msk [vmem:[#allocation5 + $0xa0] sm:$0xff] %vm225, %v2443
      %2476 = vst.msk [vmem:[#allocation5 + $0xa8] sm:$0xff] %vm225, %v2444
      %2477 = vst.msk [vmem:[#allocation5 + $0xb0] sm:$0xff] %vm225, %v2445
      %2478 = vst.msk [vmem:[#allocation5 + $0xb8] sm:$0xff] %vm225, %v2446
      %2479 = vst.msk [vmem:[#allocation5 + $0xc0] sm:$0xff] %vm225, %v2447
      %2480 = vst.msk [vmem:[#allocation5 + $0xc8] sm:$0xff] %vm225, %v2448
      %2481 = vst.msk [vmem:[#allocation5 + $0xd0] sm:$0xff] %vm225, %v2449
      %2482 = vst.msk [vmem:[#allocation5 + $0xd8] sm:$0xff] %vm225, %v2450
      %2483 = vst.msk [vmem:[#allocation5 + $0xe0] sm:$0xff] %vm225, %v2451
      %2484 = vst.msk [vmem:[#allocation5 + $0xe8] sm:$0xff] %vm225, %v2452
      %2485 = vst.msk [vmem:[#allocation5 + $0xf0] sm:$0xff] %vm225, %v2453
      %2486 = vst.msk [vmem:[#allocation5 + $0xf8] sm:$0xff] %vm225, %v2454
      %v2487 = vld [vmem:[#allocation4 + $0x1] sm:$0xff]
      %v2488 = vld [vmem:[#allocation4 + $0x9] sm:$0xff]
      %v2489 = vld [vmem:[#allocation4 + $0x19] sm:$0xff]
      %v2490 = vld [vmem:[#allocation4 + $0x21] sm:$0xff]
      %v2491 = vld [vmem:[#allocation4 + $0x31] sm:$0xff]
      %v2492 = vld [vmem:[#allocation4 + $0x39] sm:$0xff]
      %v2493 = vld [vmem:[#allocation4 + $0x49] sm:$0xff]
      %v2494 = vld [vmem:[#allocation4 + $0x51] sm:$0xff]
      %v2495 = vld [vmem:[#allocation4 + $0x61] sm:$0xff]
      %v2496 = vld [vmem:[#allocation4 + $0x69] sm:$0xff]
      %v2497 = vld [vmem:[#allocation4 + $0x79] sm:$0xff]
      %v2498 = vld [vmem:[#allocation4 + $0x81] sm:$0xff]
      %v2499 = vld [vmem:[#allocation4 + $0x91] sm:$0xff]
      %v2500 = vld [vmem:[#allocation4 + $0x99] sm:$0xff]
      %v2501 = vld [vmem:[#allocation4 + $0xa9] sm:$0xff]
      %v2502 = vld [vmem:[#allocation4 + $0xb1] sm:$0xff]
      %v2503 = vld [vmem:[#allocation4 + $0xc1] sm:$0xff]
      %v2504 = vld [vmem:[#allocation4 + $0xc9] sm:$0xff]
      %v2505 = vld [vmem:[#allocation4 + $0xd9] sm:$0xff]
      %v2506 = vld [vmem:[#allocation4 + $0xe1] sm:$0xff]
      %v2507 = vld [vmem:[#allocation4 + $0xf1] sm:$0xff]
      %v2508 = vld [vmem:[#allocation4 + $0xf9] sm:$0xff]
      %v2509 = vld [vmem:[#allocation4 + $0x109] sm:$0xff]
      %v2510 = vld [vmem:[#allocation4 + $0x111] sm:$0xff]
      %v2511 = vld [vmem:[#allocation4 + $0x121] sm:$0xff]
      %v2512 = vld [vmem:[#allocation4 + $0x129] sm:$0xff]
      %v2513 = vld [vmem:[#allocation4 + $0x139] sm:$0xff]
      %v2514 = vld [vmem:[#allocation4 + $0x141] sm:$0xff]
      %v2515 = vld [vmem:[#allocation4 + $0x151] sm:$0xff]
      %v2516 = vld [vmem:[#allocation4 + $0x159] sm:$0xff]
      %v2517 = vld [vmem:[#allocation4 + $0x169] sm:$0xff]
      %v2518 = vld [vmem:[#allocation4 + $0x171] sm:$0xff]
      %2551 = vrot.lane.b32.xlu0 %v2487, 8
      %v2552 = vpop.permute.xlu0 %2551
      %2553 = vrot.lane.b32.xlu0 %v2488, 8
      %v2554 = vpop.permute.xlu0 %2553
      %2555 = vrot.lane.b32.xlu0 %v2489, 8
      %v2556 = vpop.permute.xlu0 %2555
      %2557 = vrot.lane.b32.xlu0 %v2490, 8
      %v2558 = vpop.permute.xlu0 %2557
      %2559 = vrot.lane.b32.xlu0 %v2491, 8
      %v2560 = vpop.permute.xlu0 %2559
      %2561 = vrot.lane.b32.xlu0 %v2492, 8
      %v2562 = vpop.permute.xlu0 %2561
      %2563 = vrot.lane.b32.xlu0 %v2493, 8
      %v2564 = vpop.permute.xlu0 %2563
      %2565 = vrot.lane.b32.xlu0 %v2494, 8
      %v2566 = vpop.permute.xlu0 %2565
      %2567 = vrot.lane.b32.xlu0 %v2495, 8
      %v2568 = vpop.permute.xlu0 %2567
      %2569 = vrot.lane.b32.xlu0 %v2496, 8
      %v2570 = vpop.permute.xlu0 %2569
      %2571 = vrot.lane.b32.xlu0 %v2497, 8
      %v2572 = vpop.permute.xlu0 %2571
      %2573 = vrot.lane.b32.xlu0 %v2498, 8
      %v2574 = vpop.permute.xlu0 %2573
      %2575 = vrot.lane.b32.xlu0 %v2499, 8
      %v2576 = vpop.permute.xlu0 %2575
      %2577 = vrot.lane.b32.xlu0 %v2500, 8
      %v2578 = vpop.permute.xlu0 %2577
      %2579 = vrot.lane.b32.xlu0 %v2501, 8
      %v2580 = vpop.permute.xlu0 %2579
      %2581 = vrot.lane.b32.xlu0 %v2502, 8
      %v2582 = vpop.permute.xlu0 %2581
      %2583 = vrot.lane.b32.xlu0 %v2503, 8
      %v2584 = vpop.permute.xlu0 %2583
      %2585 = vrot.lane.b32.xlu0 %v2504, 8
      %v2586 = vpop.permute.xlu0 %2585
      %2587 = vrot.lane.b32.xlu0 %v2505, 8
      %v2588 = vpop.permute.xlu0 %2587
      %2589 = vrot.lane.b32.xlu0 %v2506, 8
      %v2590 = vpop.permute.xlu0 %2589
      %2591 = vrot.lane.b32.xlu0 %v2507, 8
      %v2592 = vpop.permute.xlu0 %2591
      %2593 = vrot.lane.b32.xlu0 %v2508, 8
      %v2594 = vpop.permute.xlu0 %2593
      %2595 = vrot.lane.b32.xlu0 %v2509, 8
      %v2596 = vpop.permute.xlu0 %2595
      %2597 = vrot.lane.b32.xlu0 %v2510, 8
      %v2598 = vpop.permute.xlu0 %2597
      %2599 = vrot.lane.b32.xlu0 %v2511, 8
      %v2600 = vpop.permute.xlu0 %2599
      %2601 = vrot.lane.b32.xlu0 %v2512, 8
      %v2602 = vpop.permute.xlu0 %2601
      %2603 = vrot.lane.b32.xlu0 %v2513, 8
      %v2604 = vpop.permute.xlu0 %2603
      %2605 = vrot.lane.b32.xlu0 %v2514, 8
      %v2606 = vpop.permute.xlu0 %2605
      %2607 = vrot.lane.b32.xlu0 %v2515, 8
      %v2608 = vpop.permute.xlu0 %2607
      %2609 = vrot.lane.b32.xlu0 %v2516, 8
      %v2610 = vpop.permute.xlu0 %2609
      %2611 = vrot.lane.b32.xlu0 %v2517, 8
      %v2612 = vpop.permute.xlu0 %2611
      %2613 = vrot.lane.b32.xlu0 %v2518, 8
      %v2614 = vpop.permute.xlu0 %2613
      %2647 = vst.msk [vmem:[#allocation5] sm:$0xff] %vm603, %v2552
      %2648 = vst.msk [vmem:[#allocation5 + $0x8] sm:$0xff] %vm603, %v2554
      %2649 = vst.msk [vmem:[#allocation5 + $0x10] sm:$0xff] %vm603, %v2556
      %2650 = vst.msk [vmem:[#allocation5 + $0x18] sm:$0xff] %vm603, %v2558
      %2651 = vst.msk [vmem:[#allocation5 + $0x20] sm:$0xff] %vm603, %v2560
      %2652 = vst.msk [vmem:[#allocation5 + $0x28] sm:$0xff] %vm603, %v2562
      %2653 = vst.msk [vmem:[#allocation5 + $0x30] sm:$0xff] %vm603, %v2564
      %2654 = vst.msk [vmem:[#allocation5 + $0x38] sm:$0xff] %vm603, %v2566
      %2655 = vst.msk [vmem:[#allocation5 + $0x40] sm:$0xff] %vm603, %v2568
      %2656 = vst.msk [vmem:[#allocation5 + $0x48] sm:$0xff] %vm603, %v2570
      %2657 = vst.msk [vmem:[#allocation5 + $0x50] sm:$0xff] %vm603, %v2572
      %2658 = vst.msk [vmem:[#allocation5 + $0x58] sm:$0xff] %vm603, %v2574
      %2659 = vst.msk [vmem:[#allocation5 + $0x60] sm:$0xff] %vm603, %v2576
      %2660 = vst.msk [vmem:[#allocation5 + $0x68] sm:$0xff] %vm603, %v2578
      %2661 = vst.msk [vmem:[#allocation5 + $0x70] sm:$0xff] %vm603, %v2580
      %2662 = vst.msk [vmem:[#allocation5 + $0x78] sm:$0xff] %vm603, %v2582
      %2663 = vst.msk [vmem:[#allocation5 + $0x80] sm:$0xff] %vm603, %v2584
      %2664 = vst.msk [vmem:[#allocation5 + $0x88] sm:$0xff] %vm603, %v2586
      %2665 = vst.msk [vmem:[#allocation5 + $0x90] sm:$0xff] %vm603, %v2588
      %2666 = vst.msk [vmem:[#allocation5 + $0x98] sm:$0xff] %vm603, %v2590
      %2667 = vst.msk [vmem:[#allocation5 + $0xa0] sm:$0xff] %vm603, %v2592
      %2668 = vst.msk [vmem:[#allocation5 + $0xa8] sm:$0xff] %vm603, %v2594
      %2669 = vst.msk [vmem:[#allocation5 + $0xb0] sm:$0xff] %vm603, %v2596
      %2670 = vst.msk [vmem:[#allocation5 + $0xb8] sm:$0xff] %vm603, %v2598
      %2671 = vst.msk [vmem:[#allocation5 + $0xc0] sm:$0xff] %vm603, %v2600
      %2672 = vst.msk [vmem:[#allocation5 + $0xc8] sm:$0xff] %vm603, %v2602
      %2673 = vst.msk [vmem:[#allocation5 + $0xd0] sm:$0xff] %vm603, %v2604
      %2674 = vst.msk [vmem:[#allocation5 + $0xd8] sm:$0xff] %vm603, %v2606
      %2675 = vst.msk [vmem:[#allocation5 + $0xe0] sm:$0xff] %vm603, %v2608
      %2676 = vst.msk [vmem:[#allocation5 + $0xe8] sm:$0xff] %vm603, %v2610
      %2677 = vst.msk [vmem:[#allocation5 + $0xf0] sm:$0xff] %vm603, %v2612
      %2678 = vst.msk [vmem:[#allocation5 + $0xf8] sm:$0xff] %vm603, %v2614
      %v2679 = vld [vmem:[#allocation4 + $0x2] sm:$0xff]
      %v2680 = vld [vmem:[#allocation4 + $0xa] sm:$0xff]
      %v2681 = vld [vmem:[#allocation4 + $0x1a] sm:$0xff]
      %v2682 = vld [vmem:[#allocation4 + $0x22] sm:$0xff]
      %v2683 = vld [vmem:[#allocation4 + $0x32] sm:$0xff]
      %v2684 = vld [vmem:[#allocation4 + $0x3a] sm:$0xff]
      %v2685 = vld [vmem:[#allocation4 + $0x4a] sm:$0xff]
      %v2686 = vld [vmem:[#allocation4 + $0x52] sm:$0xff]
      %v2687 = vld [vmem:[#allocation4 + $0x62] sm:$0xff]
      %v2688 = vld [vmem:[#allocation4 + $0x6a] sm:$0xff]
      %v2689 = vld [vmem:[#allocation4 + $0x7a] sm:$0xff]
      %v2690 = vld [vmem:[#allocation4 + $0x82] sm:$0xff]
      %v2691 = vld [vmem:[#allocation4 + $0x92] sm:$0xff]
      %v2692 = vld [vmem:[#allocation4 + $0x9a] sm:$0xff]
      %v2693 = vld [vmem:[#allocation4 + $0xaa] sm:$0xff]
      %v2694 = vld [vmem:[#allocation4 + $0xb2] sm:$0xff]
      %v2695 = vld [vmem:[#allocation4 + $0xc2] sm:$0xff]
      %v2696 = vld [vmem:[#allocation4 + $0xca] sm:$0xff]
      %v2697 = vld [vmem:[#allocation4 + $0xda] sm:$0xff]
      %v2698 = vld [vmem:[#allocation4 + $0xe2] sm:$0xff]
      %v2699 = vld [vmem:[#allocation4 + $0xf2] sm:$0xff]
      %v2700 = vld [vmem:[#allocation4 + $0xfa] sm:$0xff]
      %v2701 = vld [vmem:[#allocation4 + $0x10a] sm:$0xff]
      %v2702 = vld [vmem:[#allocation4 + $0x112] sm:$0xff]
      %v2703 = vld [vmem:[#allocation4 + $0x122] sm:$0xff]
      %v2704 = vld [vmem:[#allocation4 + $0x12a] sm:$0xff]
      %v2705 = vld [vmem:[#allocation4 + $0x13a] sm:$0xff]
      %v2706 = vld [vmem:[#allocation4 + $0x142] sm:$0xff]
      %v2707 = vld [vmem:[#allocation4 + $0x152] sm:$0xff]
      %v2708 = vld [vmem:[#allocation4 + $0x15a] sm:$0xff]
      %v2709 = vld [vmem:[#allocation4 + $0x16a] sm:$0xff]
      %v2710 = vld [vmem:[#allocation4 + $0x172] sm:$0xff]
      %2743 = vrot.lane.b32.xlu0 %v2679, 16
      %v2744 = vpop.permute.xlu0 %2743
      %2745 = vrot.lane.b32.xlu0 %v2680, 16
      %v2746 = vpop.permute.xlu0 %2745
      %2747 = vrot.lane.b32.xlu0 %v2681, 16
      %v2748 = vpop.permute.xlu0 %2747
      %2749 = vrot.lane.b32.xlu0 %v2682, 16
      %v2750 = vpop.permute.xlu0 %2749
      %2751 = vrot.lane.b32.xlu0 %v2683, 16
      %v2752 = vpop.permute.xlu0 %2751
      %2753 = vrot.lane.b32.xlu0 %v2684, 16
      %v2754 = vpop.permute.xlu0 %2753
      %2755 = vrot.lane.b32.xlu0 %v2685, 16
      %v2756 = vpop.permute.xlu0 %2755
      %2757 = vrot.lane.b32.xlu0 %v2686, 16
      %v2758 = vpop.permute.xlu0 %2757
      %2759 = vrot.lane.b32.xlu0 %v2687, 16
      %v2760 = vpop.permute.xlu0 %2759
      %2761 = vrot.lane.b32.xlu0 %v2688, 16
      %v2762 = vpop.permute.xlu0 %2761
      %2763 = vrot.lane.b32.xlu0 %v2689, 16
      %v2764 = vpop.permute.xlu0 %2763
      %2765 = vrot.lane.b32.xlu0 %v2690, 16
      %v2766 = vpop.permute.xlu0 %2765
      %2767 = vrot.lane.b32.xlu0 %v2691, 16
      %v2768 = vpop.permute.xlu0 %2767
      %2769 = vrot.lane.b32.xlu0 %v2692, 16
      %v2770 = vpop.permute.xlu0 %2769
      %2771 = vrot.lane.b32.xlu0 %v2693, 16
      %v2772 = vpop.permute.xlu0 %2771
      %2773 = vrot.lane.b32.xlu0 %v2694, 16
      %v2774 = vpop.permute.xlu0 %2773
      %2775 = vrot.lane.b32.xlu0 %v2695, 16
      %v2776 = vpop.permute.xlu0 %2775
      %2777 = vrot.lane.b32.xlu0 %v2696, 16
      %v2778 = vpop.permute.xlu0 %2777
      %2779 = vrot.lane.b32.xlu0 %v2697, 16
      %v2780 = vpop.permute.xlu0 %2779
      %2781 = vrot.lane.b32.xlu0 %v2698, 16
      %v2782 = vpop.permute.xlu0 %2781
      %2783 = vrot.lane.b32.xlu0 %v2699, 16
      %v2784 = vpop.permute.xlu0 %2783
      %2785 = vrot.lane.b32.xlu0 %v2700, 16
      %v2786 = vpop.permute.xlu0 %2785
      %2787 = vrot.lane.b32.xlu0 %v2701, 16
      %v2788 = vpop.permute.xlu0 %2787
      %2789 = vrot.lane.b32.xlu0 %v2702, 16
      %v2790 = vpop.permute.xlu0 %2789
      %2791 = vrot.lane.b32.xlu0 %v2703, 16
      %v2792 = vpop.permute.xlu0 %2791
      %2793 = vrot.lane.b32.xlu0 %v2704, 16
      %v2794 = vpop.permute.xlu0 %2793
      %2795 = vrot.lane.b32.xlu0 %v2705, 16
      %v2796 = vpop.permute.xlu0 %2795
      %2797 = vrot.lane.b32.xlu0 %v2706, 16
      %v2798 = vpop.permute.xlu0 %2797
      %2799 = vrot.lane.b32.xlu0 %v2707, 16
      %v2800 = vpop.permute.xlu0 %2799
      %2801 = vrot.lane.b32.xlu0 %v2708, 16
      %v2802 = vpop.permute.xlu0 %2801
      %2803 = vrot.lane.b32.xlu0 %v2709, 16
      %v2804 = vpop.permute.xlu0 %2803
      %2805 = vrot.lane.b32.xlu0 %v2710, 16
      %v2806 = vpop.permute.xlu0 %2805
      %2839 = vst.msk [vmem:[#allocation5] sm:$0xff] %vm796, %v2744
      %2840 = vst.msk [vmem:[#allocation5 + $0x8] sm:$0xff] %vm796, %v2746
      %2841 = vst.msk [vmem:[#allocation5 + $0x10] sm:$0xff] %vm796, %v2748
      %2842 = vst.msk [vmem:[#allocation5 + $0x18] sm:$0xff] %vm796, %v2750
      %2843 = vst.msk [vmem:[#allocation5 + $0x20] sm:$0xff] %vm796, %v2752
      %2844 = vst.msk [vmem:[#allocation5 + $0x28] sm:$0xff] %vm796, %v2754
      %2845 = vst.msk [vmem:[#allocation5 + $0x30] sm:$0xff] %vm796, %v2756
      %2846 = vst.msk [vmem:[#allocation5 + $0x38] sm:$0xff] %vm796, %v2758
      %2847 = vst.msk [vmem:[#allocation5 + $0x40] sm:$0xff] %vm796, %v2760
      %2848 = vst.msk [vmem:[#allocation5 + $0x48] sm:$0xff] %vm796, %v2762
      %2849 = vst.msk [vmem:[#allocation5 + $0x50] sm:$0xff] %vm796, %v2764
      %2850 = vst.msk [vmem:[#allocation5 + $0x58] sm:$0xff] %vm796, %v2766
      %2851 = vst.msk [vmem:[#allocation5 + $0x60] sm:$0xff] %vm796, %v2768
      %2852 = vst.msk [vmem:[#allocation5 + $0x68] sm:$0xff] %vm796, %v2770
      %2853 = vst.msk [vmem:[#allocation5 + $0x70] sm:$0xff] %vm796, %v2772
      %2854 = vst.msk [vmem:[#allocation5 + $0x78] sm:$0xff] %vm796, %v2774
      %2855 = vst.msk [vmem:[#allocation5 + $0x80] sm:$0xff] %vm796, %v2776
      %2856 = vst.msk [vmem:[#allocation5 + $0x88] sm:$0xff] %vm796, %v2778
      %2857 = vst.msk [vmem:[#allocation5 + $0x90] sm:$0xff] %vm796, %v2780
      %2858 = vst.msk [vmem:[#allocation5 + $0x98] sm:$0xff] %vm796, %v2782
      %2859 = vst.msk [vmem:[#allocation5 + $0xa0] sm:$0xff] %vm796, %v2784
      %2860 = vst.msk [vmem:[#allocation5 + $0xa8] sm:$0xff] %vm796, %v2786
      %2861 = vst.msk [vmem:[#allocation5 + $0xb0] sm:$0xff] %vm796, %v2788
      %2862 = vst.msk [vmem:[#allocation5 + $0xb8] sm:$0xff] %vm796, %v2790
      %2863 = vst.msk [vmem:[#allocation5 + $0xc0] sm:$0xff] %vm796, %v2792
      %2864 = vst.msk [vmem:[#allocation5 + $0xc8] sm:$0xff] %vm796, %v2794
      %2865 = vst.msk [vmem:[#allocation5 + $0xd0] sm:$0xff] %vm796, %v2796
      %2866 = vst.msk [vmem:[#allocation5 + $0xd8] sm:$0xff] %vm796, %v2798
      %2867 = vst.msk [vmem:[#allocation5 + $0xe0] sm:$0xff] %vm796, %v2800
      %2868 = vst.msk [vmem:[#allocation5 + $0xe8] sm:$0xff] %vm796, %v2802
      %2869 = vst.msk [vmem:[#allocation5 + $0xf0] sm:$0xff] %vm796, %v2804
      %2870 = vst.msk [vmem:[#allocation5 + $0xf8] sm:$0xff] %vm796, %v2806
      %v2871 = vld [vmem:[%s2390] sm:$0xff]
      %v2872 = vld [vmem:[%s2390 + $0x8] sm:$0xff]
      %v2873 = vld [vmem:[%s2390 + $0x18] sm:$0xff]
      %v2874 = vld [vmem:[%s2390 + $0x20] sm:$0xff]
      %v2875 = vld [vmem:[%s2390 + $0x30] sm:$0xff]
      %v2876 = vld [vmem:[%s2390 + $0x38] sm:$0xff]
      %v2877 = vld [vmem:[%s2390 + $0x48] sm:$0xff]
      %v2878 = vld [vmem:[%s2390 + $0x50] sm:$0xff]
      %v2879 = vld [vmem:[%s2390 + $0x60] sm:$0xff]
      %v2880 = vld [vmem:[%s2390 + $0x68] sm:$0xff]
      %v2881 = vld [vmem:[%s2390 + $0x78] sm:$0xff]
      %v2882 = vld [vmem:[%s2390 + $0x80] sm:$0xff]
      %v2883 = vld [vmem:[%s2390 + $0x90] sm:$0xff]
      %v2884 = vld [vmem:[%s2390 + $0x98] sm:$0xff]
      %v2885 = vld [vmem:[%s2390 + $0xa8] sm:$0xff]
      %v2886 = vld [vmem:[%s2390 + $0xb0] sm:$0xff]
      %v2887 = vld [vmem:[%s2390 + $0xc0] sm:$0xff]
      %v2888 = vld [vmem:[%s2390 + $0xc8] sm:$0xff]
      %v2889 = vld [vmem:[%s2390 + $0xd8] sm:$0xff]
      %v2890 = vld [vmem:[%s2390 + $0xe0] sm:$0xff]
      %v2891 = vld [vmem:[%s2390 + $0xf0] sm:$0xff]
      %v2892 = vld [vmem:[%s2390 + $0xf8] sm:$0xff]
      %v2893 = vld [vmem:[%s2390 + $0x108] sm:$0xff]
      %v2894 = vld [vmem:[%s2390 + $0x110] sm:$0xff]
      %v2895 = vld [vmem:[%s2390 + $0x120] sm:$0xff]
      %v2896 = vld [vmem:[%s2390 + $0x128] sm:$0xff]
      %v2897 = vld [vmem:[%s2390 + $0x138] sm:$0xff]
      %v2898 = vld [vmem:[%s2390 + $0x140] sm:$0xff]
      %v2899 = vld [vmem:[%s2390 + $0x150] sm:$0xff]
      %v2900 = vld [vmem:[%s2390 + $0x158] sm:$0xff]
      %v2901 = vld [vmem:[%s2390 + $0x168] sm:$0xff]
      %v2902 = vld [vmem:[%s2390 + $0x170] sm:$0xff]
      %2935 = vrot.lane.b32.xlu0 %v2871, 24
      %v2936 = vpop.permute.xlu0 %2935
      %2937 = vrot.lane.b32.xlu0 %v2872, 24
      %v2938 = vpop.permute.xlu0 %2937
      %2939 = vrot.lane.b32.xlu0 %v2873, 24
      %v2940 = vpop.permute.xlu0 %2939
      %2941 = vrot.lane.b32.xlu0 %v2874, 24
      %v2942 = vpop.permute.xlu0 %2941
      %2943 = vrot.lane.b32.xlu0 %v2875, 24
      %v2944 = vpop.permute.xlu0 %2943
      %2945 = vrot.lane.b32.xlu0 %v2876, 24
      %v2946 = vpop.permute.xlu0 %2945
      %2947 = vrot.lane.b32.xlu0 %v2877, 24
      %v2948 = vpop.permute.xlu0 %2947
      %2949 = vrot.lane.b32.xlu0 %v2878, 24
      %v2950 = vpop.permute.xlu0 %2949
      %2951 = vrot.lane.b32.xlu0 %v2879, 24
      %v2952 = vpop.permute.xlu0 %2951
      %2953 = vrot.lane.b32.xlu0 %v2880, 24
      %v2954 = vpop.permute.xlu0 %2953
      %2955 = vrot.lane.b32.xlu0 %v2881, 24
      %v2956 = vpop.permute.xlu0 %2955
      %2957 = vrot.lane.b32.xlu0 %v2882, 24
      %v2958 = vpop.permute.xlu0 %2957
      %2959 = vrot.lane.b32.xlu0 %v2883, 24
      %v2960 = vpop.permute.xlu0 %2959
      %2961 = vrot.lane.b32.xlu0 %v2884, 24
      %v2962 = vpop.permute.xlu0 %2961
      %2963 = vrot.lane.b32.xlu0 %v2885, 24
      %v2964 = vpop.permute.xlu0 %2963
      %2965 = vrot.lane.b32.xlu0 %v2886, 24
      %v2966 = vpop.permute.xlu0 %2965
      %2967 = vrot.lane.b32.xlu0 %v2887, 24
      %v2968 = vpop.permute.xlu0 %2967
      %2969 = vrot.lane.b32.xlu0 %v2888, 24
      %v2970 = vpop.permute.xlu0 %2969
      %2971 = vrot.lane.b32.xlu0 %v2889, 24
      %v2972 = vpop.permute.xlu0 %2971
      %2973 = vrot.lane.b32.xlu0 %v2890, 24
      %v2974 = vpop.permute.xlu0 %2973
      %2975 = vrot.lane.b32.xlu0 %v2891, 24
      %v2976 = vpop.permute.xlu0 %2975
      %2977 = vrot.lane.b32.xlu0 %v2892, 24
      %v2978 = vpop.permute.xlu0 %2977
      %2979 = vrot.lane.b32.xlu0 %v2893, 24
      %v2980 = vpop.permute.xlu0 %2979
      %2981 = vrot.lane.b32.xlu0 %v2894, 24
      %v2982 = vpop.permute.xlu0 %2981
      %2983 = vrot.lane.b32.xlu0 %v2895, 24
      %v2984 = vpop.permute.xlu0 %2983
      %2985 = vrot.lane.b32.xlu0 %v2896, 24
      %v2986 = vpop.permute.xlu0 %2985
      %2987 = vrot.lane.b32.xlu0 %v2897, 24
      %v2988 = vpop.permute.xlu0 %2987
      %2989 = vrot.lane.b32.xlu0 %v2898, 24
      %v2990 = vpop.permute.xlu0 %2989
      %2991 = vrot.lane.b32.xlu0 %v2899, 24
      %v2992 = vpop.permute.xlu0 %2991
      %2993 = vrot.lane.b32.xlu0 %v2900, 24
      %v2994 = vpop.permute.xlu0 %2993
      %2995 = vrot.lane.b32.xlu0 %v2901, 24
      %v2996 = vpop.permute.xlu0 %2995
      %2997 = vrot.lane.b32.xlu0 %v2902, 24
      %v2998 = vpop.permute.xlu0 %2997
      %3031 = vst.msk [vmem:[#allocation5] sm:$0xff] %vm989, %v2936
      %3032 = vst.msk [vmem:[#allocation5 + $0x8] sm:$0xff] %vm989, %v2938
      %3033 = vst.msk [vmem:[#allocation5 + $0x10] sm:$0xff] %vm989, %v2940
      %3034 = vst.msk [vmem:[#allocation5 + $0x18] sm:$0xff] %vm989, %v2942
      %3035 = vst.msk [vmem:[#allocation5 + $0x20] sm:$0xff] %vm989, %v2944
      %3036 = vst.msk [vmem:[#allocation5 + $0x28] sm:$0xff] %vm989, %v2946
      %3037 = vst.msk [vmem:[#allocation5 + $0x30] sm:$0xff] %vm989, %v2948
      %3038 = vst.msk [vmem:[#allocation5 + $0x38] sm:$0xff] %vm989, %v2950
      %3039 = vst.msk [vmem:[#allocation5 + $0x40] sm:$0xff] %vm989, %v2952
      %3040 = vst.msk [vmem:[#allocation5 + $0x48] sm:$0xff] %vm989, %v2954
      %3041 = vst.msk [vmem:[#allocation5 + $0x50] sm:$0xff] %vm989, %v2956
      %3042 = vst.msk [vmem:[#allocation5 + $0x58] sm:$0xff] %vm989, %v2958
      %3043 = vst.msk [vmem:[#allocation5 + $0x60] sm:$0xff] %vm989, %v2960
      %3044 = vst.msk [vmem:[#allocation5 + $0x68] sm:$0xff] %vm989, %v2962
      %3045 = vst.msk [vmem:[#allocation5 + $0x70] sm:$0xff] %vm989, %v2964
      %3046 = vst.msk [vmem:[#allocation5 + $0x78] sm:$0xff] %vm989, %v2966
      %3047 = vst.msk [vmem:[#allocation5 + $0x80] sm:$0xff] %vm989, %v2968
      %3048 = vst.msk [vmem:[#allocation5 + $0x88] sm:$0xff] %vm989, %v2970
      %3049 = vst.msk [vmem:[#allocation5 + $0x90] sm:$0xff] %vm989, %v2972
      %3050 = vst.msk [vmem:[#allocation5 + $0x98] sm:$0xff] %vm989, %v2974
      %3051 = vst.msk [vmem:[#allocation5 + $0xa0] sm:$0xff] %vm989, %v2976
      %3052 = vst.msk [vmem:[#allocation5 + $0xa8] sm:$0xff] %vm989, %v2978
      %3053 = vst.msk [vmem:[#allocation5 + $0xb0] sm:$0xff] %vm989, %v2980
      %3054 = vst.msk [vmem:[#allocation5 + $0xb8] sm:$0xff] %vm989, %v2982
      %3055 = vst.msk [vmem:[#allocation5 + $0xc0] sm:$0xff] %vm989, %v2984
      %3056 = vst.msk [vmem:[#allocation5 + $0xc8] sm:$0xff] %vm989, %v2986
      %3057 = vst.msk [vmem:[#allocation5 + $0xd0] sm:$0xff] %vm989, %v2988
      %3058 = vst.msk [vmem:[#allocation5 + $0xd8] sm:$0xff] %vm989, %v2990
      %3059 = vst.msk [vmem:[#allocation5 + $0xe0] sm:$0xff] %vm989, %v2992
      %3060 = vst.msk [vmem:[#allocation5 + $0xe8] sm:$0xff] %vm989, %v2994
      %3061 = vst.msk [vmem:[#allocation5 + $0xf0] sm:$0xff] %vm989, %v2996
      %3062 = vst.msk [vmem:[#allocation5 + $0xf8] sm:$0xff] %vm989, %v2998
      %v3063 = vld [vmem:[%s2390 + $0x1] sm:$0xff]
      %v3064 = vld [vmem:[%s2390 + $0x9] sm:$0xff]
      %v3065 = vld [vmem:[%s2390 + $0x19] sm:$0xff]
      %v3066 = vld [vmem:[%s2390 + $0x21] sm:$0xff]
      %v3067 = vld [vmem:[%s2390 + $0x31] sm:$0xff]
      %v3068 = vld [vmem:[%s2390 + $0x39] sm:$0xff]
      %v3069 = vld [vmem:[%s2390 + $0x49] sm:$0xff]
      %v3070 = vld [vmem:[%s2390 + $0x51] sm:$0xff]
      %v3071 = vld [vmem:[%s2390 + $0x61] sm:$0xff]
      %v3072 = vld [vmem:[%s2390 + $0x69] sm:$0xff]
      %v3073 = vld [vmem:[%s2390 + $0x79] sm:$0xff]
      %v3074 = vld [vmem:[%s2390 + $0x81] sm:$0xff]
      %v3075 = vld [vmem:[%s2390 + $0x91] sm:$0xff]
      %v3076 = vld [vmem:[%s2390 + $0x99] sm:$0xff]
      %v3077 = vld [vmem:[%s2390 + $0xa9] sm:$0xff]
      %v3078 = vld [vmem:[%s2390 + $0xb1] sm:$0xff]
      %v3079 = vld [vmem:[%s2390 + $0xc1] sm:$0xff]
      %v3080 = vld [vmem:[%s2390 + $0xc9] sm:$0xff]
      %v3081 = vld [vmem:[%s2390 + $0xd9] sm:$0xff]
      %v3082 = vld [vmem:[%s2390 + $0xe1] sm:$0xff]
      %v3083 = vld [vmem:[%s2390 + $0xf1] sm:$0xff]
      %v3084 = vld [vmem:[%s2390 + $0xf9] sm:$0xff]
      %v3085 = vld [vmem:[%s2390 + $0x109] sm:$0xff]
      %v3086 = vld [vmem:[%s2390 + $0x111] sm:$0xff]
      %v3087 = vld [vmem:[%s2390 + $0x121] sm:$0xff]
      %v3088 = vld [vmem:[%s2390 + $0x129] sm:$0xff]
      %v3089 = vld [vmem:[%s2390 + $0x139] sm:$0xff]
      %v3090 = vld [vmem:[%s2390 + $0x141] sm:$0xff]
      %v3091 = vld [vmem:[%s2390 + $0x151] sm:$0xff]
      %v3092 = vld [vmem:[%s2390 + $0x159] sm:$0xff]
      %v3093 = vld [vmem:[%s2390 + $0x169] sm:$0xff]
      %v3094 = vld [vmem:[%s2390 + $0x171] sm:$0xff]
      %3127 = vrot.lane.b32.xlu0 %v3063, 32
      %v3128 = vpop.permute.xlu0 %3127
      %3129 = vrot.lane.b32.xlu0 %v3064, 32
      %v3130 = vpop.permute.xlu0 %3129
      %3131 = vrot.lane.b32.xlu0 %v3065, 32
      %v3132 = vpop.permute.xlu0 %3131
      %3133 = vrot.lane.b32.xlu0 %v3066, 32
      %v3134 = vpop.permute.xlu0 %3133
      %3135 = vrot.lane.b32.xlu0 %v3067, 32
      %v3136 = vpop.permute.xlu0 %3135
      %3137 = vrot.lane.b32.xlu0 %v3068, 32
      %v3138 = vpop.permute.xlu0 %3137
      %3139 = vrot.lane.b32.xlu0 %v3069, 32
      %v3140 = vpop.permute.xlu0 %3139
      %3141 = vrot.lane.b32.xlu0 %v3070, 32
      %v3142 = vpop.permute.xlu0 %3141
      %3143 = vrot.lane.b32.xlu0 %v3071, 32
      %v3144 = vpop.permute.xlu0 %3143
      %3145 = vrot.lane.b32.xlu0 %v3072, 32
      %v3146 = vpop.permute.xlu0 %3145
      %3147 = vrot.lane.b32.xlu0 %v3073, 32
      %v3148 = vpop.permute.xlu0 %3147
      %3149 = vrot.lane.b32.xlu0 %v3074, 32
      %v3150 = vpop.permute.xlu0 %3149
      %3151 = vrot.lane.b32.xlu0 %v3075, 32
      %v3152 = vpop.permute.xlu0 %3151
      %3153 = vrot.lane.b32.xlu0 %v3076, 32
      %v3154 = vpop.permute.xlu0 %3153
      %3155 = vrot.lane.b32.xlu0 %v3077, 32
      %v3156 = vpop.permute.xlu0 %3155
      %3157 = vrot.lane.b32.xlu0 %v3078, 32
      %v3158 = vpop.permute.xlu0 %3157
      %3159 = vrot.lane.b32.xlu0 %v3079, 32
      %v3160 = vpop.permute.xlu0 %3159
      %3161 = vrot.lane.b32.xlu0 %v3080, 32
      %v3162 = vpop.permute.xlu0 %3161
      %3163 = vrot.lane.b32.xlu0 %v3081, 32
      %v3164 = vpop.permute.xlu0 %3163
      %3165 = vrot.lane.b32.xlu0 %v3082, 32
      %v3166 = vpop.permute.xlu0 %3165
      %3167 = vrot.lane.b32.xlu0 %v3083, 32
      %v3168 = vpop.permute.xlu0 %3167
      %3169 = vrot.lane.b32.xlu0 %v3084, 32
      %v3170 = vpop.permute.xlu0 %3169
      %3171 = vrot.lane.b32.xlu0 %v3085, 32
      %v3172 = vpop.permute.xlu0 %3171
      %3173 = vrot.lane.b32.xlu0 %v3086, 32
      %v3174 = vpop.permute.xlu0 %3173
      %3175 = vrot.lane.b32.xlu0 %v3087, 32
      %v3176 = vpop.permute.xlu0 %3175
      %3177 = vrot.lane.b32.xlu0 %v3088, 32
      %v3178 = vpop.permute.xlu0 %3177
      %3179 = vrot.lane.b32.xlu0 %v3089, 32
      %v3180 = vpop.permute.xlu0 %3179
      %3181 = vrot.lane.b32.xlu0 %v3090, 32
      %v3182 = vpop.permute.xlu0 %3181
      %3183 = vrot.lane.b32.xlu0 %v3091, 32
      %v3184 = vpop.permute.xlu0 %3183
      %3185 = vrot.lane.b32.xlu0 %v3092, 32
      %v3186 = vpop.permute.xlu0 %3185
      %3187 = vrot.lane.b32.xlu0 %v3093, 32
      %v3188 = vpop.permute.xlu0 %3187
      %3189 = vrot.lane.b32.xlu0 %v3094, 32
      %v3190 = vpop.permute.xlu0 %3189
      %3223 = vst.msk [vmem:[#allocation5] sm:$0xff] %vm1182, %v3128
      %3224 = vst.msk [vmem:[#allocation5 + $0x8] sm:$0xff] %vm1182, %v3130
      %3225 = vst.msk [vmem:[#allocation5 + $0x10] sm:$0xff] %vm1182, %v3132
      %3226 = vst.msk [vmem:[#allocation5 + $0x18] sm:$0xff] %vm1182, %v3134
      %3227 = vst.msk [vmem:[#allocation5 + $0x20] sm:$0xff] %vm1182, %v3136
      %3228 = vst.msk [vmem:[#allocation5 + $0x28] sm:$0xff] %vm1182, %v3138
      %3229 = vst.msk [vmem:[#allocation5 + $0x30] sm:$0xff] %vm1182, %v3140
      %3230 = vst.msk [vmem:[#allocation5 + $0x38] sm:$0xff] %vm1182, %v3142
      %3231 = vst.msk [vmem:[#allocation5 + $0x40] sm:$0xff] %vm1182, %v3144
      %3232 = vst.msk [vmem:[#allocation5 + $0x48] sm:$0xff] %vm1182, %v3146
      %3233 = vst.msk [vmem:[#allocation5 + $0x50] sm:$0xff] %vm1182, %v3148
      %3234 = vst.msk [vmem:[#allocation5 + $0x58] sm:$0xff] %vm1182, %v3150
      %3235 = vst.msk [vmem:[#allocation5 + $0x60] sm:$0xff] %vm1182, %v3152
      %3236 = vst.msk [vmem:[#allocation5 + $0x68] sm:$0xff] %vm1182, %v3154
      %3237 = vst.msk [vmem:[#allocation5 + $0x70] sm:$0xff] %vm1182, %v3156
      %3238 = vst.msk [vmem:[#allocation5 + $0x78] sm:$0xff] %vm1182, %v3158
      %3239 = vst.msk [vmem:[#allocation5 + $0x80] sm:$0xff] %vm1182, %v3160
      %3240 = vst.msk [vmem:[#allocation5 + $0x88] sm:$0xff] %vm1182, %v3162
      %3241 = vst.msk [vmem:[#allocation5 + $0x90] sm:$0xff] %vm1182, %v3164
      %3242 = vst.msk [vmem:[#allocation5 + $0x98] sm:$0xff] %vm1182, %v3166
      %3243 = vst.msk [vmem:[#allocation5 + $0xa0] sm:$0xff] %vm1182, %v3168
      %3244 = vst.msk [vmem:[#allocation5 + $0xa8] sm:$0xff] %vm1182, %v3170
      %3245 = vst.msk [vmem:[#allocation5 + $0xb0] sm:$0xff] %vm1182, %v3172
      %3246 = vst.msk [vmem:[#allocation5 + $0xb8] sm:$0xff] %vm1182, %v3174
      %3247 = vst.msk [vmem:[#allocation5 + $0xc0] sm:$0xff] %vm1182, %v3176
      %3248 = vst.msk [vmem:[#allocation5 + $0xc8] sm:$0xff] %vm1182, %v3178
      %3249 = vst.msk [vmem:[#allocation5 + $0xd0] sm:$0xff] %vm1182, %v3180
      %3250 = vst.msk [vmem:[#allocation5 + $0xd8] sm:$0xff] %vm1182, %v3182
      %3251 = vst.msk [vmem:[#allocation5 + $0xe0] sm:$0xff] %vm1182, %v3184
      %3252 = vst.msk [vmem:[#allocation5 + $0xe8] sm:$0xff] %vm1182, %v3186
      %3253 = vst.msk [vmem:[#allocation5 + $0xf0] sm:$0xff] %vm1182, %v3188
      %3254 = vst.msk [vmem:[#allocation5 + $0xf8] sm:$0xff] %vm1182, %v3190
      %v3255 = vld [vmem:[%s2390 + $0x2] sm:$0xff]
      %v3256 = vld [vmem:[%s2390 + $0xa] sm:$0xff]
      %v3257 = vld [vmem:[%s2390 + $0x1a] sm:$0xff]
      %v3258 = vld [vmem:[%s2390 + $0x22] sm:$0xff]
      %v3259 = vld [vmem:[%s2390 + $0x32] sm:$0xff]
      %v3260 = vld [vmem:[%s2390 + $0x3a] sm:$0xff]
      %v3261 = vld [vmem:[%s2390 + $0x4a] sm:$0xff]
      %v3262 = vld [vmem:[%s2390 + $0x52] sm:$0xff]
      %v3263 = vld [vmem:[%s2390 + $0x62] sm:$0xff]
      %v3264 = vld [vmem:[%s2390 + $0x6a] sm:$0xff]
      %v3265 = vld [vmem:[%s2390 + $0x7a] sm:$0xff]
      %v3266 = vld [vmem:[%s2390 + $0x82] sm:$0xff]
      %v3267 = vld [vmem:[%s2390 + $0x92] sm:$0xff]
      %v3268 = vld [vmem:[%s2390 + $0x9a] sm:$0xff]
      %v3269 = vld [vmem:[%s2390 + $0xaa] sm:$0xff]
      %v3270 = vld [vmem:[%s2390 + $0xb2] sm:$0xff]
      %v3271 = vld [vmem:[%s2390 + $0xc2] sm:$0xff]
      %v3272 = vld [vmem:[%s2390 + $0xca] sm:$0xff]
      %v3273 = vld [vmem:[%s2390 + $0xda] sm:$0xff]
      %v3274 = vld [vmem:[%s2390 + $0xe2] sm:$0xff]
      %v3275 = vld [vmem:[%s2390 + $0xf2] sm:$0xff]
      %v3276 = vld [vmem:[%s2390 + $0xfa] sm:$0xff]
      %v3277 = vld [vmem:[%s2390 + $0x10a] sm:$0xff]
      %v3278 = vld [vmem:[%s2390 + $0x112] sm:$0xff]
      %v3279 = vld [vmem:[%s2390 + $0x122] sm:$0xff]
      %v3280 = vld [vmem:[%s2390 + $0x12a] sm:$0xff]
      %v3281 = vld [vmem:[%s2390 + $0x13a] sm:$0xff]
      %v3282 = vld [vmem:[%s2390 + $0x142] sm:$0xff]
      %v3283 = vld [vmem:[%s2390 + $0x152] sm:$0xff]
      %v3284 = vld [vmem:[%s2390 + $0x15a] sm:$0xff]
      %v3285 = vld [vmem:[%s2390 + $0x16a] sm:$0xff]
      %v3286 = vld [vmem:[%s2390 + $0x172] sm:$0xff]
      %3319 = vrot.lane.b32.xlu0 %v3255, 40
      %v3320 = vpop.permute.xlu0 %3319
      %3321 = vrot.lane.b32.xlu0 %v3256, 40
      %v3322 = vpop.permute.xlu0 %3321
      %3323 = vrot.lane.b32.xlu0 %v3257, 40
      %v3324 = vpop.permute.xlu0 %3323
      %3325 = vrot.lane.b32.xlu0 %v3258, 40
      %v3326 = vpop.permute.xlu0 %3325
      %3327 = vrot.lane.b32.xlu0 %v3259, 40
      %v3328 = vpop.permute.xlu0 %3327
      %3329 = vrot.lane.b32.xlu0 %v3260, 40
      %v3330 = vpop.permute.xlu0 %3329
      %3331 = vrot.lane.b32.xlu0 %v3261, 40
      %v3332 = vpop.permute.xlu0 %3331
      %3333 = vrot.lane.b32.xlu0 %v3262, 40
      %v3334 = vpop.permute.xlu0 %3333
      %3335 = vrot.lane.b32.xlu0 %v3263, 40
      %v3336 = vpop.permute.xlu0 %3335
      %3337 = vrot.lane.b32.xlu0 %v3264, 40
      %v3338 = vpop.permute.xlu0 %3337
      %3339 = vrot.lane.b32.xlu0 %v3265, 40
      %v3340 = vpop.permute.xlu0 %3339
      %3341 = vrot.lane.b32.xlu0 %v3266, 40
      %v3342 = vpop.permute.xlu0 %3341
      %3343 = vrot.lane.b32.xlu0 %v3267, 40
      %v3344 = vpop.permute.xlu0 %3343
      %3345 = vrot.lane.b32.xlu0 %v3268, 40
      %v3346 = vpop.permute.xlu0 %3345
      %3347 = vrot.lane.b32.xlu0 %v3269, 40
      %v3348 = vpop.permute.xlu0 %3347
      %3349 = vrot.lane.b32.xlu0 %v3270, 40
      %v3350 = vpop.permute.xlu0 %3349
      %3351 = vrot.lane.b32.xlu0 %v3271, 40
      %v3352 = vpop.permute.xlu0 %3351
      %3353 = vrot.lane.b32.xlu0 %v3272, 40
      %v3354 = vpop.permute.xlu0 %3353
      %3355 = vrot.lane.b32.xlu0 %v3273, 40
      %v3356 = vpop.permute.xlu0 %3355
      %3357 = vrot.lane.b32.xlu0 %v3274, 40
      %v3358 = vpop.permute.xlu0 %3357
      %3359 = vrot.lane.b32.xlu0 %v3275, 40
      %v3360 = vpop.permute.xlu0 %3359
      %3361 = vrot.lane.b32.xlu0 %v3276, 40
      %v3362 = vpop.permute.xlu0 %3361
      %3363 = vrot.lane.b32.xlu0 %v3277, 40
      %v3364 = vpop.permute.xlu0 %3363
      %3365 = vrot.lane.b32.xlu0 %v3278, 40
      %v3366 = vpop.permute.xlu0 %3365
      %3367 = vrot.lane.b32.xlu0 %v3279, 40
      %v3368 = vpop.permute.xlu0 %3367
      %3369 = vrot.lane.b32.xlu0 %v3280, 40
      %v3370 = vpop.permute.xlu0 %3369
      %3371 = vrot.lane.b32.xlu0 %v3281, 40
      %v3372 = vpop.permute.xlu0 %3371
      %3373 = vrot.lane.b32.xlu0 %v3282, 40
      %v3374 = vpop.permute.xlu0 %3373
      %3375 = vrot.lane.b32.xlu0 %v3283, 40
      %v3376 = vpop.permute.xlu0 %3375
      %3377 = vrot.lane.b32.xlu0 %v3284, 40
      %v3378 = vpop.permute.xlu0 %3377
      %3379 = vrot.lane.b32.xlu0 %v3285, 40
      %v3380 = vpop.permute.xlu0 %3379
      %3381 = vrot.lane.b32.xlu0 %v3286, 40
      %v3382 = vpop.permute.xlu0 %3381
      %3415 = vst.msk [vmem:[#allocation5] sm:$0xff] %vm1375, %v3320
      %3416 = vst.msk [vmem:[#allocation5 + $0x8] sm:$0xff] %vm1375, %v3322
      %3417 = vst.msk [vmem:[#allocation5 + $0x10] sm:$0xff] %vm1375, %v3324
      %3418 = vst.msk [vmem:[#allocation5 + $0x18] sm:$0xff] %vm1375, %v3326
      %3419 = vst.msk [vmem:[#allocation5 + $0x20] sm:$0xff] %vm1375, %v3328
      %3420 = vst.msk [vmem:[#allocation5 + $0x28] sm:$0xff] %vm1375, %v3330
      %3421 = vst.msk [vmem:[#allocation5 + $0x30] sm:$0xff] %vm1375, %v3332
      %3422 = vst.msk [vmem:[#allocation5 + $0x38] sm:$0xff] %vm1375, %v3334
      %3423 = vst.msk [vmem:[#allocation5 + $0x40] sm:$0xff] %vm1375, %v3336
      %3424 = vst.msk [vmem:[#allocation5 + $0x48] sm:$0xff] %vm1375, %v3338
      %3425 = vst.msk [vmem:[#allocation5 + $0x50] sm:$0xff] %vm1375, %v3340
      %3426 = vst.msk [vmem:[#allocation5 + $0x58] sm:$0xff] %vm1375, %v3342
      %3427 = vst.msk [vmem:[#allocation5 + $0x60] sm:$0xff] %vm1375, %v3344
      %3428 = vst.msk [vmem:[#allocation5 + $0x68] sm:$0xff] %vm1375, %v3346
      %3429 = vst.msk [vmem:[#allocation5 + $0x70] sm:$0xff] %vm1375, %v3348
      %3430 = vst.msk [vmem:[#allocation5 + $0x78] sm:$0xff] %vm1375, %v3350
      %3431 = vst.msk [vmem:[#allocation5 + $0x80] sm:$0xff] %vm1375, %v3352
      %3432 = vst.msk [vmem:[#allocation5 + $0x88] sm:$0xff] %vm1375, %v3354
      %3433 = vst.msk [vmem:[#allocation5 + $0x90] sm:$0xff] %vm1375, %v3356
      %3434 = vst.msk [vmem:[#allocation5 + $0x98] sm:$0xff] %vm1375, %v3358
      %3435 = vst.msk [vmem:[#allocation5 + $0xa0] sm:$0xff] %vm1375, %v3360
      %3436 = vst.msk [vmem:[#allocation5 + $0xa8] sm:$0xff] %vm1375, %v3362
      %3437 = vst.msk [vmem:[#allocation5 + $0xb0] sm:$0xff] %vm1375, %v3364
      %3438 = vst.msk [vmem:[#allocation5 + $0xb8] sm:$0xff] %vm1375, %v3366
      %3439 = vst.msk [vmem:[#allocation5 + $0xc0] sm:$0xff] %vm1375, %v3368
      %3440 = vst.msk [vmem:[#allocation5 + $0xc8] sm:$0xff] %vm1375, %v3370
      %3441 = vst.msk [vmem:[#allocation5 + $0xd0] sm:$0xff] %vm1375, %v3372
      %3442 = vst.msk [vmem:[#allocation5 + $0xd8] sm:$0xff] %vm1375, %v3374
      %3443 = vst.msk [vmem:[#allocation5 + $0xe0] sm:$0xff] %vm1375, %v3376
      %3444 = vst.msk [vmem:[#allocation5 + $0xe8] sm:$0xff] %vm1375, %v3378
      %3445 = vst.msk [vmem:[#allocation5 + $0xf0] sm:$0xff] %vm1375, %v3380
      %3446 = vst.msk [vmem:[#allocation5 + $0xf8] sm:$0xff] %vm1375, %v3382
      %s3447 = scalar_lea.vmem [#allocation4], 48
      %v3448 = vld [vmem:[%s3447] sm:$0xff]
      %v3449 = vld [vmem:[%s3447 + $0x8] sm:$0xff]
      %v3450 = vld [vmem:[%s3447 + $0x18] sm:$0xff]
      %v3451 = vld [vmem:[%s3447 + $0x20] sm:$0xff]
      %v3452 = vld [vmem:[%s3447 + $0x30] sm:$0xff]
      %v3453 = vld [vmem:[%s3447 + $0x38] sm:$0xff]
      %v3454 = vld [vmem:[%s3447 + $0x48] sm:$0xff]
      %v3455 = vld [vmem:[%s3447 + $0x50] sm:$0xff]
      %v3456 = vld [vmem:[%s3447 + $0x60] sm:$0xff]
      %v3457 = vld [vmem:[%s3447 + $0x68] sm:$0xff]
      %v3458 = vld [vmem:[%s3447 + $0x78] sm:$0xff]
      %v3459 = vld [vmem:[%s3447 + $0x80] sm:$0xff]
      %v3460 = vld [vmem:[%s3447 + $0x90] sm:$0xff]
      %v3461 = vld [vmem:[%s3447 + $0x98] sm:$0xff]
      %v3462 = vld [vmem:[%s3447 + $0xa8] sm:$0xff]
      %v3463 = vld [vmem:[%s3447 + $0xb0] sm:$0xff]
      %v3464 = vld [vmem:[%s3447 + $0xc0] sm:$0xff]
      %v3465 = vld [vmem:[%s3447 + $0xc8] sm:$0xff]
      %v3466 = vld [vmem:[%s3447 + $0xd8] sm:$0xff]
      %v3467 = vld [vmem:[%s3447 + $0xe0] sm:$0xff]
      %v3468 = vld [vmem:[%s3447 + $0xf0] sm:$0xff]
      %v3469 = vld [vmem:[%s3447 + $0xf8] sm:$0xff]
      %v3470 = vld [vmem:[%s3447 + $0x108] sm:$0xff]
      %v3471 = vld [vmem:[%s3447 + $0x110] sm:$0xff]
      %v3472 = vld [vmem:[%s3447 + $0x120] sm:$0xff]
      %v3473 = vld [vmem:[%s3447 + $0x128] sm:$0xff]
      %v3474 = vld [vmem:[%s3447 + $0x138] sm:$0xff]
      %v3475 = vld [vmem:[%s3447 + $0x140] sm:$0xff]
      %v3476 = vld [vmem:[%s3447 + $0x150] sm:$0xff]
      %v3477 = vld [vmem:[%s3447 + $0x158] sm:$0xff]
      %v3478 = vld [vmem:[%s3447 + $0x168] sm:$0xff]
      %v3479 = vld [vmem:[%s3447 + $0x170] sm:$0xff]
      %3512 = vrot.lane.b32.xlu0 %v3448, 48
      %v3513 = vpop.permute.xlu0 %3512
      %3514 = vrot.lane.b32.xlu0 %v3449, 48
      %v3515 = vpop.permute.xlu0 %3514
      %3516 = vrot.lane.b32.xlu0 %v3450, 48
      %v3517 = vpop.permute.xlu0 %3516
      %3518 = vrot.lane.b32.xlu0 %v3451, 48
      %v3519 = vpop.permute.xlu0 %3518
      %3520 = vrot.lane.b32.xlu0 %v3452, 48
      %v3521 = vpop.permute.xlu0 %3520
      %3522 = vrot.lane.b32.xlu0 %v3453, 48
      %v3523 = vpop.permute.xlu0 %3522
      %3524 = vrot.lane.b32.xlu0 %v3454, 48
      %v3525 = vpop.permute.xlu0 %3524
      %3526 = vrot.lane.b32.xlu0 %v3455, 48
      %v3527 = vpop.permute.xlu0 %3526
      %3528 = vrot.lane.b32.xlu0 %v3456, 48
      %v3529 = vpop.permute.xlu0 %3528
      %3530 = vrot.lane.b32.xlu0 %v3457, 48
      %v3531 = vpop.permute.xlu0 %3530
      %3532 = vrot.lane.b32.xlu0 %v3458, 48
      %v3533 = vpop.permute.xlu0 %3532
      %3534 = vrot.lane.b32.xlu0 %v3459, 48
      %v3535 = vpop.permute.xlu0 %3534
      %3536 = vrot.lane.b32.xlu0 %v3460, 48
      %v3537 = vpop.permute.xlu0 %3536
      %3538 = vrot.lane.b32.xlu0 %v3461, 48
      %v3539 = vpop.permute.xlu0 %3538
      %3540 = vrot.lane.b32.xlu0 %v3462, 48
      %v3541 = vpop.permute.xlu0 %3540
      %3542 = vrot.lane.b32.xlu0 %v3463, 48
      %v3543 = vpop.permute.xlu0 %3542
      %3544 = vrot.lane.b32.xlu0 %v3464, 48
      %v3545 = vpop.permute.xlu0 %3544
      %3546 = vrot.lane.b32.xlu0 %v3465, 48
      %v3547 = vpop.permute.xlu0 %3546
      %3548 = vrot.lane.b32.xlu0 %v3466, 48
      %v3549 = vpop.permute.xlu0 %3548
      %3550 = vrot.lane.b32.xlu0 %v3467, 48
      %v3551 = vpop.permute.xlu0 %3550
      %3552 = vrot.lane.b32.xlu0 %v3468, 48
      %v3553 = vpop.permute.xlu0 %3552
      %3554 = vrot.lane.b32.xlu0 %v3469, 48
      %v3555 = vpop.permute.xlu0 %3554
      %3556 = vrot.lane.b32.xlu0 %v3470, 48
      %v3557 = vpop.permute.xlu0 %3556
      %3558 = vrot.lane.b32.xlu0 %v3471, 48
      %v3559 = vpop.permute.xlu0 %3558
      %3560 = vrot.lane.b32.xlu0 %v3472, 48
      %v3561 = vpop.permute.xlu0 %3560
      %3562 = vrot.lane.b32.xlu0 %v3473, 48
      %v3563 = vpop.permute.xlu0 %3562
      %3564 = vrot.lane.b32.xlu0 %v3474, 48
      %v3565 = vpop.permute.xlu0 %3564
      %3566 = vrot.lane.b32.xlu0 %v3475, 48
      %v3567 = vpop.permute.xlu0 %3566
      %3568 = vrot.lane.b32.xlu0 %v3476, 48
      %v3569 = vpop.permute.xlu0 %3568
      %3570 = vrot.lane.b32.xlu0 %v3477, 48
      %v3571 = vpop.permute.xlu0 %3570
      %3572 = vrot.lane.b32.xlu0 %v3478, 48
      %v3573 = vpop.permute.xlu0 %3572
      %3574 = vrot.lane.b32.xlu0 %v3479, 48
      %v3575 = vpop.permute.xlu0 %3574
      %3608 = vst.msk [vmem:[#allocation5] sm:$0xff] %vm1569, %v3513
      %3609 = vst.msk [vmem:[#allocation5 + $0x8] sm:$0xff] %vm1569, %v3515
      %3610 = vst.msk [vmem:[#allocation5 + $0x10] sm:$0xff] %vm1569, %v3517
      %3611 = vst.msk [vmem:[#allocation5 + $0x18] sm:$0xff] %vm1569, %v3519
      %3612 = vst.msk [vmem:[#allocation5 + $0x20] sm:$0xff] %vm1569, %v3521
      %3613 = vst.msk [vmem:[#allocation5 + $0x28] sm:$0xff] %vm1569, %v3523
      %3614 = vst.msk [vmem:[#allocation5 + $0x30] sm:$0xff] %vm1569, %v3525
      %3615 = vst.msk [vmem:[#allocation5 + $0x38] sm:$0xff] %vm1569, %v3527
      %3616 = vst.msk [vmem:[#allocation5 + $0x40] sm:$0xff] %vm1569, %v3529
      %3617 = vst.msk [vmem:[#allocation5 + $0x48] sm:$0xff] %vm1569, %v3531
      %3618 = vst.msk [vmem:[#allocation5 + $0x50] sm:$0xff] %vm1569, %v3533
      %3619 = vst.msk [vmem:[#allocation5 + $0x58] sm:$0xff] %vm1569, %v3535
      %3620 = vst.msk [vmem:[#allocation5 + $0x60] sm:$0xff] %vm1569, %v3537
      %3621 = vst.msk [vmem:[#allocation5 + $0x68] sm:$0xff] %vm1569, %v3539
      %3622 = vst.msk [vmem:[#allocation5 + $0x70] sm:$0xff] %vm1569, %v3541
      %3623 = vst.msk [vmem:[#allocation5 + $0x78] sm:$0xff] %vm1569, %v3543
      %3624 = vst.msk [vmem:[#allocation5 + $0x80] sm:$0xff] %vm1569, %v3545
      %3625 = vst.msk [vmem:[#allocation5 + $0x88] sm:$0xff] %vm1569, %v3547
      %3626 = vst.msk [vmem:[#allocation5 + $0x90] sm:$0xff] %vm1569, %v3549
      %3627 = vst.msk [vmem:[#allocation5 + $0x98] sm:$0xff] %vm1569, %v3551
      %3628 = vst.msk [vmem:[#allocation5 + $0xa0] sm:$0xff] %vm1569, %v3553
      %3629 = vst.msk [vmem:[#allocation5 + $0xa8] sm:$0xff] %vm1569, %v3555
      %3630 = vst.msk [vmem:[#allocation5 + $0xb0] sm:$0xff] %vm1569, %v3557
      %3631 = vst.msk [vmem:[#allocation5 + $0xb8] sm:$0xff] %vm1569, %v3559
      %3632 = vst.msk [vmem:[#allocation5 + $0xc0] sm:$0xff] %vm1569, %v3561
      %3633 = vst.msk [vmem:[#allocation5 + $0xc8] sm:$0xff] %vm1569, %v3563
      %3634 = vst.msk [vmem:[#allocation5 + $0xd0] sm:$0xff] %vm1569, %v3565
      %3635 = vst.msk [vmem:[#allocation5 + $0xd8] sm:$0xff] %vm1569, %v3567
      %3636 = vst.msk [vmem:[#allocation5 + $0xe0] sm:$0xff] %vm1569, %v3569
      %3637 = vst.msk [vmem:[#allocation5 + $0xe8] sm:$0xff] %vm1569, %v3571
      %3638 = vst.msk [vmem:[#allocation5 + $0xf0] sm:$0xff] %vm1569, %v3573
      %3639 = vst.msk [vmem:[#allocation5 + $0xf8] sm:$0xff] %vm1569, %v3575
      %v3640 = vld [vmem:[%s3447 + $0x1] sm:$0xff]
      %v3641 = vld [vmem:[%s3447 + $0x9] sm:$0xff]
      %v3642 = vld [vmem:[%s3447 + $0x19] sm:$0xff]
      %v3643 = vld [vmem:[%s3447 + $0x21] sm:$0xff]
      %v3644 = vld [vmem:[%s3447 + $0x31] sm:$0xff]
      %v3645 = vld [vmem:[%s3447 + $0x39] sm:$0xff]
      %v3646 = vld [vmem:[%s3447 + $0x49] sm:$0xff]
      %v3647 = vld [vmem:[%s3447 + $0x51] sm:$0xff]
      %v3648 = vld [vmem:[%s3447 + $0x61] sm:$0xff]
      %v3649 = vld [vmem:[%s3447 + $0x69] sm:$0xff]
      %v3650 = vld [vmem:[%s3447 + $0x79] sm:$0xff]
      %v3651 = vld [vmem:[%s3447 + $0x81] sm:$0xff]
      %v3652 = vld [vmem:[%s3447 + $0x91] sm:$0xff]
      %v3653 = vld [vmem:[%s3447 + $0x99] sm:$0xff]
      %v3654 = vld [vmem:[%s3447 + $0xa9] sm:$0xff]
      %v3655 = vld [vmem:[%s3447 + $0xb1] sm:$0xff]
      %v3656 = vld [vmem:[%s3447 + $0xc1] sm:$0xff]
      %v3657 = vld [vmem:[%s3447 + $0xc9] sm:$0xff]
      %v3658 = vld [vmem:[%s3447 + $0xd9] sm:$0xff]
      %v3659 = vld [vmem:[%s3447 + $0xe1] sm:$0xff]
      %v3660 = vld [vmem:[%s3447 + $0xf1] sm:$0xff]
      %v3661 = vld [vmem:[%s3447 + $0xf9] sm:$0xff]
      %v3662 = vld [vmem:[%s3447 + $0x109] sm:$0xff]
      %v3663 = vld [vmem:[%s3447 + $0x111] sm:$0xff]
      %v3664 = vld [vmem:[%s3447 + $0x121] sm:$0xff]
      %v3665 = vld [vmem:[%s3447 + $0x129] sm:$0xff]
      %v3666 = vld [vmem:[%s3447 + $0x139] sm:$0xff]
      %v3667 = vld [vmem:[%s3447 + $0x141] sm:$0xff]
      %v3668 = vld [vmem:[%s3447 + $0x151] sm:$0xff]
      %v3669 = vld [vmem:[%s3447 + $0x159] sm:$0xff]
      %v3670 = vld [vmem:[%s3447 + $0x169] sm:$0xff]
      %v3671 = vld [vmem:[%s3447 + $0x171] sm:$0xff]
      %3704 = vrot.lane.b32.xlu0 %v3640, 56
      %v3705 = vpop.permute.xlu0 %3704
      %3706 = vrot.lane.b32.xlu0 %v3641, 56
      %v3707 = vpop.permute.xlu0 %3706
      %3708 = vrot.lane.b32.xlu0 %v3642, 56
      %v3709 = vpop.permute.xlu0 %3708
      %3710 = vrot.lane.b32.xlu0 %v3643, 56
      %v3711 = vpop.permute.xlu0 %3710
      %3712 = vrot.lane.b32.xlu0 %v3644, 56
      %v3713 = vpop.permute.xlu0 %3712
      %3714 = vrot.lane.b32.xlu0 %v3645, 56
      %v3715 = vpop.permute.xlu0 %3714
      %3716 = vrot.lane.b32.xlu0 %v3646, 56
      %v3717 = vpop.permute.xlu0 %3716
      %3718 = vrot.lane.b32.xlu0 %v3647, 56
      %v3719 = vpop.permute.xlu0 %3718
      %3720 = vrot.lane.b32.xlu0 %v3648, 56
      %v3721 = vpop.permute.xlu0 %3720
      %3722 = vrot.lane.b32.xlu0 %v3649, 56
      %v3723 = vpop.permute.xlu0 %3722
      %3724 = vrot.lane.b32.xlu0 %v3650, 56
      %v3725 = vpop.permute.xlu0 %3724
      %3726 = vrot.lane.b32.xlu0 %v3651, 56
      %v3727 = vpop.permute.xlu0 %3726
      %3728 = vrot.lane.b32.xlu0 %v3652, 56
      %v3729 = vpop.permute.xlu0 %3728
      %3730 = vrot.lane.b32.xlu0 %v3653, 56
      %v3731 = vpop.permute.xlu0 %3730
      %3732 = vrot.lane.b32.xlu0 %v3654, 56
      %v3733 = vpop.permute.xlu0 %3732
      %3734 = vrot.lane.b32.xlu0 %v3655, 56
      %v3735 = vpop.permute.xlu0 %3734
      %3736 = vrot.lane.b32.xlu0 %v3656, 56
      %v3737 = vpop.permute.xlu0 %3736
      %3738 = vrot.lane.b32.xlu0 %v3657, 56
      %v3739 = vpop.permute.xlu0 %3738
      %3740 = vrot.lane.b32.xlu0 %v3658, 56
      %v3741 = vpop.permute.xlu0 %3740
      %3742 = vrot.lane.b32.xlu0 %v3659, 56
      %v3743 = vpop.permute.xlu0 %3742
      %3744 = vrot.lane.b32.xlu0 %v3660, 56
      %v3745 = vpop.permute.xlu0 %3744
      %3746 = vrot.lane.b32.xlu0 %v3661, 56
      %v3747 = vpop.permute.xlu0 %3746
      %3748 = vrot.lane.b32.xlu0 %v3662, 56
      %v3749 = vpop.permute.xlu0 %3748
      %3750 = vrot.lane.b32.xlu0 %v3663, 56
      %v3751 = vpop.permute.xlu0 %3750
      %3752 = vrot.lane.b32.xlu0 %v3664, 56
      %v3753 = vpop.permute.xlu0 %3752
      %3754 = vrot.lane.b32.xlu0 %v3665, 56
      %v3755 = vpop.permute.xlu0 %3754
      %3756 = vrot.lane.b32.xlu0 %v3666, 56
      %v3757 = vpop.permute.xlu0 %3756
      %3758 = vrot.lane.b32.xlu0 %v3667, 56
      %v3759 = vpop.permute.xlu0 %3758
      %3760 = vrot.lane.b32.xlu0 %v3668, 56
      %v3761 = vpop.permute.xlu0 %3760
      %3762 = vrot.lane.b32.xlu0 %v3669, 56
      %v3763 = vpop.permute.xlu0 %3762
      %3764 = vrot.lane.b32.xlu0 %v3670, 56
      %v3765 = vpop.permute.xlu0 %3764
      %3766 = vrot.lane.b32.xlu0 %v3671, 56
      %v3767 = vpop.permute.xlu0 %3766
      %3800 = vst.msk [vmem:[#allocation5] sm:$0xff] %vm1762, %v3705
      %3801 = vst.msk [vmem:[#allocation5 + $0x8] sm:$0xff] %vm1762, %v3707
      %3802 = vst.msk [vmem:[#allocation5 + $0x10] sm:$0xff] %vm1762, %v3709
      %3803 = vst.msk [vmem:[#allocation5 + $0x18] sm:$0xff] %vm1762, %v3711
      %3804 = vst.msk [vmem:[#allocation5 + $0x20] sm:$0xff] %vm1762, %v3713
      %3805 = vst.msk [vmem:[#allocation5 + $0x28] sm:$0xff] %vm1762, %v3715
      %3806 = vst.msk [vmem:[#allocation5 + $0x30] sm:$0xff] %vm1762, %v3717
      %3807 = vst.msk [vmem:[#allocation5 + $0x38] sm:$0xff] %vm1762, %v3719
      %3808 = vst.msk [vmem:[#allocation5 + $0x40] sm:$0xff] %vm1762, %v3721
      %3809 = vst.msk [vmem:[#allocation5 + $0x48] sm:$0xff] %vm1762, %v3723
      %3810 = vst.msk [vmem:[#allocation5 + $0x50] sm:$0xff] %vm1762, %v3725
      %3811 = vst.msk [vmem:[#allocation5 + $0x58] sm:$0xff] %vm1762, %v3727
      %3812 = vst.msk [vmem:[#allocation5 + $0x60] sm:$0xff] %vm1762, %v3729
      %3813 = vst.msk [vmem:[#allocation5 + $0x68] sm:$0xff] %vm1762, %v3731
      %3814 = vst.msk [vmem:[#allocation5 + $0x70] sm:$0xff] %vm1762, %v3733
      %3815 = vst.msk [vmem:[#allocation5 + $0x78] sm:$0xff] %vm1762, %v3735
      %3816 = vst.msk [vmem:[#allocation5 + $0x80] sm:$0xff] %vm1762, %v3737
      %3817 = vst.msk [vmem:[#allocation5 + $0x88] sm:$0xff] %vm1762, %v3739
      %3818 = vst.msk [vmem:[#allocation5 + $0x90] sm:$0xff] %vm1762, %v3741
      %3819 = vst.msk [vmem:[#allocation5 + $0x98] sm:$0xff] %vm1762, %v3743
      %3820 = vst.msk [vmem:[#allocation5 + $0xa0] sm:$0xff] %vm1762, %v3745
      %3821 = vst.msk [vmem:[#allocation5 + $0xa8] sm:$0xff] %vm1762, %v3747
      %3822 = vst.msk [vmem:[#allocation5 + $0xb0] sm:$0xff] %vm1762, %v3749
      %3823 = vst.msk [vmem:[#allocation5 + $0xb8] sm:$0xff] %vm1762, %v3751
      %3824 = vst.msk [vmem:[#allocation5 + $0xc0] sm:$0xff] %vm1762, %v3753
      %3825 = vst.msk [vmem:[#allocation5 + $0xc8] sm:$0xff] %vm1762, %v3755
      %3826 = vst.msk [vmem:[#allocation5 + $0xd0] sm:$0xff] %vm1762, %v3757
      %3827 = vst.msk [vmem:[#allocation5 + $0xd8] sm:$0xff] %vm1762, %v3759
      %3828 = vst.msk [vmem:[#allocation5 + $0xe0] sm:$0xff] %vm1762, %v3761
      %3829 = vst.msk [vmem:[#allocation5 + $0xe8] sm:$0xff] %vm1762, %v3763
      %3830 = vst.msk [vmem:[#allocation5 + $0xf0] sm:$0xff] %vm1762, %v3765
      %3831 = vst.msk [vmem:[#allocation5 + $0xf8] sm:$0xff] %vm1762, %v3767
      %v3832 = vld [vmem:[%s3447 + $0x2] sm:$0xff]
      %v3833 = vld [vmem:[%s3447 + $0xa] sm:$0xff]
      %v3834 = vld [vmem:[%s3447 + $0x1a] sm:$0xff]
      %v3835 = vld [vmem:[%s3447 + $0x22] sm:$0xff]
      %v3836 = vld [vmem:[%s3447 + $0x32] sm:$0xff]
      %v3837 = vld [vmem:[%s3447 + $0x3a] sm:$0xff]
      %v3838 = vld [vmem:[%s3447 + $0x4a] sm:$0xff]
      %v3839 = vld [vmem:[%s3447 + $0x52] sm:$0xff]
      %v3840 = vld [vmem:[%s3447 + $0x62] sm:$0xff]
      %v3841 = vld [vmem:[%s3447 + $0x6a] sm:$0xff]
      %v3842 = vld [vmem:[%s3447 + $0x7a] sm:$0xff]
      %v3843 = vld [vmem:[%s3447 + $0x82] sm:$0xff]
      %v3844 = vld [vmem:[%s3447 + $0x92] sm:$0xff]
      %v3845 = vld [vmem:[%s3447 + $0x9a] sm:$0xff]
      %v3846 = vld [vmem:[%s3447 + $0xaa] sm:$0xff]
      %v3847 = vld [vmem:[%s3447 + $0xb2] sm:$0xff]
      %v3848 = vld [vmem:[%s3447 + $0xc2] sm:$0xff]
      %v3849 = vld [vmem:[%s3447 + $0xca] sm:$0xff]
      %v3850 = vld [vmem:[%s3447 + $0xda] sm:$0xff]
      %v3851 = vld [vmem:[%s3447 + $0xe2] sm:$0xff]
      %v3852 = vld [vmem:[%s3447 + $0xf2] sm:$0xff]
      %v3853 = vld [vmem:[%s3447 + $0xfa] sm:$0xff]
      %v3854 = vld [vmem:[%s3447 + $0x10a] sm:$0xff]
      %v3855 = vld [vmem:[%s3447 + $0x112] sm:$0xff]
      %v3856 = vld [vmem:[%s3447 + $0x122] sm:$0xff]
      %v3857 = vld [vmem:[%s3447 + $0x12a] sm:$0xff]
      %v3858 = vld [vmem:[%s3447 + $0x13a] sm:$0xff]
      %v3859 = vld [vmem:[%s3447 + $0x142] sm:$0xff]
      %v3860 = vld [vmem:[%s3447 + $0x152] sm:$0xff]
      %v3861 = vld [vmem:[%s3447 + $0x15a] sm:$0xff]
      %v3862 = vld [vmem:[%s3447 + $0x16a] sm:$0xff]
      %v3863 = vld [vmem:[%s3447 + $0x172] sm:$0xff]
      %3896 = vrot.lane.b32.xlu0 %v3832, 64
      %v3897 = vpop.permute.xlu0 %3896
      %3898 = vrot.lane.b32.xlu0 %v3833, 64
      %v3899 = vpop.permute.xlu0 %3898
      %3900 = vrot.lane.b32.xlu0 %v3834, 64
      %v3901 = vpop.permute.xlu0 %3900
      %3902 = vrot.lane.b32.xlu0 %v3835, 64
      %v3903 = vpop.permute.xlu0 %3902
      %3904 = vrot.lane.b32.xlu0 %v3836, 64
      %v3905 = vpop.permute.xlu0 %3904
      %3906 = vrot.lane.b32.xlu0 %v3837, 64
      %v3907 = vpop.permute.xlu0 %3906
      %3908 = vrot.lane.b32.xlu0 %v3838, 64
      %v3909 = vpop.permute.xlu0 %3908
      %3910 = vrot.lane.b32.xlu0 %v3839, 64
      %v3911 = vpop.permute.xlu0 %3910
      %3912 = vrot.lane.b32.xlu0 %v3840, 64
      %v3913 = vpop.permute.xlu0 %3912
      %3914 = vrot.lane.b32.xlu0 %v3841, 64
      %v3915 = vpop.permute.xlu0 %3914
      %3916 = vrot.lane.b32.xlu0 %v3842, 64
      %v3917 = vpop.permute.xlu0 %3916
      %3918 = vrot.lane.b32.xlu0 %v3843, 64
      %v3919 = vpop.permute.xlu0 %3918
      %3920 = vrot.lane.b32.xlu0 %v3844, 64
      %v3921 = vpop.permute.xlu0 %3920
      %3922 = vrot.lane.b32.xlu0 %v3845, 64
      %v3923 = vpop.permute.xlu0 %3922
      %3924 = vrot.lane.b32.xlu0 %v3846, 64
      %v3925 = vpop.permute.xlu0 %3924
      %3926 = vrot.lane.b32.xlu0 %v3847, 64
      %v3927 = vpop.permute.xlu0 %3926
      %3928 = vrot.lane.b32.xlu0 %v3848, 64
      %v3929 = vpop.permute.xlu0 %3928
      %3930 = vrot.lane.b32.xlu0 %v3849, 64
      %v3931 = vpop.permute.xlu0 %3930
      %3932 = vrot.lane.b32.xlu0 %v3850, 64
      %v3933 = vpop.permute.xlu0 %3932
      %3934 = vrot.lane.b32.xlu0 %v3851, 64
      %v3935 = vpop.permute.xlu0 %3934
      %3936 = vrot.lane.b32.xlu0 %v3852, 64
      %v3937 = vpop.permute.xlu0 %3936
      %3938 = vrot.lane.b32.xlu0 %v3853, 64
      %v3939 = vpop.permute.xlu0 %3938
      %3940 = vrot.lane.b32.xlu0 %v3854, 64
      %v3941 = vpop.permute.xlu0 %3940
      %3942 = vrot.lane.b32.xlu0 %v3855, 64
      %v3943 = vpop.permute.xlu0 %3942
      %3944 = vrot.lane.b32.xlu0 %v3856, 64
      %v3945 = vpop.permute.xlu0 %3944
      %3946 = vrot.lane.b32.xlu0 %v3857, 64
      %v3947 = vpop.permute.xlu0 %3946
      %3948 = vrot.lane.b32.xlu0 %v3858, 64
      %v3949 = vpop.permute.xlu0 %3948
      %3950 = vrot.lane.b32.xlu0 %v3859, 64
      %v3951 = vpop.permute.xlu0 %3950
      %3952 = vrot.lane.b32.xlu0 %v3860, 64
      %v3953 = vpop.permute.xlu0 %3952
      %3954 = vrot.lane.b32.xlu0 %v3861, 64
      %v3955 = vpop.permute.xlu0 %3954
      %3956 = vrot.lane.b32.xlu0 %v3862, 64
      %v3957 = vpop.permute.xlu0 %3956
      %3958 = vrot.lane.b32.xlu0 %v3863, 64
      %v3959 = vpop.permute.xlu0 %3958
      %3992 = vst.msk [vmem:[#allocation5] sm:$0xff] %vm1955, %v3897
      %3993 = vst.msk [vmem:[#allocation5 + $0x8] sm:$0xff] %vm1955, %v3899
      %3994 = vst.msk [vmem:[#allocation5 + $0x10] sm:$0xff] %vm1955, %v3901
      %3995 = vst.msk [vmem:[#allocation5 + $0x18] sm:$0xff] %vm1955, %v3903
      %3996 = vst.msk [vmem:[#allocation5 + $0x20] sm:$0xff] %vm1955, %v3905
      %3997 = vst.msk [vmem:[#allocation5 + $0x28] sm:$0xff] %vm1955, %v3907
      %3998 = vst.msk [vmem:[#allocation5 + $0x30] sm:$0xff] %vm1955, %v3909
      %3999 = vst.msk [vmem:[#allocation5 + $0x38] sm:$0xff] %vm1955, %v3911
      %4000 = vst.msk [vmem:[#allocation5 + $0x40] sm:$0xff] %vm1955, %v3913
      %4001 = vst.msk [vmem:[#allocation5 + $0x48] sm:$0xff] %vm1955, %v3915
      %4002 = vst.msk [vmem:[#allocation5 + $0x50] sm:$0xff] %vm1955, %v3917
      %4003 = vst.msk [vmem:[#allocation5 + $0x58] sm:$0xff] %vm1955, %v3919
      %4004 = vst.msk [vmem:[#allocation5 + $0x60] sm:$0xff] %vm1955, %v3921
      %4005 = vst.msk [vmem:[#allocation5 + $0x68] sm:$0xff] %vm1955, %v3923
      %4006 = vst.msk [vmem:[#allocation5 + $0x70] sm:$0xff] %vm1955, %v3925
      %4007 = vst.msk [vmem:[#allocation5 + $0x78] sm:$0xff] %vm1955, %v3927
      %4008 = vst.msk [vmem:[#allocation5 + $0x80] sm:$0xff] %vm1955, %v3929
      %4009 = vst.msk [vmem:[#allocation5 + $0x88] sm:$0xff] %vm1955, %v3931
      %4010 = vst.msk [vmem:[#allocation5 + $0x90] sm:$0xff] %vm1955, %v3933
      %4011 = vst.msk [vmem:[#allocation5 + $0x98] sm:$0xff] %vm1955, %v3935
      %4012 = vst.msk [vmem:[#allocation5 + $0xa0] sm:$0xff] %vm1955, %v3937
      %4013 = vst.msk [vmem:[#allocation5 + $0xa8] sm:$0xff] %vm1955, %v3939
      %4014 = vst.msk [vmem:[#allocation5 + $0xb0] sm:$0xff] %vm1955, %v3941
      %4015 = vst.msk [vmem:[#allocation5 + $0xb8] sm:$0xff] %vm1955, %v3943
      %4016 = vst.msk [vmem:[#allocation5 + $0xc0] sm:$0xff] %vm1955, %v3945
      %4017 = vst.msk [vmem:[#allocation5 + $0xc8] sm:$0xff] %vm1955, %v3947
      %4018 = vst.msk [vmem:[#allocation5 + $0xd0] sm:$0xff] %vm1955, %v3949
      %4019 = vst.msk [vmem:[#allocation5 + $0xd8] sm:$0xff] %vm1955, %v3951
      %4020 = vst.msk [vmem:[#allocation5 + $0xe0] sm:$0xff] %vm1955, %v3953
      %4021 = vst.msk [vmem:[#allocation5 + $0xe8] sm:$0xff] %vm1955, %v3955
      %4022 = vst.msk [vmem:[#allocation5 + $0xf0] sm:$0xff] %vm1955, %v3957
      %4023 = vst.msk [vmem:[#allocation5 + $0xf8] sm:$0xff] %vm1955, %v3959
      %v4024 = vld [vmem:[%s3] sm:$0xff]
      %v4025 = vld [vmem:[#allocation5] sm:$0xff]
      %v4026 = vld [vmem:[#allocation5 + $0x8] sm:$0xff]
      %v4027 = vld [vmem:[#allocation5 + $0x10] sm:$0xff]
      %v4028 = vld [vmem:[#allocation5 + $0x18] sm:$0xff]
      %v4029 = vld [vmem:[#allocation5 + $0x20] sm:$0xff]
      %v4030 = vld [vmem:[#allocation5 + $0x28] sm:$0xff]
      %v4031 = vld [vmem:[#allocation5 + $0x30] sm:$0xff]
      %v4032 = vld [vmem:[#allocation5 + $0x38] sm:$0xff]
      %v4033 = vld [vmem:[#allocation5 + $0x40] sm:$0xff]
      %v4034 = vld [vmem:[#allocation5 + $0x48] sm:$0xff]
      %v4035 = vld [vmem:[#allocation5 + $0x50] sm:$0xff]
      %v4036 = vld [vmem:[#allocation5 + $0x58] sm:$0xff]
      %v4037 = vld [vmem:[#allocation5 + $0x60] sm:$0xff]
      %v4038 = vld [vmem:[#allocation5 + $0x68] sm:$0xff]
      %v4039 = vld [vmem:[#allocation5 + $0x70] sm:$0xff]
      %v4040 = vld [vmem:[#allocation5 + $0x78] sm:$0xff]
      %v4041 = vld [vmem:[#allocation5 + $0x80] sm:$0xff]
      %v4042 = vld [vmem:[#allocation5 + $0x88] sm:$0xff]
      %v4043 = vld [vmem:[#allocation5 + $0x90] sm:$0xff]
      %v4044 = vld [vmem:[#allocation5 + $0x98] sm:$0xff]
      %v4045 = vld [vmem:[#allocation5 + $0xa0] sm:$0xff]
      %v4046 = vld [vmem:[#allocation5 + $0xa8] sm:$0xff]
      %v4047 = vld [vmem:[#allocation5 + $0xb0] sm:$0xff]
      %v4048 = vld [vmem:[#allocation5 + $0xb8] sm:$0xff]
      %v4049 = vld [vmem:[#allocation5 + $0xc0] sm:$0xff]
      %v4050 = vld [vmem:[#allocation5 + $0xc8] sm:$0xff]
      %v4051 = vld [vmem:[#allocation5 + $0xd0] sm:$0xff]
      %v4052 = vld [vmem:[#allocation5 + $0xd8] sm:$0xff]
      %v4053 = vld [vmem:[#allocation5 + $0xe0] sm:$0xff]
      %v4054 = vld [vmem:[#allocation5 + $0xe8] sm:$0xff]
      %v4055 = vld [vmem:[#allocation5 + $0xf0] sm:$0xff]
      %v4056 = vld [vmem:[#allocation5 + $0xf8] sm:$0xff]
      %v4057 = vld [vmem:[%s4] sm:$0xff]
      %4059 = vset.pattern.permute.xlu0 0
      %4060 = vperm.xlu0 %4059, %v4057
      %v4061 = vpop.permute.xlu0 %4060
      %v4064 = vsel %vm2036, %v4024, 0
      %v4067 = vsel %vm2036, %v4025, 0
      %v4070 = vsel %vm2036, %v4026, 0
      %v4073 = vsel %vm2036, %v4027, 0
      %v4076 = vsel %vm2036, %v4028, 0
      %v4079 = vsel %vm2036, %v4029, 0
      %v4082 = vsel %vm2036, %v4030, 0
      %v4085 = vsel %vm2036, %v4031, 0
      %v4088 = vsel %vm2036, %v4032, 0
      %v4091 = vsel %vm2036, %v4033, 0
      %v4094 = vsel %vm2036, %v4034, 0
      %v4097 = vsel %vm2036, %v4035, 0
      %v4100 = vsel %vm2036, %v4036, 0
      %v4103 = vsel %vm2036, %v4037, 0
      %v4106 = vsel %vm2036, %v4038, 0
      %v4109 = vsel %vm2036, %v4039, 0
      %v4112 = vsel %vm2036, %v4040, 0
      %v4115 = vsel %vm2036, %v4041, 0
      %v4118 = vsel %vm2036, %v4042, 0
      %v4121 = vsel %vm2036, %v4043, 0
      %v4124 = vsel %vm2036, %v4044, 0
      %v4127 = vsel %vm2036, %v4045, 0
      %v4130 = vsel %vm2036, %v4046, 0
      %v4133 = vsel %vm2036, %v4047, 0
      %v4136 = vsel %vm2036, %v4048, 0
      %v4139 = vsel %vm2036, %v4049, 0
      %v4142 = vsel %vm2036, %v4050, 0
      %v4145 = vsel %vm2036, %v4051, 0
      %v4148 = vsel %vm2036, %v4052, 0
      %v4151 = vsel %vm2036, %v4053, 0
      %v4154 = vsel %vm2036, %v4054, 0
      %v4157 = vsel %vm2036, %v4055, 0
      %v4160 = vsel %vm2036, %v4056, 0
      %4162 = vmatprep.subr.mxu0 0.0
      %4163 = vmatpush1.xpose.msra.mxu0 %v4112
      %4164 = vmatprep.subr.mxu0 0.0
      %4165 = vmatpush1.xpose.msra.mxu0 %v4109
      %4166 = vmatprep.subr.mxu0 0.0
      %4167 = vmatpush1.xpose.msra.mxu0 %v4106
      %4168 = vmatprep.subr.mxu0 0.0
      %4169 = vmatpush1.xpose.msra.mxu0 %v4103
      %4170 = vmatprep.subr.mxu0 0.0
      %4171 = vmatpush1.xpose.msra.mxu0 %v4100
      %4172 = vmatprep.subr.mxu0 0.0
      %4173 = vmatpush1.xpose.msra.mxu0 %v4097
      %4174 = vmatprep.subr.mxu0 0.0
      %4175 = vmatpush1.xpose.msra.mxu0 %v4094
      %4176 = vmatprep.subr.mxu0 0.0
      %4177 = vmatpush1.xpose.msra.mxu0 %v4091
      %4178 = vmatprep.subr.mxu0 0.0
      %4179 = vmatpush1.xpose.msra.mxu0 %v4088
      %4180 = vmatprep.subr.mxu0 0.0
      %4181 = vmatpush1.xpose.msra.mxu0 %v4085
      %4182 = vmatprep.subr.mxu0 0.0
      %4183 = vmatpush1.xpose.msra.mxu0 %v4082
      %4184 = vmatprep.subr.mxu0 0.0
      %4185 = vmatpush1.xpose.msra.mxu0 %v4079
      %4186 = vmatprep.subr.mxu0 0.0
      %4187 = vmatpush1.xpose.msra.mxu0 %v4076
      %4188 = vmatprep.subr.mxu0 0.0
      %4189 = vmatpush1.xpose.msra.mxu0 %v4073
      %4190 = vmatprep.subr.mxu0 0.0
      %4191 = vmatpush1.xpose.msra.mxu0 %v4070
      %4192 = vmatprep.subr.mxu0 0.0
      %4193 = vmatpush1.xpose.msra.mxu0 %v4067
      %4194 = vmatprep.subr.mxu0 0.0
      %4195 = vmatpush2.xpose.msra.mxu0 %v4160
      %4196 = vmatprep.subr.mxu0 0.0
      %4197 = vmatpush2.xpose.msra.mxu0 %v4157
      %4198 = vmatprep.subr.mxu0 0.0
      %4199 = vmatpush2.xpose.msra.mxu0 %v4154
      %4200 = vmatprep.subr.mxu0 0.0
      %4201 = vmatpush2.xpose.msra.mxu0 %v4151
      %4202 = vmatprep.subr.mxu0 0.0
      %4203 = vmatpush2.xpose.msra.mxu0 %v4148
      %4204 = vmatprep.subr.mxu0 0.0
      %4205 = vmatpush2.xpose.msra.mxu0 %v4145
      %4206 = vmatprep.subr.mxu0 0.0
      %4207 = vmatpush2.xpose.msra.mxu0 %v4142
      %4208 = vmatprep.subr.mxu0 0.0
      %4209 = vmatpush2.xpose.msra.mxu0 %v4139
      %4210 = vmatprep.subr.mxu0 0.0
      %4211 = vmatpush2.xpose.msra.mxu0 %v4136
      %4212 = vmatprep.subr.mxu0 0.0
      %4213 = vmatpush2.xpose.msra.mxu0 %v4133
      %4214 = vmatprep.subr.mxu0 0.0
      %4215 = vmatpush2.xpose.msra.mxu0 %v4130
      %4216 = vmatprep.subr.mxu0 0.0
      %4217 = vmatpush2.xpose.msra.mxu0 %v4127
      %4218 = vmatprep.subr.mxu0 0.0
      %4219 = vmatpush2.xpose.msra.mxu0 %v4124
      %4220 = vmatprep.subr.mxu0 0.0
      %4221 = vmatpush2.xpose.msra.mxu0 %v4121
      %4222 = vmatprep.subr.mxu0 0.0
      %4223 = vmatpush2.xpose.msra.mxu0 %v4118
      %4224 = vmatprep.subr.mxu0 0.0
      %4225 = vmatpush2.xpose.msra.mxu0 %v4115
      %4226 = vmatprep.mubr.f32.mxu0 0.0
      %4227 = vmatmul.mubr.f32.gmra.mxu0 %v4064
      %v4228 = vpop.f32.mrf.mxu0
      %v4229 = vadd.f32 %v4061, %v4228
      %v4230 = vpop.f32.mrf.mxu0
      %v4231 = vadd.f32 %v4061, %v4230
      %4232 = vdwg.mxu0
      %v4233 = vld [vmem:[%s219] sm:$0xff]
      %v4234 = vld [vmem:[%s219 + $0x8] sm:$0xff]
      %v4235 = vld [vmem:[%s219 + $0x10] sm:$0xff]
      %v4236 = vld [vmem:[%s219 + $0x18] sm:$0xff]
      %v4237 = vld [vmem:[%s219 + $0x20] sm:$0xff]
      %v4238 = vld [vmem:[%s219 + $0x28] sm:$0xff]
      %v4239 = vld [vmem:[%s219 + $0x30] sm:$0xff]
      %v4240 = vld [vmem:[%s219 + $0x38] sm:$0xff]
      %v4241 = vld [vmem:[%s219 + $0x40] sm:$0xff]
      %v4242 = vld [vmem:[%s219 + $0x48] sm:$0xff]
      %v4243 = vld [vmem:[%s219 + $0x50] sm:$0xff]
      %v4244 = vld [vmem:[%s219 + $0x58] sm:$0xff]
      %v4245 = vld [vmem:[%s219 + $0x60] sm:$0xff]
      %v4246 = vld [vmem:[%s219 + $0x68] sm:$0xff]
      %v4247 = vld [vmem:[%s219 + $0x70] sm:$0xff]
      %v4248 = vld [vmem:[%s219 + $0x78] sm:$0xff]
      %v4249 = vld [vmem:[%s219 + $0x80] sm:$0xff]
      %v4250 = vld [vmem:[%s219 + $0x88] sm:$0xff]
      %v4251 = vld [vmem:[%s219 + $0x90] sm:$0xff]
      %v4252 = vld [vmem:[%s219 + $0x98] sm:$0xff]
      %v4253 = vld [vmem:[%s219 + $0xa0] sm:$0xff]
      %v4254 = vld [vmem:[%s219 + $0xa8] sm:$0xff]
      %v4255 = vld [vmem:[%s219 + $0xb0] sm:$0xff]
      %v4256 = vld [vmem:[%s219 + $0xb8] sm:$0xff]
      %v4257 = vld [vmem:[%s219 + $0xc0] sm:$0xff]
      %v4258 = vld [vmem:[%s219 + $0xc8] sm:$0xff]
      %v4259 = vld [vmem:[%s219 + $0xd0] sm:$0xff]
      %v4260 = vld [vmem:[%s219 + $0xd8] sm:$0xff]
      %v4261 = vld [vmem:[%s219 + $0xe0] sm:$0xff]
      %v4262 = vld [vmem:[%s219 + $0xe8] sm:$0xff]
      %v4263 = vld [vmem:[%s219 + $0xf0] sm:$0xff]
      %v4264 = vld [vmem:[%s219 + $0xf8] sm:$0xff]
      %4265 = vxpose.xlu0.b32.start [1/16] %v4233, 128
      %4266 = vxpose.xlu0.b32.cont [2/16] %v4234, 128
      %4267 = vxpose.xlu0.b32.cont [3/16] %v4235, 128
      %4268 = vxpose.xlu0.b32.cont [4/16] %v4236, 128
      %4269 = vxpose.xlu0.b32.cont [5/16] %v4237, 128
      %4270 = vxpose.xlu0.b32.cont [6/16] %v4238, 128
      %4271 = vxpose.xlu0.b32.cont [7/16] %v4239, 128
      %4272 = vxpose.xlu0.b32.cont [8/16] %v4240, 128
      %4273 = vxpose.xlu0.b32.cont [9/16] %v4241, 128
      %4274 = vxpose.xlu0.b32.cont [10/16] %v4242, 128
      %4275 = vxpose.xlu0.b32.cont [11/16] %v4243, 128
      %4276 = vxpose.xlu0.b32.cont [12/16] %v4244, 128
      %4277 = vxpose.xlu0.b32.cont [13/16] %v4245, 128
      %4278 = vxpose.xlu0.b32.cont [14/16] %v4246, 128
      %4279 = vxpose.xlu0.b32.cont [15/16] %v4247, 128
      %4280 = vxpose.xlu0.b32.end [16/16] %v4248, 128
      %v4281 = vpop.trf.xlu0
      %v4282 = vpop.trf.xlu0
      %v4283 = vpop.trf.xlu0
      %v4284 = vpop.trf.xlu0
      %v4285 = vpop.trf.xlu0
      %v4286 = vpop.trf.xlu0
      %v4287 = vpop.trf.xlu0
      %v4288 = vpop.trf.xlu0
      %v4289 = vpop.trf.xlu0
      %v4290 = vpop.trf.xlu0
      %v4291 = vpop.trf.xlu0
      %v4292 = vpop.trf.xlu0
      %v4293 = vpop.trf.xlu0
      %v4294 = vpop.trf.xlu0
      %v4295 = vpop.trf.xlu0
      %v4296 = vpop.trf.xlu0
      %4297 = vxpose.xlu0.b32.start [1/16] %v4249, 128
      %4298 = vxpose.xlu0.b32.cont [2/16] %v4250, 128
      %4299 = vxpose.xlu0.b32.cont [3/16] %v4251, 128
      %4300 = vxpose.xlu0.b32.cont [4/16] %v4252, 128
      %4301 = vxpose.xlu0.b32.cont [5/16] %v4253, 128
      %4302 = vxpose.xlu0.b32.cont [6/16] %v4254, 128
      %4303 = vxpose.xlu0.b32.cont [7/16] %v4255, 128
      %4304 = vxpose.xlu0.b32.cont [8/16] %v4256, 128
      %4305 = vxpose.xlu0.b32.cont [9/16] %v4257, 128
      %4306 = vxpose.xlu0.b32.cont [10/16] %v4258, 128
      %4307 = vxpose.xlu0.b32.cont [11/16] %v4259, 128
      %4308 = vxpose.xlu0.b32.cont [12/16] %v4260, 128
      %4309 = vxpose.xlu0.b32.cont [13/16] %v4261, 128
      %4310 = vxpose.xlu0.b32.cont [14/16] %v4262, 128
      %4311 = vxpose.xlu0.b32.cont [15/16] %v4263, 128
      %4312 = vxpose.xlu0.b32.end [16/16] %v4264, 128
      %v4313 = vpop.trf.xlu0
      %v4314 = vpop.trf.xlu0
      %v4315 = vpop.trf.xlu0
      %v4316 = vpop.trf.xlu0
      %v4317 = vpop.trf.xlu0
      %v4318 = vpop.trf.xlu0
      %v4319 = vpop.trf.xlu0
      %v4320 = vpop.trf.xlu0
      %v4321 = vpop.trf.xlu0
      %v4322 = vpop.trf.xlu0
      %v4323 = vpop.trf.xlu0
      %v4324 = vpop.trf.xlu0
      %v4325 = vpop.trf.xlu0
      %v4326 = vpop.trf.xlu0
      %v4327 = vpop.trf.xlu0
      %v4328 = vpop.trf.xlu0
      %v4329 = vadd.f32 %v4229, %v4281
      %v4330 = vadd.f32 %v4231, %v4313
      %v4331 = vmax.f32 %v4329, 0.0
      %v4332 = vmax.f32 %v4330, 0.0
      %4333 = vst [vmem:[%s224] sm:$0xff] %v4331
      %4334 = vst [vmem:[%s224 + $0x8] sm:$0xff] %v4332
      %p4335 = scmp.lt.s32.totalorder %s16, 1
      %s4336 = scalar_select %p4335, %s16, 1
      %s4337 = smul.addr %s4336, 2
      %s4338 = smul.addr %s4337, 8
      %s4339 = scalar_lea.vmem %s5, %s4338
      // Predicated region
      $region41: #{basic_block_forward.1} parent=39 // pred_check
        %p4340 = pneg %p144
      $region42: #{basic_block_forward.1} parent=39 // pred_check_branch
        %4342 = sbr.rel (%p4340) target = $region44
      $region43: #{basic_block_forward.1} parent=39 // pred_region
        _
      $region44: #{basic_block_forward.1} parent=39 // pred_fallthru
        _
    $region40: #{basic_block_forward.1} parent=5 // pred_fallthru
      _
    %p4343 = scmp.le.s32.totalorder 2, %s11
    // Predicated region
    $region45: #{basic_block_forward.1} parent=5 // pred_check
      %p4344 = pneg %p4343
    $region46: #{basic_block_forward.1} parent=5 // pred_check_branch
      %4346 = sbr.rel (%p4344) target = $region48
    $region47: #{basic_block_forward.1} parent=5 // pred_region
      %s4347 = ssub.s32 %s11, 2
      // Predicated region
      $region49: #{basic_block_forward.1} parent=47 // pred_check
        %p4348 = pneg %p150
      $region50: #{basic_block_forward.1} parent=47 // pred_check_branch
        %4350 = sbr.rel (%p4348) target = $region52
      $region51: #{basic_block_forward.1} parent=47 // pred_region
        %p4351 = scmp.lt.s32.totalorder %s17, 1
        %s4352 = scalar_select %p4351, %s17, 1
        %s4353 = smul.addr %s4352, 2
        %s4354 = smul.addr %s4353, 8
        %s4355 = scalar_lea.vmem %s5, %s4354
      $region52: #{basic_block_forward.1} parent=47 // pred_fallthru
        _
    $region48: #{basic_block_forward.1} parent=5 // pred_fallthru
      _
  $region6: #{basic_block_forward.1} parent=0 // loop_footer
    %s15 = sadd.s32 1, %s11
  $region7: #{basic_block_forward.1} parent=0 // loop_footer_branch
    %10 = sbr.rel target = $region3
  $region8: #{basic_block_forward.1} parent=0 // loop_exit
    _

</llo_original>
